<compile_context>
chip_gen: v5e
topology: v5e:2x2
jax: 0.10.0
libtpu: 0.0.40
codegen_flags: <defaults>
</compile_context>

<pallas_src>
import functools
import math

import jax
import jax.numpy as jnp
from jax import lax
from jax.experimental import pallas as pl
from jax.experimental.pallas import tpu as pltpu

_MXU_DTYPE = jnp.bfloat16   # MXU operand dtype (accumulation stays f32).


# ----------------------------------------------------------------------------
# In-kernel helpers
# ----------------------------------------------------------------------------
def _conv3x3_flat_to_scratch(src_ref, w_ref, b_ref, dst_ref, *, W, ksz):
    """VALID ksz x ksz conv (stride 1) + folded-BN bias + ReLU, wide-row flat form.

    src_ref : (1, 1, H*W, Cin) bf16  NHWC image with rows flattened
    w_ref   : (1, ksz*ksz, Cin, N) bf16  taps, BN scale already folded in
    b_ref   : (1, 1, N) f32  folded BN bias
    dst_ref : (rows, N) f32  VMEM scratch; the first (H-ksz+1)*W-(ksz-1) rows get the
              wide-row conv output (per output row, columns >= W-ksz+1 are harmless
              wrap-around garbage that valid consumers never read); any extra rows
              are zero-filled padding.

    Each tap is one whole-plane MXU dot of a contiguous row-shifted slab.
    """
    HW = src_ref.shape[2]
    H = HW // W
    n = (H - ksz + 1) * W - (ksz - 1)        # exactly in-bounds wide-flat output length
    nch = w_ref.shape[3]

    acc = jnp.zeros((n, nch), jnp.float32)
    for u in range(ksz):
        for v in range(ksz):
            off = u * W + v
            lhs = src_ref[0, 0, off:off + n, :]                     # (n, Cin) bf16
            acc = acc + jnp.dot(lhs, w_ref[0, u * ksz + v],
                                preferred_element_type=jnp.float32)

    dst_ref[0:n, :] = jnp.maximum(acc + b_ref[0], 0.0)
    pad = dst_ref.shape[0] - n
    if pad:                                   # static; zero pad rows (xcorr over-read)
        dst_ref[n:, :] = jnp.zeros((pad, nch), jnp.float32)


def _fused_dwrpn_kernel(z_ref, x_ref,
                        ckw_ref, ckb_ref, csw_ref, csb_ref,
                        h1w_ref, h1b_ref, h2w_ref, h2b_ref,
                        out_ref,
                        zk_ref, xs_ref,
                        *, Wz, Wx, ksz):
    """Fused DepthwiseRPN (cls ++ loc packed on channels), one (level, batch) step."""
    # 1) conv_kernel on the template, conv_search on the search region.
    _conv3x3_flat_to_scratch(z_ref, ckw_ref, ckb_ref, zk_ref, W=Wz, ksz=ksz)
    _conv3x3_flat_to_scratch(x_ref, csw_ref, csb_ref, xs_ref, W=Wx, ksz=ksz)

    c2 = zk_ref.shape[1]
    Hzo = (z_ref.shape[2] // Wz) - ksz + 1    # xcorr kernel height
    Wzo = Wz - ksz + 1                        # xcorr kernel width
    n_feat = out_ref.shape[2]                 # = Ho * Wx (wide-flat feature length)

    # 2) Depthwise cross-correlation: whole-plane VPU FMAs over the Hzo*Wzo taps.
    #    Valid output positions (i < Ho, j < Wo) only ever touch valid conv outputs;
    #    wide-row garbage stays confined to discarded columns.
    feat = jnp.zeros((n_feat, c2), jnp.float32)
    for u in range(Hzo):
        for v in range(Wzo):
            k_off = u * Wz + v
            s_off = u * Wx + v
            feat = feat + (xs_ref[s_off:s_off + n_feat, :]
                           * zk_ref[k_off:k_off + 1, :])

    # 3) Head: 1x1 conv (+folded BN) + ReLU, then 1x1 conv + bias — whole-plane matmuls
    #    with block-diagonal cls/loc weights, one store per step.
    h = jnp.dot(feat.astype(_MXU_DTYPE), h1w_ref[0],
                preferred_element_type=jnp.float32)
    h = jnp.maximum(h + h1b_ref[0], 0.0)
    o = jnp.dot(h.astype(_MXU_DTYPE), h2w_ref[0],
                preferred_element_type=jnp.float32) + h2b_ref[0]
    out_ref[0, 0] = o.astype(out_ref.dtype)


# ----------------------------------------------------------------------------
# Parameter packing (fold BN scale into weights, cast MXU operands to bf16)
# ----------------------------------------------------------------------------
def _pack_level(p):
    return dict(
        ck_w=(p['ck_w'] * p['ck_s'][0]).astype(_MXU_DTYPE),   # (k*k, Cin, C2)
        ck_b=p['ck_b'],                                       # (1, C2) f32
        cs_w=(p['cs_w'] * p['cs_s'][0]).astype(_MXU_DTYPE),
        cs_b=p['cs_b'],
        h1_w=(p['h1_w'] * p['h1_s'][0]).astype(_MXU_DTYPE),   # (C2, C2)
        h1_b=p['h1_b'],
        h2_w=p['h2_w'].astype(_MXU_DTYPE),                    # (C2, Ctot)
        h2_b=p['h2_b'],
    )


# ----------------------------------------------------------------------------
# Wrappers
# ----------------------------------------------------------------------------
def _fused_multi_level(params, z_fs, x_fs):
    """Run all given pyramid levels in ONE pallas_call; return level-averaged (cls, loc)."""
    L = len(params)
    packed = [_pack_level(p) for p in params]

    # NCHW -> NHWC, flatten rows, bf16 MXU inputs (one layout conversion for all levels).
    z = jnp.stack([jnp.transpose(zf, (0, 2, 3, 1)) for zf in z_fs]).astype(_MXU_DTYPE)
    x = jnp.stack([jnp.transpose(xf, (0, 2, 3, 1)) for xf in x_fs]).astype(_MXU_DTYPE)
    _, B, Hz, Wz, Cin = z.shape
    _, _, Hx, Wx, _ = x.shape
    z = z.reshape(L, B, Hz * Wz, Cin)
    x = x.reshape(L, B, Hx * Wx, Cin)

    kk = packed[0]['ck_w'].shape[0]
    ksz = int(math.isqrt(kk))
    C2 = packed[0]['ck_w'].shape[2]
    Ctot = packed[0]['h2_w'].shape[1]
    Hzo, Wzo = Hz - ksz + 1, Wz - ksz + 1
    Hxo, Wxo = Hx - ksz + 1, Wx - ksz + 1
    Ho, Wo = Hxo - Hzo + 1, Wxo - Wzo + 1

    n_zk = Hzo * Wz - (ksz - 1)              # template conv scratch rows (exact)
    n_xs = Hxo * Wx + (Wzo - 1)              # search conv scratch rows (+ zero pad)
    n_out = Ho * Wx                          # wide-flat feature/output rows

    stack = lambda name: jnp.stack([pk[name] for pk in packed])
    kern = functools.partial(_fused_dwrpn_kernel, Wz=Wz, Wx=Wx, ksz=ksz)

    out = pl.pallas_call(
        kern,
        grid=(L, B),
        in_specs=[
            pl.BlockSpec((1, 1, Hz * Wz, Cin), lambda l, b: (l, b, 0, 0)),
            pl.BlockSpec((1, 1, Hx * Wx, Cin), lambda l, b: (l, b, 0, 0)),
            pl.BlockSpec((1, kk, Cin, C2), lambda l, b: (l, 0, 0, 0)),   # conv_kernel W
            pl.BlockSpec((1, 1, C2), lambda l, b: (l, 0, 0)),            # conv_kernel b
            pl.BlockSpec((1, kk, Cin, C2), lambda l, b: (l, 0, 0, 0)),   # conv_search W
            pl.BlockSpec((1, 1, C2), lambda l, b: (l, 0, 0)),            # conv_search b
            pl.BlockSpec((1, C2, C2), lambda l, b: (l, 0, 0)),           # head conv1 W
            pl.BlockSpec((1, 1, C2), lambda l, b: (l, 0, 0)),            # head conv1 b
            pl.BlockSpec((1, C2, Ctot), lambda l, b: (l, 0, 0)),         # head conv2 W
            pl.BlockSpec((1, 1, Ctot), lambda l, b: (l, 0, 0)),          # head conv2 b
        ],
        out_specs=pl.BlockSpec((1, 1, n_out, Ctot), lambda l, b: (l, b, 0, 0)),
        out_shape=jax.ShapeDtypeStruct((L, B, n_out, Ctot), jnp.float32),
        scratch_shapes=[pltpu.VMEM((n_zk, C2), jnp.float32),   # conv_kernel output
                        pltpu.VMEM((n_xs, C2), jnp.float32)],  # conv_search output
        compiler_params=pltpu.CompilerParams(
            dimension_semantics=("parallel", "parallel"),   # levels x batch across TCs
            vmem_limit_bytes=32 * 1024 * 1024),
    )(z, x,
      stack('ck_w'), stack('ck_b'), stack('cs_w'), stack('cs_b'),
      stack('h1_w'), stack('h1_b'), stack('h2_w'), stack('h2_b'))

    # Average over levels (tiny), recover (Ho, Wo) from the wide-flat rows, go NCHW.
    out = jnp.mean(out, axis=0)                         # (B, Ho*Wx, Ctot)
    out = out.reshape(B, Ho, Wx, Ctot)[:, :, :Wo, :]    # drop wide-row garbage columns
    out = jnp.transpose(out, (0, 3, 1, 2))              # NCHW
    n_cls = params[0]['n_cls']
    return out[:, :n_cls], out[:, n_cls:]


def depthwise_rpn_forward(p, z_nchw, x_nchw):
    """DepthwiseRPN.forward for a single pyramid level. Returns (cls, loc) in NCHW."""
    return _fused_multi_level([p], [z_nchw], [x_nchw])


def multi_rpn_forward(params, z_fs, x_fs):
    """MultiRPN.forward (weighted=False): average cls/loc over pyramid levels."""
    same = (len({tuple(z.shape) for z in z_fs}) == 1
            and len({tuple(x.shape) for x in x_fs}) == 1
            and len({p['ck_w'].shape for p in params}) == 1
            and len({p['h2_w'].shape for p in params}) == 1)
    if same:
        return _fused_multi_level(params, z_fs, x_fs)   # all levels in one launch
    # TODO(synk): heterogeneous level shapes fall back to one pallas_call per level.
    outs = [_fused_multi_level([p], [z], [x]) for p, z, x in zip(params, z_fs, x_fs)]
    n = len(outs)
    return sum(o[0] for o in outs) / n, sum(o[1] for o in outs) / n


# ----------------------------------------------------------------------------
# Parameter construction (inference-mode BN, cls ++ loc fused f32 masters)
# ----------------------------------------------------------------------------
def _fold_bn(gamma, beta, mean, var, eps=1e-5):
    scale = gamma / jnp.sqrt(var + eps)
    return scale, beta - mean * scale


def _rand_bn(key, c):
    k1, k2, k3, k4 = jax.random.split(key, 4)
    gamma = jax.random.uniform(k1, (c,), jnp.float32, 0.5, 1.5)
    beta = 0.1 * jax.random.normal(k2, (c,), jnp.float32)
    mean = 0.1 * jax.random.normal(k3, (c,), jnp.float32)
    var = jax.random.uniform(k4, (c,), jnp.float32, 0.5, 1.5)
    return _fold_bn(gamma, beta, mean, var)


def _block_diag(a, b):
    r1, c1 = a.shape
    r2, c2 = b.shape
    top = jnp.concatenate([a, jnp.zeros((r1, c2), a.dtype)], axis=1)
    bot = jnp.concatenate([jnp.zeros((r2, c1), b.dtype), b], axis=1)
    return jnp.concatenate([top, bot], axis=0)


def init_dwrpn_params(key, in_ch, hidden, anchor_num, ksize=3):
    """Fused (cls ++ loc) parameters for one DepthwiseRPN level (f32 masters)."""
    n_cls, n_loc = 2 * anchor_num, 4 * anchor_num
    ks = jax.random.split(key, 16)

    def conv_w(k):
        return 0.1 * jax.random.normal(k, (ksize * ksize, in_ch, hidden), jnp.float32)

    def bn_pair(ka, kb):
        sa, ba = _rand_bn(ka, hidden)
        sb, bb = _rand_bn(kb, hidden)
        return (jnp.concatenate([sa, sb]).reshape(1, -1),
                jnp.concatenate([ba, bb]).reshape(1, -1))

    ck_w = jnp.concatenate([conv_w(ks[0]), conv_w(ks[1])], axis=-1)     # (k*k, Cin, 2H)
    ck_s, ck_b = bn_pair(ks[2], ks[3])
    cs_w = jnp.concatenate([conv_w(ks[4]), conv_w(ks[5])], axis=-1)
    cs_s, cs_b = bn_pair(ks[6], ks[7])
    h1_w = _block_diag(0.1 * jax.random.normal(ks[8], (hidden, hidden), jnp.float32),
                       0.1 * jax.random.normal(ks[9], (hidden, hidden), jnp.float32))
    h1_s, h1_b = bn_pair(ks[10], ks[11])
    h2_w = _block_diag(0.1 * jax.random.normal(ks[12], (hidden, n_cls), jnp.float32),
                       0.1 * jax.random.normal(ks[13], (hidden, n_loc), jnp.float32))
    h2_b = jnp.concatenate(
        [0.1 * jax.random.normal(ks[14], (n_cls,), jnp.float32),
         0.1 * jax.random.normal(ks[15], (n_loc,), jnp.float32)]).reshape(1, -1)
    return dict(ck_w=ck_w, ck_s=ck_s, ck_b=ck_b,
                cs_w=cs_w, cs_s=cs_s, cs_b=cs_b,
                h1_w=h1_w, h1_s=h1_s, h1_b=h1_b,
                h2_w=h2_w, h2_b=h2_b, n_cls=n_cls)


# ----------------------------------------------------------------------------
# Pure-JAX f32 reference (for the correctness check)
# ----------------------------------------------------------------------------
def _reference_dwrpn(p, z_nchw, x_nchw):
    z = jnp.transpose(z_nchw, (0, 2, 3, 1)).astype(jnp.float32)
    x = jnp.transpose(x_nchw, (0, 2, 3, 1)).astype(jnp.float32)
    kk, cin, c2 = p['ck_w'].shape
    ksz = int(math.isqrt(kk))

    def conv_bn_relu(a, w_taps, s, b):
        w = w_taps.reshape(ksz, ksz, cin, c2)                   # HWIO
        y = lax.conv_general_dilated(a, w, (1, 1), 'VALID',
                                     dimension_numbers=('NHWC', 'HWIO', 'NHWC'))
        return jnp.maximum(y * s.reshape(1, 1, 1, -1) + b.reshape(1, 1, 1, -1), 0.0)

    zk = conv_bn_relu(z, p['ck_w'], p['ck_s'], p['ck_b'])
    xs = conv_bn_relu(x, p['cs_w'], p['cs_s'], p['cs_b'])
    feats = []
    for bi in range(z.shape[0]):
        kern = zk[bi].reshape(zk.shape[1], zk.shape[2], 1, c2)
        feats.append(lax.conv_general_dilated(
            xs[bi:bi + 1], kern, (1, 1), 'VALID',
            dimension_numbers=('NHWC', 'HWIO', 'NHWC'),
            feature_group_count=c2))
    feat = jnp.concatenate(feats, axis=0)
    h = jnp.maximum(jnp.einsum('bhwc,cd->bhwd', feat, p['h1_w'])
                    * p['h1_s'].reshape(1, 1, 1, -1) + p['h1_b'].reshape(1, 1, 1, -1),
                    0.0)
    o = jnp.einsum('bhwc,cd->bhwd', h, p['h2_w']) + p['h2_b'].reshape(1, 1, 1, -1)
    out = jnp.transpose(o, (0, 3, 1, 2))
    return out[:, :p['n_cls']], out[:, p['n_cls']:]


if __name__ == "__main__":
    anchor_num = 2
    in_channels = [8, 8]          # two pyramid levels; hidden == in_channels[i]
    B = 2
    Hz, Hx = 8, 16                # template / search spatial sizes

    key = jax.random.PRNGKey(0)
    kz, kx, kp = jax.random.split(key, 3)

    z_fs = [jax.random.normal(jax.random.fold_in(kz, i), (B, c, Hz, Hz), jnp.float32)
            for i, c in enumerate(in_channels)]
    x_fs = [jax.random.normal(jax.random.fold_in(kx, i), (B, c, Hx, Hx), jnp.float32)
            for i, c in enumerate(in_channels)]

    params = [init_dwrpn_params(jax.random.fold_in(kp, i), c, c, anchor_num)
              for i, c in enumerate(in_channels)]

    cls, loc = multi_rpn_forward(params, z_fs, x_fs)
    cls, loc = jax.block_until_ready((cls, loc))

    # After the 3x3 convs: z -> 6x6, x -> 14x14; depthwise xcorr -> 9x9 output map.
    assert cls.shape == (B, 2 * anchor_num, 9, 9), cls.shape
    assert loc.shape == (B, 4 * anchor_num, 9, 9), loc.shape
    assert bool(jnp.all(jnp.isfinite(cls))) and bool(jnp.all(jnp.isfinite(loc)))

    # Pure-JAX f32 reference (kernel uses bf16 MXU operands -> generous tolerance).
    ref = [_reference_dwrpn(p, z_f, x_f) for p, z_f, x_f in zip(params, z_fs, x_fs)]
    ref_cls = sum(r[0] for r in ref) / len(ref)
    ref_loc = sum(r[1] for r in ref) / len(ref)
    err = max(float(jnp.max(jnp.abs(cls - ref_cls))),
              float(jnp.max(jnp.abs(loc - ref_loc))))
    mag = max(float(jnp.max(jnp.abs(ref_cls))), float(jnp.max(jnp.abs(ref_loc))), 1.0)
    assert err <= 0.1 * mag + 0.05, ("mismatch vs reference", err, mag)

    print("KERNEL_OK")
</pallas_src>

<mosaic_0001>
module attributes {stable_mosaic.version = 11 : i64} {
  func.func @_fused_dwrpn_kernel(%arg0: i32, %arg1: i32, %arg2: memref<1x1x64x8xbf16, #tpu.memory_space<vmem>>, %arg3: memref<1x1x256x8xbf16, #tpu.memory_space<vmem>>, %arg4: memref<1x9x8x16xbf16, #tpu.memory_space<vmem>>, %arg5: memref<1x1x16xf32, #tpu.memory_space<vmem>>, %arg6: memref<1x9x8x16xbf16, #tpu.memory_space<vmem>>, %arg7: memref<1x1x16xf32, #tpu.memory_space<vmem>>, %arg8: memref<1x16x16xbf16, #tpu.memory_space<vmem>>, %arg9: memref<1x1x16xf32, #tpu.memory_space<vmem>>, %arg10: memref<1x16x12xbf16, #tpu.memory_space<vmem>>, %arg11: memref<1x1x12xf32, #tpu.memory_space<vmem>>, %arg12: memref<1x1x144x12xf32, #tpu.memory_space<vmem>>, %arg13: memref<46x16xf32, #tpu.memory_space<vmem>>, %arg14: memref<229x16xf32, #tpu.memory_space<vmem>>) attributes {dimension_semantics = [#tpu.dimension_semantics<parallel>, #tpu.dimension_semantics<parallel>], iteration_bounds = array<i64: 2, 2>, scalar_prefetch = 0 : i64, scratch_operands = 2 : i64, tpu.core_type = #tpu.core_type<tc>, window_params = [{transform_indices = @transform_0, window_bounds = array<i64: 1, 1, 64, 8>}, {transform_indices = @transform_1, window_bounds = array<i64: 1, 1, 256, 8>}, {transform_indices = @transform_2, window_bounds = array<i64: 1, 9, 8, 16>}, {transform_indices = @transform_3, window_bounds = array<i64: 1, 1, 16>}, {transform_indices = @transform_4, window_bounds = array<i64: 1, 9, 8, 16>}, {transform_indices = @transform_5, window_bounds = array<i64: 1, 1, 16>}, {transform_indices = @transform_6, window_bounds = array<i64: 1, 16, 16>}, {transform_indices = @transform_7, window_bounds = array<i64: 1, 1, 16>}, {transform_indices = @transform_8, window_bounds = array<i64: 1, 16, 12>}, {transform_indices = @transform_9, window_bounds = array<i64: 1, 1, 12>}, {transform_indices = @transform_10, window_bounds = array<i64: 1, 1, 144, 12>}]} {
    %cst = arith.constant 0.000000e+00 : f32
    %0 = vector.broadcast %cst : f32 to vector<46x16xf32>
    %c0 = arith.constant 0 : index
    %c0_0 = arith.constant 0 : index
    %c0_1 = arith.constant 0 : index
    %c0_2 = arith.constant 0 : index
    %1 = vector.load %arg2[%c0, %c0_0, %c0_1, %c0_2] : memref<1x1x64x8xbf16, #tpu.memory_space<vmem>>, vector<1x1x46x8xbf16>
    %2 = vector.shape_cast %1 : vector<1x1x46x8xbf16> to vector<46x8xbf16>
    %c0_3 = arith.constant 0 : index
    %c0_4 = arith.constant 0 : index
    %c0_5 = arith.constant 0 : index
    %c0_6 = arith.constant 0 : index
    %3 = vector.load %arg4[%c0_3, %c0_4, %c0_5, %c0_6] : memref<1x9x8x16xbf16, #tpu.memory_space<vmem>>, vector<1x1x8x16xbf16>
    %4 = vector.shape_cast %3 : vector<1x1x8x16xbf16> to vector<8x16xbf16>
    %cst_7 = arith.constant dense<0.000000e+00> : vector<46x16xf32>
    %5 = tpu.matmul %2, %4, %cst_7 {dimension_numbers = #tpu.dot_dimension_numbers<[1], [0], [0], [1], [0, 0, 1, 1], [], []>} : vector<46x8xbf16>, vector<8x16xbf16>, vector<46x16xf32> -> vector<46x16xf32>
    %6 = arith.addf %0, %5 : vector<46x16xf32>
    %c0_8 = arith.constant 0 : index
    %c0_9 = arith.constant 0 : index
    %c1 = arith.constant 1 : index
    %c0_10 = arith.constant 0 : index
    %7 = vector.load %arg2[%c0_8, %c0_9, %c1, %c0_10] : memref<1x1x64x8xbf16, #tpu.memory_space<vmem>>, vector<1x1x46x8xbf16>
    %8 = vector.shape_cast %7 : vector<1x1x46x8xbf16> to vector<46x8xbf16>
    %c0_11 = arith.constant 0 : index
    %c1_12 = arith.constant 1 : index
    %c0_13 = arith.constant 0 : index
    %c0_14 = arith.constant 0 : index
    %9 = vector.load %arg4[%c0_11, %c1_12, %c0_13, %c0_14] : memref<1x9x8x16xbf16, #tpu.memory_space<vmem>>, vector<1x1x8x16xbf16>
    %10 = vector.shape_cast %9 : vector<1x1x8x16xbf16> to vector<8x16xbf16>
    %cst_15 = arith.constant dense<0.000000e+00> : vector<46x16xf32>
    %11 = tpu.matmul %8, %10, %cst_15 {dimension_numbers = #tpu.dot_dimension_numbers<[1], [0], [0], [1], [0, 0, 1, 1], [], []>} : vector<46x8xbf16>, vector<8x16xbf16>, vector<46x16xf32> -> vector<46x16xf32>
    %12 = arith.addf %6, %11 : vector<46x16xf32>
    %c0_16 = arith.constant 0 : index
    %c0_17 = arith.constant 0 : index
    %c2 = arith.constant 2 : index
    %c0_18 = arith.constant 0 : index
    %13 = vector.load %arg2[%c0_16, %c0_17, %c2, %c0_18] : memref<1x1x64x8xbf16, #tpu.memory_space<vmem>>, vector<1x1x46x8xbf16>
    %14 = vector.shape_cast %13 : vector<1x1x46x8xbf16> to vector<46x8xbf16>
    %c0_19 = arith.constant 0 : index
    %c2_20 = arith.constant 2 : index
    %c0_21 = arith.constant 0 : index
    %c0_22 = arith.constant 0 : index
    %15 = vector.load %arg4[%c0_19, %c2_20, %c0_21, %c0_22] : memref<1x9x8x16xbf16, #tpu.memory_space<vmem>>, vector<1x1x8x16xbf16>
    %16 = vector.shape_cast %15 : vector<1x1x8x16xbf16> to vector<8x16xbf16>
    %cst_23 = arith.constant dense<0.000000e+00> : vector<46x16xf32>
    %17 = tpu.matmul %14, %16, %cst_23 {dimension_numbers = #tpu.dot_dimension_numbers<[1], [0], [0], [1], [0, 0, 1, 1], [], []>} : vector<46x8xbf16>, vector<8x16xbf16>, vector<46x16xf32> -> vector<46x16xf32>
    %18 = arith.addf %12, %17 : vector<46x16xf32>
    %c0_24 = arith.constant 0 : index
    %c0_25 = arith.constant 0 : index
    %c8 = arith.constant 8 : index
    %c0_26 = arith.constant 0 : index
    %19 = vector.load %arg2[%c0_24, %c0_25, %c8, %c0_26] : memref<1x1x64x8xbf16, #tpu.memory_space<vmem>>, vector<1x1x46x8xbf16>
    %20 = vector.shape_cast %19 : vector<1x1x46x8xbf16> to vector<46x8xbf16>
    %c0_27 = arith.constant 0 : index
    %c3 = arith.constant 3 : index
    %c0_28 = arith.constant 0 : index
    %c0_29 = arith.constant 0 : index
    %21 = vector.load %arg4[%c0_27, %c3, %c0_28, %c0_29] : memref<1x9x8x16xbf16, #tpu.memory_space<vmem>>, vector<1x1x8x16xbf16>
    %22 = vector.shape_cast %21 : vector<1x1x8x16xbf16> to vector<8x16xbf16>
    %cst_30 = arith.constant dense<0.000000e+00> : vector<46x16xf32>
    %23 = tpu.matmul %20, %22, %cst_30 {dimension_numbers = #tpu.dot_dimension_numbers<[1], [0], [0], [1], [0, 0, 1, 1], [], []>} : vector<46x8xbf16>, vector<8x16xbf16>, vector<46x16xf32> -> vector<46x16xf32>
    %24 = arith.addf %18, %23 : vector<46x16xf32>
    %c0_31 = arith.constant 0 : index
    %c0_32 = arith.constant 0 : index
    %c9 = arith.constant 9 : index
    %c0_33 = arith.constant 0 : index
    %25 = vector.load %arg2[%c0_31, %c0_32, %c9, %c0_33] : memref<1x1x64x8xbf16, #tpu.memory_space<vmem>>, vector<1x1x46x8xbf16>
    %26 = vector.shape_cast %25 : vector<1x1x46x8xbf16> to vector<46x8xbf16>
    %c0_34 = arith.constant 0 : index
    %c4 = arith.constant 4 : index
    %c0_35 = arith.constant 0 : index
    %c0_36 = arith.constant 0 : index
    %27 = vector.load %arg4[%c0_34, %c4, %c0_35, %c0_36] : memref<1x9x8x16xbf16, #tpu.memory_space<vmem>>, vector<1x1x8x16xbf16>
    %28 = vector.shape_cast %27 : vector<1x1x8x16xbf16> to vector<8x16xbf16>
    %cst_37 = arith.constant dense<0.000000e+00> : vector<46x16xf32>
    %29 = tpu.matmul %26, %28, %cst_37 {dimension_numbers = #tpu.dot_dimension_numbers<[1], [0], [0], [1], [0, 0, 1, 1], [], []>} : vector<46x8xbf16>, vector<8x16xbf16>, vector<46x16xf32> -> vector<46x16xf32>
    %30 = arith.addf %24, %29 : vector<46x16xf32>
    %c0_38 = arith.constant 0 : index
    %c0_39 = arith.constant 0 : index
    %c10 = arith.constant 10 : index
    %c0_40 = arith.constant 0 : index
    %31 = vector.load %arg2[%c0_38, %c0_39, %c10, %c0_40] : memref<1x1x64x8xbf16, #tpu.memory_space<vmem>>, vector<1x1x46x8xbf16>
    %32 = vector.shape_cast %31 : vector<1x1x46x8xbf16> to vector<46x8xbf16>
    %c0_41 = arith.constant 0 : index
    %c5 = arith.constant 5 : index
    %c0_42 = arith.constant 0 : index
    %c0_43 = arith.constant 0 : index
    %33 = vector.load %arg4[%c0_41, %c5, %c0_42, %c0_43] : memref<1x9x8x16xbf16, #tpu.memory_space<vmem>>, vector<1x1x8x16xbf16>
    %34 = vector.shape_cast %33 : vector<1x1x8x16xbf16> to vector<8x16xbf16>
    %cst_44 = arith.constant dense<0.000000e+00> : vector<46x16xf32>
    %35 = tpu.matmul %32, %34, %cst_44 {dimension_numbers = #tpu.dot_dimension_numbers<[1], [0], [0], [1], [0, 0, 1, 1], [], []>} : vector<46x8xbf16>, vector<8x16xbf16>, vector<46x16xf32> -> vector<46x16xf32>
    %36 = arith.addf %30, %35 : vector<46x16xf32>
    %c0_45 = arith.constant 0 : index
    %c0_46 = arith.constant 0 : index
    %c16 = arith.constant 16 : index
    %c0_47 = arith.constant 0 : index
    %37 = vector.load %arg2[%c0_45, %c0_46, %c16, %c0_47] : memref<1x1x64x8xbf16, #tpu.memory_space<vmem>>, vector<1x1x46x8xbf16>
    %38 = vector.shape_cast %37 : vector<1x1x46x8xbf16> to vector<46x8xbf16>
    %c0_48 = arith.constant 0 : index
    %c6 = arith.constant 6 : index
    %c0_49 = arith.constant 0 : index
    %c0_50 = arith.constant 0 : index
    %39 = vector.load %arg4[%c0_48, %c6, %c0_49, %c0_50] : memref<1x9x8x16xbf16, #tpu.memory_space<vmem>>, vector<1x1x8x16xbf16>
    %40 = vector.shape_cast %39 : vector<1x1x8x16xbf16> to vector<8x16xbf16>
    %cst_51 = arith.constant dense<0.000000e+00> : vector<46x16xf32>
    %41 = tpu.matmul %38, %40, %cst_51 {dimension_numbers = #tpu.dot_dimension_numbers<[1], [0], [0], [1], [0, 0, 1, 1], [], []>} : vector<46x8xbf16>, vector<8x16xbf16>, vector<46x16xf32> -> vector<46x16xf32>
    %42 = arith.addf %36, %41 : vector<46x16xf32>
    %c0_52 = arith.constant 0 : index
    %c0_53 = arith.constant 0 : index
    %c17 = arith.constant 17 : index
    %c0_54 = arith.constant 0 : index
    %43 = vector.load %arg2[%c0_52, %c0_53, %c17, %c0_54] : memref<1x1x64x8xbf16, #tpu.memory_space<vmem>>, vector<1x1x46x8xbf16>
    %44 = vector.shape_cast %43 : vector<1x1x46x8xbf16> to vector<46x8xbf16>
    %c0_55 = arith.constant 0 : index
    %c7 = arith.constant 7 : index
    %c0_56 = arith.constant 0 : index
    %c0_57 = arith.constant 0 : index
    %45 = vector.load %arg4[%c0_55, %c7, %c0_56, %c0_57] : memref<1x9x8x16xbf16, #tpu.memory_space<vmem>>, vector<1x1x8x16xbf16>
    %46 = vector.shape_cast %45 : vector<1x1x8x16xbf16> to vector<8x16xbf16>
    %cst_58 = arith.constant dense<0.000000e+00> : vector<46x16xf32>
    %47 = tpu.matmul %44, %46, %cst_58 {dimension_numbers = #tpu.dot_dimension_numbers<[1], [0], [0], [1], [0, 0, 1, 1], [], []>} : vector<46x8xbf16>, vector<8x16xbf16>, vector<46x16xf32> -> vector<46x16xf32>
    %48 = arith.addf %42, %47 : vector<46x16xf32>
    %c0_59 = arith.constant 0 : index
    %c0_60 = arith.constant 0 : index
    %c18 = arith.constant 18 : index
    %c0_61 = arith.constant 0 : index
    %49 = vector.load %arg2[%c0_59, %c0_60, %c18, %c0_61] : memref<1x1x64x8xbf16, #tpu.memory_space<vmem>>, vector<1x1x46x8xbf16>
    %50 = vector.shape_cast %49 : vector<1x1x46x8xbf16> to vector<46x8xbf16>
    %c0_62 = arith.constant 0 : index
    %c8_63 = arith.constant 8 : index
    %c0_64 = arith.constant 0 : index
    %c0_65 = arith.constant 0 : index
    %51 = vector.load %arg4[%c0_62, %c8_63, %c0_64, %c0_65] : memref<1x9x8x16xbf16, #tpu.memory_space<vmem>>, vector<1x1x8x16xbf16>
    %52 = vector.shape_cast %51 : vector<1x1x8x16xbf16> to vector<8x16xbf16>
    %cst_66 = arith.constant dense<0.000000e+00> : vector<46x16xf32>
    %53 = tpu.matmul %50, %52, %cst_66 {dimension_numbers = #tpu.dot_dimension_numbers<[1], [0], [0], [1], [0, 0, 1, 1], [], []>} : vector<46x8xbf16>, vector<8x16xbf16>, vector<46x16xf32> -> vector<46x16xf32>
    %54 = arith.addf %48, %53 : vector<46x16xf32>
    %c0_67 = arith.constant 0 : index
    %c0_68 = arith.constant 0 : index
    %c0_69 = arith.constant 0 : index
    %55 = vector.load %arg5[%c0_67, %c0_68, %c0_69] : memref<1x1x16xf32, #tpu.memory_space<vmem>>, vector<1x1x16xf32>
    %56 = vector.shape_cast %55 : vector<1x1x16xf32> to vector<1x16xf32>
    %57 = vector.broadcast %56 : vector<1x16xf32> to vector<46x16xf32>
    %58 = arith.addf %54, %57 : vector<46x16xf32>
    %cst_70 = arith.constant 0.000000e+00 : f32
    %59 = vector.broadcast %cst_70 : f32 to vector<46x16xf32>
    %60 = arith.maximumf %58, %59 : vector<46x16xf32>
    %c0_71 = arith.constant 0 : index
    %c0_72 = arith.constant 0 : index
    %61 = vector.load %arg13[%c0_71, %c0_72] : memref<46x16xf32, #tpu.memory_space<vmem>>, vector<46x16xf32>
    tpu.vector_store %arg13[%c0_71, %c0_72], %60 {strides = array<i32>} : memref<46x16xf32, #tpu.memory_space<vmem>>, vector<46x16xf32>,
    %cst_73 = arith.constant 0.000000e+00 : f32
    %62 = vector.broadcast %cst_73 : f32 to vector<222x16xf32>
    %c0_74 = arith.constant 0 : index
    %c0_75 = arith.constant 0 : index
    %c0_76 = arith.constant 0 : index
    %c0_77 = arith.constant 0 : index
    %63 = vector.load %arg3[%c0_74, %c0_75, %c0_76, %c0_77] : memref<1x1x256x8xbf16, #tpu.memory_space<vmem>>, vector<1x1x222x8xbf16>
    %64 = vector.shape_cast %63 : vector<1x1x222x8xbf16> to vector<222x8xbf16>
    %c0_78 = arith.constant 0 : index
    %c0_79 = arith.constant 0 : index
    %c0_80 = arith.constant 0 : index
    %c0_81 = arith.constant 0 : index
    %65 = vector.load %arg6[%c0_78, %c0_79, %c0_80, %c0_81] : memref<1x9x8x16xbf16, #tpu.memory_space<vmem>>, vector<1x1x8x16xbf16>
    %66 = vector.shape_cast %65 : vector<1x1x8x16xbf16> to vector<8x16xbf16>
    %cst_82 = arith.constant dense<0.000000e+00> : vector<222x16xf32>
    %67 = tpu.matmul %64, %66, %cst_82 {dimension_numbers = #tpu.dot_dimension_numbers<[1], [0], [0], [1], [0, 0, 1, 1], [], []>} : vector<222x8xbf16>, vector<8x16xbf16>, vector<222x16xf32> -> vector<222x16xf32>
    %68 = arith.addf %62, %67 : vector<222x16xf32>
    %c0_83 = arith.constant 0 : index
    %c0_84 = arith.constant 0 : index
    %c1_85 = arith.constant 1 : index
    %c0_86 = arith.constant 0 : index
    %69 = vector.load %arg3[%c0_83, %c0_84, %c1_85, %c0_86] : memref<1x1x256x8xbf16, #tpu.memory_space<vmem>>, vector<1x1x222x8xbf16>
    %70 = vector.shape_cast %69 : vector<1x1x222x8xbf16> to vector<222x8xbf16>
    %c0_87 = arith.constant 0 : index
    %c1_88 = arith.constant 1 : index
    %c0_89 = arith.constant 0 : index
    %c0_90 = arith.constant 0 : index
    %71 = vector.load %arg6[%c0_87, %c1_88, %c0_89, %c0_90] : memref<1x9x8x16xbf16, #tpu.memory_space<vmem>>, vector<1x1x8x16xbf16>
    %72 = vector.shape_cast %71 : vector<1x1x8x16xbf16> to vector<8x16xbf16>
    %cst_91 = arith.constant dense<0.000000e+00> : vector<222x16xf32>
    %73 = tpu.matmul %70, %72, %cst_91 {dimension_numbers = #tpu.dot_dimension_numbers<[1], [0], [0], [1], [0, 0, 1, 1], [], []>} : vector<222x8xbf16>, vector<8x16xbf16>, vector<222x16xf32> -> vector<222x16xf32>
    %74 = arith.addf %68, %73 : vector<222x16xf32>
    %c0_92 = arith.constant 0 : index
    %c0_93 = arith.constant 0 : index
    %c2_94 = arith.constant 2 : index
    %c0_95 = arith.constant 0 : index
    %75 = vector.load %arg3[%c0_92, %c0_93, %c2_94, %c0_95] : memref<1x1x256x8xbf16, #tpu.memory_space<vmem>>, vector<1x1x222x8xbf16>
    %76 = vector.shape_cast %75 : vector<1x1x222x8xbf16> to vector<222x8xbf16>
    %c0_96 = arith.constant 0 : index
    %c2_97 = arith.constant 2 : index
    %c0_98 = arith.constant 0 : index
    %c0_99 = arith.constant 0 : index
    %77 = vector.load %arg6[%c0_96, %c2_97, %c0_98, %c0_99] : memref<1x9x8x16xbf16, #tpu.memory_space<vmem>>, vector<1x1x8x16xbf16>
    %78 = vector.shape_cast %77 : vector<1x1x8x16xbf16> to vector<8x16xbf16>
    %cst_100 = arith.constant dense<0.000000e+00> : vector<222x16xf32>
    %79 = tpu.matmul %76, %78, %cst_100 {dimension_numbers = #tpu.dot_dimension_numbers<[1], [0], [0], [1], [0, 0, 1, 1], [], []>} : vector<222x8xbf16>, vector<8x16xbf16>, vector<222x16xf32> -> vector<222x16xf32>
    %80 = arith.addf %74, %79 : vector<222x16xf32>
    %c0_101 = arith.constant 0 : index
    %c0_102 = arith.constant 0 : index
    %c16_103 = arith.constant 16 : index
    %c0_104 = arith.constant 0 : index
    %81 = vector.load %arg3[%c0_101, %c0_102, %c16_103, %c0_104] : memref<1x1x256x8xbf16, #tpu.memory_space<vmem>>, vector<1x1x222x8xbf16>
    %82 = vector.shape_cast %81 : vector<1x1x222x8xbf16> to vector<222x8xbf16>
    %c0_105 = arith.constant 0 : index
    %c3_106 = arith.constant 3 : index
    %c0_107 = arith.constant 0 : index
    %c0_108 = arith.constant 0 : index
    %83 = vector.load %arg6[%c0_105, %c3_106, %c0_107, %c0_108] : memref<1x9x8x16xbf16, #tpu.memory_space<vmem>>, vector<1x1x8x16xbf16>
    %84 = vector.shape_cast %83 : vector<1x1x8x16xbf16> to vector<8x16xbf16>
    %cst_109 = arith.constant dense<0.000000e+00> : vector<222x16xf32>
    %85 = tpu.matmul %82, %84, %cst_109 {dimension_numbers = #tpu.dot_dimension_numbers<[1], [0], [0], [1], [0, 0, 1, 1], [], []>} : vector<222x8xbf16>, vector<8x16xbf16>, vector<222x16xf32> -> vector<222x16xf32>
    %86 = arith.addf %80, %85 : vector<222x16xf32>
    %c0_110 = arith.constant 0 : index
    %c0_111 = arith.constant 0 : index
    %c17_112 = arith.constant 17 : index
    %c0_113 = arith.constant 0 : index
    %87 = vector.load %arg3[%c0_110, %c0_111, %c17_112, %c0_113] : memref<1x1x256x8xbf16, #tpu.memory_space<vmem>>, vector<1x1x222x8xbf16>
    %88 = vector.shape_cast %87 : vector<1x1x222x8xbf16> to vector<222x8xbf16>
    %c0_114 = arith.constant 0 : index
    %c4_115 = arith.constant 4 : index
    %c0_116 = arith.constant 0 : index
    %c0_117 = arith.constant 0 : index
    %89 = vector.load %arg6[%c0_114, %c4_115, %c0_116, %c0_117] : memref<1x9x8x16xbf16, #tpu.memory_space<vmem>>, vector<1x1x8x16xbf16>
    %90 = vector.shape_cast %89 : vector<1x1x8x16xbf16> to vector<8x16xbf16>
    %cst_118 = arith.constant dense<0.000000e+00> : vector<222x16xf32>
    %91 = tpu.matmul %88, %90, %cst_118 {dimension_numbers = #tpu.dot_dimension_numbers<[1], [0], [0], [1], [0, 0, 1, 1], [], []>} : vector<222x8xbf16>, vector<8x16xbf16>, vector<222x16xf32> -> vector<222x16xf32>
    %92 = arith.addf %86, %91 : vector<222x16xf32>
    %c0_119 = arith.constant 0 : index
    %c0_120 = arith.constant 0 : index
    %c18_121 = arith.constant 18 : index
    %c0_122 = arith.constant 0 : index
    %93 = vector.load %arg3[%c0_119, %c0_120, %c18_121, %c0_122] : memref<1x1x256x8xbf16, #tpu.memory_space<vmem>>, vector<1x1x222x8xbf16>
    %94 = vector.shape_cast %93 : vector<1x1x222x8xbf16> to vector<222x8xbf16>
    %c0_123 = arith.constant 0 : index
    %c5_124 = arith.constant 5 : index
    %c0_125 = arith.constant 0 : index
    %c0_126 = arith.constant 0 : index
    %95 = vector.load %arg6[%c0_123, %c5_124, %c0_125, %c0_126] : memref<1x9x8x16xbf16, #tpu.memory_space<vmem>>, vector<1x1x8x16xbf16>
    %96 = vector.shape_cast %95 : vector<1x1x8x16xbf16> to vector<8x16xbf16>
    %cst_127 = arith.constant dense<0.000000e+00> : vector<222x16xf32>
    %97 = tpu.matmul %94, %96, %cst_127 {dimension_numbers = #tpu.dot_dimension_numbers<[1], [0], [0], [1], [0, 0, 1, 1], [], []>} : vector<222x8xbf16>, vector<8x16xbf16>, vector<222x16xf32> -> vector<222x16xf32>
    %98 = arith.addf %92, %97 : vector<222x16xf32>
    %c0_128 = arith.constant 0 : index
    %c0_129 = arith.constant 0 : index
    %c32 = arith.constant 32 : index
    %c0_130 = arith.constant 0 : index
    %99 = vector.load %arg3[%c0_128, %c0_129, %c32, %c0_130] : memref<1x1x256x8xbf16, #tpu.memory_space<vmem>>, vector<1x1x222x8xbf16>
    %100 = vector.shape_cast %99 : vector<1x1x222x8xbf16> to vector<222x8xbf16>
    %c0_131 = arith.constant 0 : index
    %c6_132 = arith.constant 6 : index
    %c0_133 = arith.constant 0 : index
    %c0_134 = arith.constant 0 : index
    %101 = vector.load %arg6[%c0_131, %c6_132, %c0_133, %c0_134] : memref<1x9x8x16xbf16, #tpu.memory_space<vmem>>, vector<1x1x8x16xbf16>
    %102 = vector.shape_cast %101 : vector<1x1x8x16xbf16> to vector<8x16xbf16>
    %cst_135 = arith.constant dense<0.000000e+00> : vector<222x16xf32>
    %103 = tpu.matmul %100, %102, %cst_135 {dimension_numbers = #tpu.dot_dimension_numbers<[1], [0], [0], [1], [0, 0, 1, 1], [], []>} : vector<222x8xbf16>, vector<8x16xbf16>, vector<222x16xf32> -> vector<222x16xf32>
    %104 = arith.addf %98, %103 : vector<222x16xf32>
    %c0_136 = arith.constant 0 : index
    %c0_137 = arith.constant 0 : index
    %c33 = arith.constant 33 : index
    %c0_138 = arith.constant 0 : index
    %105 = vector.load %arg3[%c0_136, %c0_137, %c33, %c0_138] : memref<1x1x256x8xbf16, #tpu.memory_space<vmem>>, vector<1x1x222x8xbf16>
    %106 = vector.shape_cast %105 : vector<1x1x222x8xbf16> to vector<222x8xbf16>
    %c0_139 = arith.constant 0 : index
    %c7_140 = arith.constant 7 : index
    %c0_141 = arith.constant 0 : index
    %c0_142 = arith.constant 0 : index
    %107 = vector.load %arg6[%c0_139, %c7_140, %c0_141, %c0_142] : memref<1x9x8x16xbf16, #tpu.memory_space<vmem>>, vector<1x1x8x16xbf16>
    %108 = vector.shape_cast %107 : vector<1x1x8x16xbf16> to vector<8x16xbf16>
    %cst_143 = arith.constant dense<0.000000e+00> : vector<222x16xf32>
    %109 = tpu.matmul %106, %108, %cst_143 {dimension_numbers = #tpu.dot_dimension_numbers<[1], [0], [0], [1], [0, 0, 1, 1], [], []>} : vector<222x8xbf16>, vector<8x16xbf16>, vector<222x16xf32> -> vector<222x16xf32>
    %110 = arith.addf %104, %109 : vector<222x16xf32>
    %c0_144 = arith.constant 0 : index
    %c0_145 = arith.constant 0 : index
    %c34 = arith.constant 34 : index
    %c0_146 = arith.constant 0 : index
    %111 = vector.load %arg3[%c0_144, %c0_145, %c34, %c0_146] : memref<1x1x256x8xbf16, #tpu.memory_space<vmem>>, vector<1x1x222x8xbf16>
    %112 = vector.shape_cast %111 : vector<1x1x222x8xbf16> to vector<222x8xbf16>
    %c0_147 = arith.constant 0 : index
    %c8_148 = arith.constant 8 : index
    %c0_149 = arith.constant 0 : index
    %c0_150 = arith.constant 0 : index
    %113 = vector.load %arg6[%c0_147, %c8_148, %c0_149, %c0_150] : memref<1x9x8x16xbf16, #tpu.memory_space<vmem>>, vector<1x1x8x16xbf16>
    %114 = vector.shape_cast %113 : vector<1x1x8x16xbf16> to vector<8x16xbf16>
    %cst_151 = arith.constant dense<0.000000e+00> : vector<222x16xf32>
    %115 = tpu.matmul %112, %114, %cst_151 {dimension_numbers = #tpu.dot_dimension_numbers<[1], [0], [0], [1], [0, 0, 1, 1], [], []>} : vector<222x8xbf16>, vector<8x16xbf16>, vector<222x16xf32> -> vector<222x16xf32>
    %116 = arith.addf %110, %115 : vector<222x16xf32>
    %c0_152 = arith.constant 0 : index
    %c0_153 = arith.constant 0 : index
    %c0_154 = arith.constant 0 : index
    %117 = vector.load %arg7[%c0_152, %c0_153, %c0_154] : memref<1x1x16xf32, #tpu.memory_space<vmem>>, vector<1x1x16xf32>
    %118 = vector.shape_cast %117 : vector<1x1x16xf32> to vector<1x16xf32>
    %119 = vector.broadcast %118 : vector<1x16xf32> to vector<222x16xf32>
    %120 = arith.addf %116, %119 : vector<222x16xf32>
    %cst_155 = arith.constant 0.000000e+00 : f32
    %121 = vector.broadcast %cst_155 : f32 to vector<222x16xf32>
    %122 = arith.maximumf %120, %121 : vector<222x16xf32>
    %c0_156 = arith.constant 0 : index
    %c0_157 = arith.constant 0 : index
    %123 = vector.load %arg14[%c0_156, %c0_157] : memref<229x16xf32, #tpu.memory_space<vmem>>, vector<222x16xf32>
    tpu.vector_store %arg14[%c0_156, %c0_157], %122 {strides = array<i32>} : memref<229x16xf32, #tpu.memory_space<vmem>>, vector<222x16xf32>,
    %cst_158 = arith.constant 0.000000e+00 : f32
    %124 = vector.broadcast %cst_158 : f32 to vector<7x16xf32>
    %c222 = arith.constant 222 : index
    %c0_159 = arith.constant 0 : index
    %125 = vector.load %arg14[%c222, %c0_159] : memref<229x16xf32, #tpu.memory_space<vmem>>, vector<7x16xf32>
    tpu.vector_store %arg14[%c222, %c0_159], %124 {strides = array<i32>} : memref<229x16xf32, #tpu.memory_space<vmem>>, vector<7x16xf32>,
    %cst_160 = arith.constant 0.000000e+00 : f32
    %126 = vector.broadcast %cst_160 : f32 to vector<144x16xf32>
    %c0_161 = arith.constant 0 : index
    %c0_162 = arith.constant 0 : index
    %127 = vector.load %arg14[%c0_161, %c0_162] : memref<229x16xf32, #tpu.memory_space<vmem>>, vector<144x16xf32>
    %c0_163 = arith.constant 0 : index
    %c0_164 = arith.constant 0 : index
    %128 = vector.load %arg13[%c0_163, %c0_164] : memref<46x16xf32, #tpu.memory_space<vmem>>, vector<1x16xf32>
    %129 = vector.broadcast %128 : vector<1x16xf32> to vector<144x16xf32>
    %130 = arith.mulf %127, %129 : vector<144x16xf32>
    %131 = arith.addf %126, %130 : vector<144x16xf32>
    %c1_165 = arith.constant 1 : index
    %c0_166 = arith.constant 0 : index
    %132 = vector.load %arg14[%c1_165, %c0_166] : memref<229x16xf32, #tpu.memory_space<vmem>>, vector<144x16xf32>
    %c1_167 = arith.constant 1 : index
    %c0_168 = arith.constant 0 : index
    %133 = vector.load %arg13[%c1_167, %c0_168] : memref<46x16xf32, #tpu.memory_space<vmem>>, vector<1x16xf32>
    %134 = vector.broadcast %133 : vector<1x16xf32> to vector<144x16xf32>
    %135 = arith.mulf %132, %134 : vector<144x16xf32>
    %136 = arith.addf %131, %135 : vector<144x16xf32>
    %c2_169 = arith.constant 2 : index
    %c0_170 = arith.constant 0 : index
    %137 = vector.load %arg14[%c2_169, %c0_170] : memref<229x16xf32, #tpu.memory_space<vmem>>, vector<144x16xf32>
    %c2_171 = arith.constant 2 : index
    %c0_172 = arith.constant 0 : index
    %138 = vector.load %arg13[%c2_171, %c0_172] : memref<46x16xf32, #tpu.memory_space<vmem>>, vector<1x16xf32>
    %139 = vector.broadcast %138 : vector<1x16xf32> to vector<144x16xf32>
    %140 = arith.mulf %137, %139 : vector<144x16xf32>
    %141 = arith.addf %136, %140 : vector<144x16xf32>
    %c3_173 = arith.constant 3 : index
    %c0_174 = arith.constant 0 : index
    %142 = vector.load %arg14[%c3_173, %c0_174] : memref<229x16xf32, #tpu.memory_space<vmem>>, vector<144x16xf32>
    %c3_175 = arith.constant 3 : index
    %c0_176 = arith.constant 0 : index
    %143 = vector.load %arg13[%c3_175, %c0_176] : memref<46x16xf32, #tpu.memory_space<vmem>>, vector<1x16xf32>
    %144 = vector.broadcast %143 : vector<1x16xf32> to vector<144x16xf32>
    %145 = arith.mulf %142, %144 : vector<144x16xf32>
    %146 = arith.addf %141, %145 : vector<144x16xf32>
    %c4_177 = arith.constant 4 : index
    %c0_178 = arith.constant 0 : index
    %147 = vector.load %arg14[%c4_177, %c0_178] : memref<229x16xf32, #tpu.memory_space<vmem>>, vector<144x16xf32>
    %c4_179 = arith.constant 4 : index
    %c0_180 = arith.constant 0 : index
    %148 = vector.load %arg13[%c4_179, %c0_180] : memref<46x16xf32, #tpu.memory_space<vmem>>, vector<1x16xf32>
    %149 = vector.broadcast %148 : vector<1x16xf32> to vector<144x16xf32>
    %150 = arith.mulf %147, %149 : vector<144x16xf32>
    %151 = arith.addf %146, %150 : vector<144x16xf32>
    %c5_181 = arith.constant 5 : index
    %c0_182 = arith.constant 0 : index
    %152 = vector.load %arg14[%c5_181, %c0_182] : memref<229x16xf32, #tpu.memory_space<vmem>>, vector<144x16xf32>
    %c5_183 = arith.constant 5 : index
    %c0_184 = arith.constant 0 : index
    %153 = vector.load %arg13[%c5_183, %c0_184] : memref<46x16xf32, #tpu.memory_space<vmem>>, vector<1x16xf32>
    %154 = vector.broadcast %153 : vector<1x16xf32> to vector<144x16xf32>
    %155 = arith.mulf %152, %154 : vector<144x16xf32>
    %156 = arith.addf %151, %155 : vector<144x16xf32>
    %c16_185 = arith.constant 16 : index
    %c0_186 = arith.constant 0 : index
    %157 = vector.load %arg14[%c16_185, %c0_186] : memref<229x16xf32, #tpu.memory_space<vmem>>, vector<144x16xf32>
    %c8_187 = arith.constant 8 : index
    %c0_188 = arith.constant 0 : index
    %158 = vector.load %arg13[%c8_187, %c0_188] : memref<46x16xf32, #tpu.memory_space<vmem>>, vector<1x16xf32>
    %159 = vector.broadcast %158 : vector<1x16xf32> to vector<144x16xf32>
    %160 = arith.mulf %157, %159 : vector<144x16xf32>
    %161 = arith.addf %156, %160 : vector<144x16xf32>
    %c17_189 = arith.constant 17 : index
    %c0_190 = arith.constant 0 : index
    %162 = vector.load %arg14[%c17_189, %c0_190] : memref<229x16xf32, #tpu.memory_space<vmem>>, vector<144x16xf32>
    %c9_191 = arith.constant 9 : index
    %c0_192 = arith.constant 0 : index
    %163 = vector.load %arg13[%c9_191, %c0_192] : memref<46x16xf32, #tpu.memory_space<vmem>>, vector<1x16xf32>
    %164 = vector.broadcast %163 : vector<1x16xf32> to vector<144x16xf32>
    %165 = arith.mulf %162, %164 : vector<144x16xf32>
    %166 = arith.addf %161, %165 : vector<144x16xf32>
    %c18_193 = arith.constant 18 : index
    %c0_194 = arith.constant 0 : index
    %167 = vector.load %arg14[%c18_193, %c0_194] : memref<229x16xf32, #tpu.memory_space<vmem>>, vector<144x16xf32>
    %c10_195 = arith.constant 10 : index
    %c0_196 = arith.constant 0 : index
    %168 = vector.load %arg13[%c10_195, %c0_196] : memref<46x16xf32, #tpu.memory_space<vmem>>, vector<1x16xf32>
    %169 = vector.broadcast %168 : vector<1x16xf32> to vector<144x16xf32>
    %170 = arith.mulf %167, %169 : vector<144x16xf32>
    %171 = arith.addf %166, %170 : vector<144x16xf32>
    %c19 = arith.constant 19 : index
    %c0_197 = arith.constant 0 : index
    %172 = vector.load %arg14[%c19, %c0_197] : memref<229x16xf32, #tpu.memory_space<vmem>>, vector<144x16xf32>
    %c11 = arith.constant 11 : index
    %c0_198 = arith.constant 0 : index
    %173 = vector.load %arg13[%c11, %c0_198] : memref<46x16xf32, #tpu.memory_space<vmem>>, vector<1x16xf32>
    %174 = vector.broadcast %173 : vector<1x16xf32> to vector<144x16xf32>
    %175 = arith.mulf %172, %174 : vector<144x16xf32>
    %176 = arith.addf %171, %175 : vector<144x16xf32>
    %c20 = arith.constant 20 : index
    %c0_199 = arith.constant 0 : index
    %177 = vector.load %arg14[%c20, %c0_199] : memref<229x16xf32, #tpu.memory_space<vmem>>, vector<144x16xf32>
    %c12 = arith.constant 12 : index
    %c0_200 = arith.constant 0 : index
    %178 = vector.load %arg13[%c12, %c0_200] : memref<46x16xf32, #tpu.memory_space<vmem>>, vector<1x16xf32>
    %179 = vector.broadcast %178 : vector<1x16xf32> to vector<144x16xf32>
    %180 = arith.mulf %177, %179 : vector<144x16xf32>
    %181 = arith.addf %176, %180 : vector<144x16xf32>
    %c21 = arith.constant 21 : index
    %c0_201 = arith.constant 0 : index
    %182 = vector.load %arg14[%c21, %c0_201] : memref<229x16xf32, #tpu.memory_space<vmem>>, vector<144x16xf32>
    %c13 = arith.constant 13 : index
    %c0_202 = arith.constant 0 : index
    %183 = vector.load %arg13[%c13, %c0_202] : memref<46x16xf32, #tpu.memory_space<vmem>>, vector<1x16xf32>
    %184 = vector.broadcast %183 : vector<1x16xf32> to vector<144x16xf32>
    %185 = arith.mulf %182, %184 : vector<144x16xf32>
    %186 = arith.addf %181, %185 : vector<144x16xf32>
    %c32_203 = arith.constant 32 : index
    %c0_204 = arith.constant 0 : index
    %187 = vector.load %arg14[%c32_203, %c0_204] : memref<229x16xf32, #tpu.memory_space<vmem>>, vector<144x16xf32>
    %c16_205 = arith.constant 16 : index
    %c0_206 = arith.constant 0 : index
    %188 = vector.load %arg13[%c16_205, %c0_206] : memref<46x16xf32, #tpu.memory_space<vmem>>, vector<1x16xf32>
    %189 = vector.broadcast %188 : vector<1x16xf32> to vector<144x16xf32>
    %190 = arith.mulf %187, %189 : vector<144x16xf32>
    %191 = arith.addf %186, %190 : vector<144x16xf32>
    %c33_207 = arith.constant 33 : index
    %c0_208 = arith.constant 0 : index
    %192 = vector.load %arg14[%c33_207, %c0_208] : memref<229x16xf32, #tpu.memory_space<vmem>>, vector<144x16xf32>
    %c17_209 = arith.constant 17 : index
    %c0_210 = arith.constant 0 : index
    %193 = vector.load %arg13[%c17_209, %c0_210] : memref<46x16xf32, #tpu.memory_space<vmem>>, vector<1x16xf32>
    %194 = vector.broadcast %193 : vector<1x16xf32> to vector<144x16xf32>
    %195 = arith.mulf %192, %194 : vector<144x16xf32>
    %196 = arith.addf %191, %195 : vector<144x16xf32>
    %c34_211 = arith.constant 34 : index
    %c0_212 = arith.constant 0 : index
    %197 = vector.load %arg14[%c34_211, %c0_212] : memref<229x16xf32, #tpu.memory_space<vmem>>, vector<144x16xf32>
    %c18_213 = arith.constant 18 : index
    %c0_214 = arith.constant 0 : index
    %198 = vector.load %arg13[%c18_213, %c0_214] : memref<46x16xf32, #tpu.memory_space<vmem>>, vector<1x16xf32>
    %199 = vector.broadcast %198 : vector<1x16xf32> to vector<144x16xf32>
    %200 = arith.mulf %197, %199 : vector<144x16xf32>
    %201 = arith.addf %196, %200 : vector<144x16xf32>
    %c35 = arith.constant 35 : index
    %c0_215 = arith.constant 0 : index
    %202 = vector.load %arg14[%c35, %c0_215] : memref<229x16xf32, #tpu.memory_space<vmem>>, vector<144x16xf32>
    %c19_216 = arith.constant 19 : index
    %c0_217 = arith.constant 0 : index
    %203 = vector.load %arg13[%c19_216, %c0_217] : memref<46x16xf32, #tpu.memory_space<vmem>>, vector<1x16xf32>
    %204 = vector.broadcast %203 : vector<1x16xf32> to vector<144x16xf32>
    %205 = arith.mulf %202, %204 : vector<144x16xf32>
    %206 = arith.addf %201, %205 : vector<144x16xf32>
    %c36 = arith.constant 36 : index
    %c0_218 = arith.constant 0 : index
    %207 = vector.load %arg14[%c36, %c0_218] : memref<229x16xf32, #tpu.memory_space<vmem>>, vector<144x16xf32>
    %c20_219 = arith.constant 20 : index
    %c0_220 = arith.constant 0 : index
    %208 = vector.load %arg13[%c20_219, %c0_220] : memref<46x16xf32, #tpu.memory_space<vmem>>, vector<1x16xf32>
    %209 = vector.broadcast %208 : vector<1x16xf32> to vector<144x16xf32>
    %210 = arith.mulf %207, %209 : vector<144x16xf32>
    %211 = arith.addf %206, %210 : vector<144x16xf32>
    %c37 = arith.constant 37 : index
    %c0_221 = arith.constant 0 : index
    %212 = vector.load %arg14[%c37, %c0_221] : memref<229x16xf32, #tpu.memory_space<vmem>>, vector<144x16xf32>
    %c21_222 = arith.constant 21 : index
    %c0_223 = arith.constant 0 : index
    %213 = vector.load %arg13[%c21_222, %c0_223] : memref<46x16xf32, #tpu.memory_space<vmem>>, vector<1x16xf32>
    %214 = vector.broadcast %213 : vector<1x16xf32> to vector<144x16xf32>
    %215 = arith.mulf %212, %214 : vector<144x16xf32>
    %216 = arith.addf %211, %215 : vector<144x16xf32>
    %c48 = arith.constant 48 : index
    %c0_224 = arith.constant 0 : index
    %217 = vector.load %arg14[%c48, %c0_224] : memref<229x16xf32, #tpu.memory_space<vmem>>, vector<144x16xf32>
    %c24 = arith.constant 24 : index
    %c0_225 = arith.constant 0 : index
    %218 = vector.load %arg13[%c24, %c0_225] : memref<46x16xf32, #tpu.memory_space<vmem>>, vector<1x16xf32>
    %219 = vector.broadcast %218 : vector<1x16xf32> to vector<144x16xf32>
    %220 = arith.mulf %217, %219 : vector<144x16xf32>
    %221 = arith.addf %216, %220 : vector<144x16xf32>
    %c49 = arith.constant 49 : index
    %c0_226 = arith.constant 0 : index
    %222 = vector.load %arg14[%c49, %c0_226] : memref<229x16xf32, #tpu.memory_space<vmem>>, vector<144x16xf32>
    %c25 = arith.constant 25 : index
    %c0_227 = arith.constant 0 : index
    %223 = vector.load %arg13[%c25, %c0_227] : memref<46x16xf32, #tpu.memory_space<vmem>>, vector<1x16xf32>
    %224 = vector.broadcast %223 : vector<1x16xf32> to vector<144x16xf32>
    %225 = arith.mulf %222, %224 : vector<144x16xf32>
    %226 = arith.addf %221, %225 : vector<144x16xf32>
    %c50 = arith.constant 50 : index
    %c0_228 = arith.constant 0 : index
    %227 = vector.load %arg14[%c50, %c0_228] : memref<229x16xf32, #tpu.memory_space<vmem>>, vector<144x16xf32>
    %c26 = arith.constant 26 : index
    %c0_229 = arith.constant 0 : index
    %228 = vector.load %arg13[%c26, %c0_229] : memref<46x16xf32, #tpu.memory_space<vmem>>, vector<1x16xf32>
    %229 = vector.broadcast %228 : vector<1x16xf32> to vector<144x16xf32>
    %230 = arith.mulf %227, %229 : vector<144x16xf32>
    %231 = arith.addf %226, %230 : vector<144x16xf32>
    %c51 = arith.constant 51 : index
    %c0_230 = arith.constant 0 : index
    %232 = vector.load %arg14[%c51, %c0_230] : memref<229x16xf32, #tpu.memory_space<vmem>>, vector<144x16xf32>
    %c27 = arith.constant 27 : index
    %c0_231 = arith.constant 0 : index
    %233 = vector.load %arg13[%c27, %c0_231] : memref<46x16xf32, #tpu.memory_space<vmem>>, vector<1x16xf32>
    %234 = vector.broadcast %233 : vector<1x16xf32> to vector<144x16xf32>
    %235 = arith.mulf %232, %234 : vector<144x16xf32>
    %236 = arith.addf %231, %235 : vector<144x16xf32>
    %c52 = arith.constant 52 : index
    %c0_232 = arith.constant 0 : index
    %237 = vector.load %arg14[%c52, %c0_232] : memref<229x16xf32, #tpu.memory_space<vmem>>, vector<144x16xf32>
    %c28 = arith.constant 28 : index
    %c0_233 = arith.constant 0 : index
    %238 = vector.load %arg13[%c28, %c0_233] : memref<46x16xf32, #tpu.memory_space<vmem>>, vector<1x16xf32>
    %239 = vector.broadcast %238 : vector<1x16xf32> to vector<144x16xf32>
    %240 = arith.mulf %237, %239 : vector<144x16xf32>
    %241 = arith.addf %236, %240 : vector<144x16xf32>
    %c53 = arith.constant 53 : index
    %c0_234 = arith.constant 0 : index
    %242 = vector.load %arg14[%c53, %c0_234] : memref<229x16xf32, #tpu.memory_space<vmem>>, vector<144x16xf32>
    %c29 = arith.constant 29 : index
    %c0_235 = arith.constant 0 : index
    %243 = vector.load %arg13[%c29, %c0_235] : memref<46x16xf32, #tpu.memory_space<vmem>>, vector<1x16xf32>
    %244 = vector.broadcast %243 : vector<1x16xf32> to vector<144x16xf32>
    %245 = arith.mulf %242, %244 : vector<144x16xf32>
    %246 = arith.addf %241, %245 : vector<144x16xf32>
    %c64 = arith.constant 64 : index
    %c0_236 = arith.constant 0 : index
    %247 = vector.load %arg14[%c64, %c0_236] : memref<229x16xf32, #tpu.memory_space<vmem>>, vector<144x16xf32>
    %c32_237 = arith.constant 32 : index
    %c0_238 = arith.constant 0 : index
    %248 = vector.load %arg13[%c32_237, %c0_238] : memref<46x16xf32, #tpu.memory_space<vmem>>, vector<1x16xf32>
    %249 = vector.broadcast %248 : vector<1x16xf32> to vector<144x16xf32>
    %250 = arith.mulf %247, %249 : vector<144x16xf32>
    %251 = arith.addf %246, %250 : vector<144x16xf32>
    %c65 = arith.constant 65 : index
    %c0_239 = arith.constant 0 : index
    %252 = vector.load %arg14[%c65, %c0_239] : memref<229x16xf32, #tpu.memory_space<vmem>>, vector<144x16xf32>
    %c33_240 = arith.constant 33 : index
    %c0_241 = arith.constant 0 : index
    %253 = vector.load %arg13[%c33_240, %c0_241] : memref<46x16xf32, #tpu.memory_space<vmem>>, vector<1x16xf32>
    %254 = vector.broadcast %253 : vector<1x16xf32> to vector<144x16xf32>
    %255 = arith.mulf %252, %254 : vector<144x16xf32>
    %256 = arith.addf %251, %255 : vector<144x16xf32>
    %c66 = arith.constant 66 : index
    %c0_242 = arith.constant 0 : index
    %257 = vector.load %arg14[%c66, %c0_242] : memref<229x16xf32, #tpu.memory_space<vmem>>, vector<144x16xf32>
    %c34_243 = arith.constant 34 : index
    %c0_244 = arith.constant 0 : index
    %258 = vector.load %arg13[%c34_243, %c0_244] : memref<46x16xf32, #tpu.memory_space<vmem>>, vector<1x16xf32>
    %259 = vector.broadcast %258 : vector<1x16xf32> to vector<144x16xf32>
    %260 = arith.mulf %257, %259 : vector<144x16xf32>
    %261 = arith.addf %256, %260 : vector<144x16xf32>
    %c67 = arith.constant 67 : index
    %c0_245 = arith.constant 0 : index
    %262 = vector.load %arg14[%c67, %c0_245] : memref<229x16xf32, #tpu.memory_space<vmem>>, vector<144x16xf32>
    %c35_246 = arith.constant 35 : index
    %c0_247 = arith.constant 0 : index
    %263 = vector.load %arg13[%c35_246, %c0_247] : memref<46x16xf32, #tpu.memory_space<vmem>>, vector<1x16xf32>
    %264 = vector.broadcast %263 : vector<1x16xf32> to vector<144x16xf32>
    %265 = arith.mulf %262, %264 : vector<144x16xf32>
    %266 = arith.addf %261, %265 : vector<144x16xf32>
    %c68 = arith.constant 68 : index
    %c0_248 = arith.constant 0 : index
    %267 = vector.load %arg14[%c68, %c0_248] : memref<229x16xf32, #tpu.memory_space<vmem>>, vector<144x16xf32>
    %c36_249 = arith.constant 36 : index
    %c0_250 = arith.constant 0 : index
    %268 = vector.load %arg13[%c36_249, %c0_250] : memref<46x16xf32, #tpu.memory_space<vmem>>, vector<1x16xf32>
    %269 = vector.broadcast %268 : vector<1x16xf32> to vector<144x16xf32>
    %270 = arith.mulf %267, %269 : vector<144x16xf32>
    %271 = arith.addf %266, %270 : vector<144x16xf32>
    %c69 = arith.constant 69 : index
    %c0_251 = arith.constant 0 : index
    %272 = vector.load %arg14[%c69, %c0_251] : memref<229x16xf32, #tpu.memory_space<vmem>>, vector<144x16xf32>
    %c37_252 = arith.constant 37 : index
    %c0_253 = arith.constant 0 : index
    %273 = vector.load %arg13[%c37_252, %c0_253] : memref<46x16xf32, #tpu.memory_space<vmem>>, vector<1x16xf32>
    %274 = vector.broadcast %273 : vector<1x16xf32> to vector<144x16xf32>
    %275 = arith.mulf %272, %274 : vector<144x16xf32>
    %276 = arith.addf %271, %275 : vector<144x16xf32>
    %c80 = arith.constant 80 : index
    %c0_254 = arith.constant 0 : index
    %277 = vector.load %arg14[%c80, %c0_254] : memref<229x16xf32, #tpu.memory_space<vmem>>, vector<144x16xf32>
    %c40 = arith.constant 40 : index
    %c0_255 = arith.constant 0 : index
    %278 = vector.load %arg13[%c40, %c0_255] : memref<46x16xf32, #tpu.memory_space<vmem>>, vector<1x16xf32>
    %279 = vector.broadcast %278 : vector<1x16xf32> to vector<144x16xf32>
    %280 = arith.mulf %277, %279 : vector<144x16xf32>
    %281 = arith.addf %276, %280 : vector<144x16xf32>
    %c81 = arith.constant 81 : index
    %c0_256 = arith.constant 0 : index
    %282 = vector.load %arg14[%c81, %c0_256] : memref<229x16xf32, #tpu.memory_space<vmem>>, vector<144x16xf32>
    %c41 = arith.constant 41 : index
    %c0_257 = arith.constant 0 : index
    %283 = vector.load %arg13[%c41, %c0_257] : memref<46x16xf32, #tpu.memory_space<vmem>>, vector<1x16xf32>
    %284 = vector.broadcast %283 : vector<1x16xf32> to vector<144x16xf32>
    %285 = arith.mulf %282, %284 : vector<144x16xf32>
    %286 = arith.addf %281, %285 : vector<144x16xf32>
    %c82 = arith.constant 82 : index
    %c0_258 = arith.constant 0 : index
    %287 = vector.load %arg14[%c82, %c0_258] : memref<229x16xf32, #tpu.memory_space<vmem>>, vector<144x16xf32>
    %c42 = arith.constant 42 : index
    %c0_259 = arith.constant 0 : index
    %288 = vector.load %arg13[%c42, %c0_259] : memref<46x16xf32, #tpu.memory_space<vmem>>, vector<1x16xf32>
    %289 = vector.broadcast %288 : vector<1x16xf32> to vector<144x16xf32>
    %290 = arith.mulf %287, %289 : vector<144x16xf32>
    %291 = arith.addf %286, %290 : vector<144x16xf32>
    %c83 = arith.constant 83 : index
    %c0_260 = arith.constant 0 : index
    %292 = vector.load %arg14[%c83, %c0_260] : memref<229x16xf32, #tpu.memory_space<vmem>>, vector<144x16xf32>
    %c43 = arith.constant 43 : index
    %c0_261 = arith.constant 0 : index
    %293 = vector.load %arg13[%c43, %c0_261] : memref<46x16xf32, #tpu.memory_space<vmem>>, vector<1x16xf32>
    %294 = vector.broadcast %293 : vector<1x16xf32> to vector<144x16xf32>
    %295 = arith.mulf %292, %294 : vector<144x16xf32>
    %296 = arith.addf %291, %295 : vector<144x16xf32>
    %c84 = arith.constant 84 : index
    %c0_262 = arith.constant 0 : index
    %297 = vector.load %arg14[%c84, %c0_262] : memref<229x16xf32, #tpu.memory_space<vmem>>, vector<144x16xf32>
    %c44 = arith.constant 44 : index
    %c0_263 = arith.constant 0 : index
    %298 = vector.load %arg13[%c44, %c0_263] : memref<46x16xf32, #tpu.memory_space<vmem>>, vector<1x16xf32>
    %299 = vector.broadcast %298 : vector<1x16xf32> to vector<144x16xf32>
    %300 = arith.mulf %297, %299 : vector<144x16xf32>
    %301 = arith.addf %296, %300 : vector<144x16xf32>
    %c85 = arith.constant 85 : index
    %c0_264 = arith.constant 0 : index
    %302 = vector.load %arg14[%c85, %c0_264] : memref<229x16xf32, #tpu.memory_space<vmem>>, vector<144x16xf32>
    %c45 = arith.constant 45 : index
    %c0_265 = arith.constant 0 : index
    %303 = vector.load %arg13[%c45, %c0_265] : memref<46x16xf32, #tpu.memory_space<vmem>>, vector<1x16xf32>
    %304 = vector.broadcast %303 : vector<1x16xf32> to vector<144x16xf32>
    %305 = arith.mulf %302, %304 : vector<144x16xf32>
    %306 = arith.addf %301, %305 : vector<144x16xf32>
    %307 = arith.truncf %306 : vector<144x16xf32> to vector<144x16xbf16>
    %c0_266 = arith.constant 0 : index
    %c0_267 = arith.constant 0 : index
    %c0_268 = arith.constant 0 : index
    %308 = vector.load %arg8[%c0_266, %c0_267, %c0_268] : memref<1x16x16xbf16, #tpu.memory_space<vmem>>, vector<1x16x16xbf16>
    %309 = vector.shape_cast %308 : vector<1x16x16xbf16> to vector<16x16xbf16>
    %cst_269 = arith.constant dense<0.000000e+00> : vector<144x16xf32>
    %310 = tpu.matmul %307, %309, %cst_269 {dimension_numbers = #tpu.dot_dimension_numbers<[1], [0], [0], [1], [0, 0, 1, 1], [], []>} : vector<144x16xbf16>, vector<16x16xbf16>, vector<144x16xf32> -> vector<144x16xf32>
    %c0_270 = arith.constant 0 : index
    %c0_271 = arith.constant 0 : index
    %c0_272 = arith.constant 0 : index
    %311 = vector.load %arg9[%c0_270, %c0_271, %c0_272] : memref<1x1x16xf32, #tpu.memory_space<vmem>>, vector<1x1x16xf32>
    %312 = vector.shape_cast %311 : vector<1x1x16xf32> to vector<1x16xf32>
    %313 = vector.broadcast %312 : vector<1x16xf32> to vector<144x16xf32>
    %314 = arith.addf %310, %313 : vector<144x16xf32>
    %cst_273 = arith.constant 0.000000e+00 : f32
    %315 = vector.broadcast %cst_273 : f32 to vector<144x16xf32>
    %316 = arith.maximumf %314, %315 : vector<144x16xf32>
    %317 = arith.truncf %316 : vector<144x16xf32> to vector<144x16xbf16>
    %c0_274 = arith.constant 0 : index
    %c0_275 = arith.constant 0 : index
    %c0_276 = arith.constant 0 : index
    %318 = vector.load %arg10[%c0_274, %c0_275, %c0_276] : memref<1x16x12xbf16, #tpu.memory_space<vmem>>, vector<1x16x12xbf16>
    %319 = vector.shape_cast %318 : vector<1x16x12xbf16> to vector<16x12xbf16>
    %cst_277 = arith.constant dense<0.000000e+00> : vector<144x12xf32>
    %320 = tpu.matmul %317, %319, %cst_277 {dimension_numbers = #tpu.dot_dimension_numbers<[1], [0], [0], [1], [0, 0, 1, 1], [], []>} : vector<144x16xbf16>, vector<16x12xbf16>, vector<144x12xf32> -> vector<144x12xf32>
    %c0_278 = arith.constant 0 : index
    %c0_279 = arith.constant 0 : index
    %c0_280 = arith.constant 0 : index
    %321 = vector.load %arg11[%c0_278, %c0_279, %c0_280] : memref<1x1x12xf32, #tpu.memory_space<vmem>>, vector<1x1x12xf32>
    %322 = vector.shape_cast %321 : vector<1x1x12xf32> to vector<1x12xf32>
    %323 = vector.broadcast %322 : vector<1x12xf32> to vector<144x12xf32>
    %324 = arith.addf %320, %323 : vector<144x12xf32>
    %c0_281 = arith.constant 0 : index
    %c0_282 = arith.constant 0 : index
    %c0_283 = arith.constant 0 : index
    %c0_284 = arith.constant 0 : index
    %325 = vector.load %arg12[%c0_281, %c0_282, %c0_283, %c0_284] : memref<1x1x144x12xf32, #tpu.memory_space<vmem>>, vector<1x1x144x12xf32>
    %326 = vector.shape_cast %325 : vector<1x1x144x12xf32> to vector<144x12xf32>
    %327 = vector.shape_cast %324 : vector<144x12xf32> to vector<1x1x144x12xf32>
    tpu.vector_store %arg12[%c0_281, %c0_282, %c0_283, %c0_284], %327 {strides = array<i32>} : memref<1x1x144x12xf32, #tpu.memory_space<vmem>>, vector<1x1x144x12xf32>,
    return
  }
  func.func @transform_0(%arg0: i32, %arg1: i32) -> (i32, i32, i32, i32) {
    %c0_i32 = arith.constant 0 : i32
    %c0_i32_0 = arith.constant 0 : i32
    %c0_i32_1 = arith.constant 0 : i32
    return %arg0, %arg1, %c0_i32, %c0_i32_0 : i32, i32, i32, i32
  }
  func.func @transform_1(%arg0: i32, %arg1: i32) -> (i32, i32, i32, i32) {
    %c0_i32 = arith.constant 0 : i32
    %c0_i32_0 = arith.constant 0 : i32
    %c0_i32_1 = arith.constant 0 : i32
    return %arg0, %arg1, %c0_i32, %c0_i32_0 : i32, i32, i32, i32
  }
  func.func @transform_2(%arg0: i32, %arg1: i32) -> (i32, i32, i32, i32) {
    %c0_i32 = arith.constant 0 : i32
    %c0_i32_0 = arith.constant 0 : i32
    %c0_i32_1 = arith.constant 0 : i32
    %c0_i32_2 = arith.constant 0 : i32
    return %arg0, %c0_i32, %c0_i32_0, %c0_i32_1 : i32, i32, i32, i32
  }
  func.func @transform_3(%arg0: i32, %arg1: i32) -> (i32, i32, i32) {
    %c0_i32 = arith.constant 0 : i32
    %c0_i32_0 = arith.constant 0 : i32
    %c0_i32_1 = arith.constant 0 : i32
    return %arg0, %c0_i32, %c0_i32_0 : i32, i32, i32
  }
  func.func @transform_4(%arg0: i32, %arg1: i32) -> (i32, i32, i32, i32) {
    %c0_i32 = arith.constant 0 : i32
    %c0_i32_0 = arith.constant 0 : i32
    %c0_i32_1 = arith.constant 0 : i32
    %c0_i32_2 = arith.constant 0 : i32
    return %arg0, %c0_i32, %c0_i32_0, %c0_i32_1 : i32, i32, i32, i32
  }
  func.func @transform_5(%arg0: i32, %arg1: i32) -> (i32, i32, i32) {
    %c0_i32 = arith.constant 0 : i32
    %c0_i32_0 = arith.constant 0 : i32
    %c0_i32_1 = arith.constant 0 : i32
    return %arg0, %c0_i32, %c0_i32_0 : i32, i32, i32
  }
  func.func @transform_6(%arg0: i32, %arg1: i32) -> (i32, i32, i32) {
    %c0_i32 = arith.constant 0 : i32
    %c0_i32_0 = arith.constant 0 : i32
    %c0_i32_1 = arith.constant 0 : i32
    return %arg0, %c0_i32, %c0_i32_0 : i32, i32, i32
  }
  func.func @transform_7(%arg0: i32, %arg1: i32) -> (i32, i32, i32) {
    %c0_i32 = arith.constant 0 : i32
    %c0_i32_0 = arith.constant 0 : i32
    %c0_i32_1 = arith.constant 0 : i32
    return %arg0, %c0_i32, %c0_i32_0 : i32, i32, i32
  }
  func.func @transform_8(%arg0: i32, %arg1: i32) -> (i32, i32, i32) {
    %c0_i32 = arith.constant 0 : i32
    %c0_i32_0 = arith.constant 0 : i32
    %c0_i32_1 = arith.constant 0 : i32
    return %arg0, %c0_i32, %c0_i32_0 : i32, i32, i32
  }
  func.func @transform_9(%arg0: i32, %arg1: i32) -> (i32, i32, i32) {
    %c0_i32 = arith.constant 0 : i32
    %c0_i32_0 = arith.constant 0 : i32
    %c0_i32_1 = arith.constant 0 : i32
    return %arg0, %c0_i32, %c0_i32_0 : i32, i32, i32
  }
  func.func @transform_10(%arg0: i32, %arg1: i32) -> (i32, i32, i32, i32) {
    %c0_i32 = arith.constant 0 : i32
    %c0_i32_0 = arith.constant 0 : i32
    %c0_i32_1 = arith.constant 0 : i32
    return %arg0, %arg1, %c0_i32, %c0_i32_0 : i32, i32, i32, i32
  }
}

</mosaic_0001>

<llo_original>
// kernel: tpu_custom_call.1
$region0: #{tpu_custom_call.1}
  #allocation0 [shape = 'u32[]', space=smem, size = 0x4, offset = 0x4, fixed_abs, tag = 'smem constant byte address 0x4 - core index']
  #allocation1 [shape = 'u32[72,128]{1,0:T(1,128)}', space=vmem, size = 0x9000, scoped, tag = 'internal scratch']
  #allocation2 [shape = 'f32[46,16]{1,0:T(8,128)}', space=vmem, size = 0x6000, scoped, tag = 'scratch operand']
  #allocation3 [shape = 'f32[229,16]{1,0:T(8,128)}', space=vmem, size = 0x1d000, scoped, tag = 'scratch operand']
  %s0 = inlined_call_operand.vmem [shape: bf16[2,2,64,8], index: 0, kind: input, shape index: {}]
  %s1 = inlined_call_operand.vmem [shape: bf16[2,2,256,8], index: 1, kind: input, shape index: {}]
  %s2 = inlined_call_operand.vmem [shape: bf16[2,9,8,16], index: 2, kind: input, shape index: {}]
  %s3 = inlined_call_operand.vmem [shape: f32[2,1,16], index: 3, kind: input, shape index: {}]
  %s4 = inlined_call_operand.vmem [shape: bf16[2,9,8,16], index: 4, kind: input, shape index: {}]
  %s5 = inlined_call_operand.vmem [shape: f32[2,1,16], index: 5, kind: input, shape index: {}]
  %s6 = inlined_call_operand.vmem [shape: bf16[2,16,16], index: 6, kind: input, shape index: {}]
  %s7 = inlined_call_operand.vmem [shape: f32[2,1,16], index: 7, kind: input, shape index: {}]
  %s8 = inlined_call_operand.vmem [shape: bf16[2,16,12], index: 8, kind: input, shape index: {}]
  %s9 = inlined_call_operand.vmem [shape: f32[2,1,12], index: 9, kind: input, shape index: {}]
  %s10 = inlined_call_operand.vmem [shape: f32[2,2,144,12], index: 10, kind: output, shape index: {}]
  %s11 = sld [smem:[#allocation0]]
  $region73: #{tpu_custom_call.1} parent=0
    _
  %s13 = ssub.s32 1, %s11
  %s14 = scalar_select 0, %s13, %s11
  loop: start=0, step=1, limit=6
  $region2: #{tpu_custom_call.1} parent=0 // loop_pre_header
    _
  $region3: #{tpu_custom_call.1} parent=0 // loop_header
    %s16 = sphi 0, %s20
    %p17 = scmp.ge.s32.totalorder %s16, 6
    %s23 = sphi 0, %s35
    %s24 = sphi 0, %s31
    %s25 = sphi 0, %s23
    %s26 = sphi 0, %s24
    %s27 = sphi 0, %s25
    %s28 = sphi 0, %s26
    %s40 = sphi 0, %s42
    %s43 = sphi 0, %s40
    %s44 = sphi 0, %s43
    %s60 = sphi 0, %s44
    %s68 = sphi 0, %s70
    %s71 = sphi 0, %s68
    %s72 = sphi 0, %s71
    %s88 = sphi 0, %s72
    %s94 = sphi 0, %s96
    %s97 = sphi 0, %s94
    %s98 = sphi 0, %s97
    %s114 = sphi 0, %s98
    %s120 = sphi 0, %s122
    %s123 = sphi 0, %s120
    %s124 = sphi 0, %s123
    %s140 = sphi 0, %s124
    %s146 = sphi 0, %s148
    %s149 = sphi 0, %s146
    %s150 = sphi 0, %s149
    %s166 = sphi 0, %s150
    %s172 = sphi 0, %s174
    %s175 = sphi 0, %s172
    %s176 = sphi 0, %s175
    %s192 = sphi 0, %s176
    %s198 = sphi 0, %s200
    %s201 = sphi 0, %s198
    %s202 = sphi 0, %s201
    %s218 = sphi 0, %s202
    %s224 = sphi 0, %s226
    %s227 = sphi 0, %s224
    %s228 = sphi 0, %s227
    %s244 = sphi 0, %s228
    %s250 = sphi 0, %s252
    %s253 = sphi 0, %s250
    %s254 = sphi 0, %s253
    %s270 = sphi 0, %s254
    %s276 = sphi 0, %s278
    %s279 = sphi 0, %s276
    %s280 = sphi 0, %s279
    %s296 = sphi 0, %s280
    %s304 = sphi 0, %s306
    %s307 = sphi 0, %s304
    %s308 = sphi 0, %s307
    %s324 = sphi 0, %s308
  $region4: #{tpu_custom_call.1} parent=0 // loop_header_branch
    %19 = sbr.rel (%p17) target = $region8
  $region5: #{tpu_custom_call.1} parent=0 // loop_body
    %s21 = ssub.s32 %s16, 1
    %s22 = ssub.s32 %s16, 2
    %s29 = sadd.s32 1, %s24
    %p30 = scmp.ge.s32.totalorder %s29, 2
    %s31 = scalar_select %p30, 0, %s29
    %s32 = sadd.s32 1, %s23
    %s33 = scalar_select %p30, %s32, %s23
    %p34 = scmp.ge.s32.totalorder %s33, 2
    %s35 = scalar_select %p34, 0, %s33
    %s36 = ssub.s32 %s23, %s35
    %s37 = ssub.s32 %s24, %s31
    %s38 = sor.u32 %s36, %s37
    %p39 = scmp.eq.s32.totalorder %s38, 0
    %s41 = sadd.s32 %s40, 1
    %s42 = scalar_select %p39, %s40, %s41
    %p45 = pneg %p39
    %p46 = scmp.eq.s32.totalorder %s16, 3
    %p47 = por %p45, %p46
    %p48 = scmp.ne.s32.totalorder %s40, %s43
    %p49 = scmp.eq.s32.totalorder %s16, 0
    %p50 = por %p48, %p49
    %p51 = scmp.ne.s32.totalorder %s40, %s43
    %p52 = scmp.eq.s32.totalorder %s21, 3
    %p53 = por %p51, %p52
    %p54 = scmp.ne.s32.totalorder %s43, %s44
    %p55 = scmp.eq.s32.totalorder %s21, 0
    %p56 = por %p54, %p55
    %p57 = scmp.ne.s32.totalorder %s43, %s44
    %p58 = scmp.eq.s32.totalorder %s22, 3
    %p59 = por %p57, %p58
    %p61 = scmp.ne.s32.totalorder %s44, %s60
    %p62 = scmp.eq.s32.totalorder %s22, 0
    %p63 = por %p61, %p62
    %s64 = ssub.s32 %s23, %s35
    %s65 = ssub.s32 %s24, %s31
    %s66 = sor.u32 %s64, %s65
    %p67 = scmp.eq.s32.totalorder %s66, 0
    %s69 = sadd.s32 %s68, 1
    %s70 = scalar_select %p67, %s68, %s69
    %p73 = pneg %p67
    %p74 = scmp.eq.s32.totalorder %s16, 3
    %p75 = por %p73, %p74
    %p76 = scmp.ne.s32.totalorder %s68, %s71
    %p77 = scmp.eq.s32.totalorder %s16, 0
    %p78 = por %p76, %p77
    %p79 = scmp.ne.s32.totalorder %s68, %s71
    %p80 = scmp.eq.s32.totalorder %s21, 3
    %p81 = por %p79, %p80
    %p82 = scmp.ne.s32.totalorder %s71, %s72
    %p83 = scmp.eq.s32.totalorder %s21, 0
    %p84 = por %p82, %p83
    %p85 = scmp.ne.s32.totalorder %s71, %s72
    %p86 = scmp.eq.s32.totalorder %s22, 3
    %p87 = por %p85, %p86
    %p89 = scmp.ne.s32.totalorder %s72, %s88
    %p90 = scmp.eq.s32.totalorder %s22, 0
    %p91 = por %p89, %p90
    %s92 = ssub.s32 %s23, %s35
    %p93 = scmp.eq.s32.totalorder %s92, 0
    %s95 = sadd.s32 %s94, 1
    %s96 = scalar_select %p93, %s94, %s95
    %p99 = pneg %p93
    %p100 = scmp.eq.s32.totalorder %s16, 3
    %p101 = por %p99, %p100
    %p102 = scmp.ne.s32.totalorder %s94, %s97
    %p103 = scmp.eq.s32.totalorder %s16, 0
    %p104 = por %p102, %p103
    %p105 = scmp.ne.s32.totalorder %s94, %s97
    %p106 = scmp.eq.s32.totalorder %s21, 3
    %p107 = por %p105, %p106
    %p108 = scmp.ne.s32.totalorder %s97, %s98
    %p109 = scmp.eq.s32.totalorder %s21, 0
    %p110 = por %p108, %p109
    %p111 = scmp.ne.s32.totalorder %s97, %s98
    %p112 = scmp.eq.s32.totalorder %s22, 3
    %p113 = por %p111, %p112
    %p115 = scmp.ne.s32.totalorder %s98, %s114
    %p116 = scmp.eq.s32.totalorder %s22, 0
    %p117 = por %p115, %p116
    %s118 = ssub.s32 %s23, %s35
    %p119 = scmp.eq.s32.totalorder %s118, 0
    %s121 = sadd.s32 %s120, 1
    %s122 = scalar_select %p119, %s120, %s121
    %p125 = pneg %p119
    %p126 = scmp.eq.s32.totalorder %s16, 3
    %p127 = por %p125, %p126
    %p128 = scmp.ne.s32.totalorder %s120, %s123
    %p129 = scmp.eq.s32.totalorder %s16, 0
    %p130 = por %p128, %p129
    %p131 = scmp.ne.s32.totalorder %s120, %s123
    %p132 = scmp.eq.s32.totalorder %s21, 3
    %p133 = por %p131, %p132
    %p134 = scmp.ne.s32.totalorder %s123, %s124
    %p135 = scmp.eq.s32.totalorder %s21, 0
    %p136 = por %p134, %p135
    %p137 = scmp.ne.s32.totalorder %s123, %s124
    %p138 = scmp.eq.s32.totalorder %s22, 3
    %p139 = por %p137, %p138
    %p141 = scmp.ne.s32.totalorder %s124, %s140
    %p142 = scmp.eq.s32.totalorder %s22, 0
    %p143 = por %p141, %p142
    %s144 = ssub.s32 %s23, %s35
    %p145 = scmp.eq.s32.totalorder %s144, 0
    %s147 = sadd.s32 %s146, 1
    %s148 = scalar_select %p145, %s146, %s147
    %p151 = pneg %p145
    %p152 = scmp.eq.s32.totalorder %s16, 3
    %p153 = por %p151, %p152
    %p154 = scmp.ne.s32.totalorder %s146, %s149
    %p155 = scmp.eq.s32.totalorder %s16, 0
    %p156 = por %p154, %p155
    %p157 = scmp.ne.s32.totalorder %s146, %s149
    %p158 = scmp.eq.s32.totalorder %s21, 3
    %p159 = por %p157, %p158
    %p160 = scmp.ne.s32.totalorder %s149, %s150
    %p161 = scmp.eq.s32.totalorder %s21, 0
    %p162 = por %p160, %p161
    %p163 = scmp.ne.s32.totalorder %s149, %s150
    %p164 = scmp.eq.s32.totalorder %s22, 3
    %p165 = por %p163, %p164
    %p167 = scmp.ne.s32.totalorder %s150, %s166
    %p168 = scmp.eq.s32.totalorder %s22, 0
    %p169 = por %p167, %p168
    %s170 = ssub.s32 %s23, %s35
    %p171 = scmp.eq.s32.totalorder %s170, 0
    %s173 = sadd.s32 %s172, 1
    %s174 = scalar_select %p171, %s172, %s173
    %p177 = pneg %p171
    %p178 = scmp.eq.s32.totalorder %s16, 3
    %p179 = por %p177, %p178
    %p180 = scmp.ne.s32.totalorder %s172, %s175
    %p181 = scmp.eq.s32.totalorder %s16, 0
    %p182 = por %p180, %p181
    %p183 = scmp.ne.s32.totalorder %s172, %s175
    %p184 = scmp.eq.s32.totalorder %s21, 3
    %p185 = por %p183, %p184
    %p186 = scmp.ne.s32.totalorder %s175, %s176
    %p187 = scmp.eq.s32.totalorder %s21, 0
    %p188 = por %p186, %p187
    %p189 = scmp.ne.s32.totalorder %s175, %s176
    %p190 = scmp.eq.s32.totalorder %s22, 3
    %p191 = por %p189, %p190
    %p193 = scmp.ne.s32.totalorder %s176, %s192
    %p194 = scmp.eq.s32.totalorder %s22, 0
    %p195 = por %p193, %p194
    %s196 = ssub.s32 %s23, %s35
    %p197 = scmp.eq.s32.totalorder %s196, 0
    %s199 = sadd.s32 %s198, 1
    %s200 = scalar_select %p197, %s198, %s199
    %p203 = pneg %p197
    %p204 = scmp.eq.s32.totalorder %s16, 3
    %p205 = por %p203, %p204
    %p206 = scmp.ne.s32.totalorder %s198, %s201
    %p207 = scmp.eq.s32.totalorder %s16, 0
    %p208 = por %p206, %p207
    %p209 = scmp.ne.s32.totalorder %s198, %s201
    %p210 = scmp.eq.s32.totalorder %s21, 3
    %p211 = por %p209, %p210
    %p212 = scmp.ne.s32.totalorder %s201, %s202
    %p213 = scmp.eq.s32.totalorder %s21, 0
    %p214 = por %p212, %p213
    %p215 = scmp.ne.s32.totalorder %s201, %s202
    %p216 = scmp.eq.s32.totalorder %s22, 3
    %p217 = por %p215, %p216
    %p219 = scmp.ne.s32.totalorder %s202, %s218
    %p220 = scmp.eq.s32.totalorder %s22, 0
    %p221 = por %p219, %p220
    %s222 = ssub.s32 %s23, %s35
    %p223 = scmp.eq.s32.totalorder %s222, 0
    %s225 = sadd.s32 %s224, 1
    %s226 = scalar_select %p223, %s224, %s225
    %p229 = pneg %p223
    %p230 = scmp.eq.s32.totalorder %s16, 3
    %p231 = por %p229, %p230
    %p232 = scmp.ne.s32.totalorder %s224, %s227
    %p233 = scmp.eq.s32.totalorder %s16, 0
    %p234 = por %p232, %p233
    %p235 = scmp.ne.s32.totalorder %s224, %s227
    %p236 = scmp.eq.s32.totalorder %s21, 3
    %p237 = por %p235, %p236
    %p238 = scmp.ne.s32.totalorder %s227, %s228
    %p239 = scmp.eq.s32.totalorder %s21, 0
    %p240 = por %p238, %p239
    %p241 = scmp.ne.s32.totalorder %s227, %s228
    %p242 = scmp.eq.s32.totalorder %s22, 3
    %p243 = por %p241, %p242
    %p245 = scmp.ne.s32.totalorder %s228, %s244
    %p246 = scmp.eq.s32.totalorder %s22, 0
    %p247 = por %p245, %p246
    %s248 = ssub.s32 %s23, %s35
    %p249 = scmp.eq.s32.totalorder %s248, 0
    %s251 = sadd.s32 %s250, 1
    %s252 = scalar_select %p249, %s250, %s251
    %p255 = pneg %p249
    %p256 = scmp.eq.s32.totalorder %s16, 3
    %p257 = por %p255, %p256
    %p258 = scmp.ne.s32.totalorder %s250, %s253
    %p259 = scmp.eq.s32.totalorder %s16, 0
    %p260 = por %p258, %p259
    %p261 = scmp.ne.s32.totalorder %s250, %s253
    %p262 = scmp.eq.s32.totalorder %s21, 3
    %p263 = por %p261, %p262
    %p264 = scmp.ne.s32.totalorder %s253, %s254
    %p265 = scmp.eq.s32.totalorder %s21, 0
    %p266 = por %p264, %p265
    %p267 = scmp.ne.s32.totalorder %s253, %s254
    %p268 = scmp.eq.s32.totalorder %s22, 3
    %p269 = por %p267, %p268
    %p271 = scmp.ne.s32.totalorder %s254, %s270
    %p272 = scmp.eq.s32.totalorder %s22, 0
    %p273 = por %p271, %p272
    %s274 = ssub.s32 %s23, %s35
    %p275 = scmp.eq.s32.totalorder %s274, 0
    %s277 = sadd.s32 %s276, 1
    %s278 = scalar_select %p275, %s276, %s277
    %p281 = pneg %p275
    %p282 = scmp.eq.s32.totalorder %s16, 3
    %p283 = por %p281, %p282
    %p284 = scmp.ne.s32.totalorder %s276, %s279
    %p285 = scmp.eq.s32.totalorder %s16, 0
    %p286 = por %p284, %p285
    %p287 = scmp.ne.s32.totalorder %s276, %s279
    %p288 = scmp.eq.s32.totalorder %s21, 3
    %p289 = por %p287, %p288
    %p290 = scmp.ne.s32.totalorder %s279, %s280
    %p291 = scmp.eq.s32.totalorder %s21, 0
    %p292 = por %p290, %p291
    %p293 = scmp.ne.s32.totalorder %s279, %s280
    %p294 = scmp.eq.s32.totalorder %s22, 3
    %p295 = por %p293, %p294
    %p297 = scmp.ne.s32.totalorder %s280, %s296
    %p298 = scmp.eq.s32.totalorder %s22, 0
    %p299 = por %p297, %p298
    %s300 = ssub.s32 %s23, %s35
    %s301 = ssub.s32 %s24, %s31
    %s302 = sor.u32 %s300, %s301
    %p303 = scmp.eq.s32.totalorder %s302, 0
    %s305 = sadd.s32 %s304, 1
    %s306 = scalar_select %p303, %s304, %s305
    %p309 = pneg %p303
    %p310 = scmp.eq.s32.totalorder %s16, 3
    %p311 = por %p309, %p310
    %p312 = scmp.ne.s32.totalorder %s304, %s307
    %p313 = scmp.eq.s32.totalorder %s16, 0
    %p314 = por %p312, %p313
    %p315 = scmp.ne.s32.totalorder %s304, %s307
    %p316 = scmp.eq.s32.totalorder %s21, 3
    %p317 = por %p315, %p316
    %p318 = scmp.ne.s32.totalorder %s307, %s308
    %p319 = scmp.eq.s32.totalorder %s21, 0
    %p320 = por %p318, %p319
    %p321 = scmp.ne.s32.totalorder %s307, %s308
    %p322 = scmp.eq.s32.totalorder %s22, 3
    %p323 = por %p321, %p322
    %p325 = scmp.ne.s32.totalorder %s308, %s324
    %p326 = scmp.eq.s32.totalorder %s22, 0
    %p327 = por %p325, %p326
    %p328 = scmp.le.s32.totalorder 1, %s16
    %p329 = scmp.lt.s32.totalorder %s16, 5
    %p330 = pnand %p328, %p329
    %p331 = pneg %p330
    // Predicated region
    $region9: #{tpu_custom_call.1} parent=5 // pred_check
      _
    $region10: #{tpu_custom_call.1} parent=5 // pred_check_branch
      %333 = sbr.rel (%p330) target = $region12
    $region11: #{tpu_custom_call.1} parent=5 // pred_region
      %s334 = ssub.s32 %s16, 1
    $region12: #{tpu_custom_call.1} parent=5 // pred_fallthru
      _
    %p335 = scmp.lt.s32.totalorder %s16, 4
    // Predicated region
    $region13: #{tpu_custom_call.1} parent=5 // pred_check
      %p336 = pneg %p335
    $region14: #{tpu_custom_call.1} parent=5 // pred_check_branch
      %338 = sbr.rel (%p336) target = $region16
    $region15: #{tpu_custom_call.1} parent=5 // pred_region
      // Predicated region
      $region17: #{tpu_custom_call.1} parent=15 // pred_check
        %p339 = pneg %p50
      $region18: #{tpu_custom_call.1} parent=15 // pred_check_branch
        %341 = sbr.rel (%p339) target = $region20
      $region19: #{tpu_custom_call.1} parent=15 // pred_region
        %p342 = scmp.lt.s32.totalorder %s23, 1
        %s343 = scalar_select %p342, %s23, 1
        %p344 = scmp.lt.s32.totalorder %s24, 1
        %s345 = scalar_select %p344, %s24, 1
        %s346 = smul.addr %s345, 8
        %s347 = smul.addr %s343, 16
        %s348 = sadd.s32 %s346, %s347
        %s349 = smul.addr %s348, 4
        %s350 = scalar_lea.vmem %s0, %s349
      $region20: #{tpu_custom_call.1} parent=15 // pred_fallthru
        _
      // Predicated region
      $region21: #{tpu_custom_call.1} parent=15 // pred_check
        %p351 = pneg %p78
      $region22: #{tpu_custom_call.1} parent=15 // pred_check_branch
        %353 = sbr.rel (%p351) target = $region24
      $region23: #{tpu_custom_call.1} parent=15 // pred_region
        %p354 = scmp.lt.s32.totalorder %s23, 1
        %s355 = scalar_select %p354, %s23, 1
        %p356 = scmp.lt.s32.totalorder %s24, 1
        %s357 = scalar_select %p356, %s24, 1
        %s358 = smul.addr %s357, 32
        %s359 = smul.addr %s355, 64
        %s360 = sadd.s32 %s358, %s359
        %s361 = smul.addr %s360, 4
        %s362 = scalar_lea.vmem %s1, %s361
      $region24: #{tpu_custom_call.1} parent=15 // pred_fallthru
        _
      // Predicated region
      $region25: #{tpu_custom_call.1} parent=15 // pred_check
        %p363 = pneg %p104
      $region26: #{tpu_custom_call.1} parent=15 // pred_check_branch
        %365 = sbr.rel (%p363) target = $region28
      $region27: #{tpu_custom_call.1} parent=15 // pred_region
        %p366 = scmp.lt.s32.totalorder %s23, 1
        %s367 = scalar_select %p366, %s23, 1
        %s368 = smul.addr %s367, 9
        %s369 = smul.addr %s368, 4
        %s370 = scalar_lea.vmem %s2, %s369
      $region28: #{tpu_custom_call.1} parent=15 // pred_fallthru
        _
      // Predicated region
      $region29: #{tpu_custom_call.1} parent=15 // pred_check
        %p371 = pneg %p130
      $region30: #{tpu_custom_call.1} parent=15 // pred_check_branch
        %373 = sbr.rel (%p371) target = $region32
      $region31: #{tpu_custom_call.1} parent=15 // pred_region
        %p374 = scmp.lt.s32.totalorder %s23, 1
        %s375 = scalar_select %p374, %s23, 1
        %s376 = scalar_lea.vmem %s3, %s375
      $region32: #{tpu_custom_call.1} parent=15 // pred_fallthru
        _
      // Predicated region
      $region33: #{tpu_custom_call.1} parent=15 // pred_check
        %p377 = pneg %p156
      $region34: #{tpu_custom_call.1} parent=15 // pred_check_branch
        %379 = sbr.rel (%p377) target = $region36
      $region35: #{tpu_custom_call.1} parent=15 // pred_region
        %p380 = scmp.lt.s32.totalorder %s23, 1
        %s381 = scalar_select %p380, %s23, 1
        %s382 = smul.addr %s381, 9
        %s383 = smul.addr %s382, 4
        %s384 = scalar_lea.vmem %s4, %s383
      $region36: #{tpu_custom_call.1} parent=15 // pred_fallthru
        _
      // Predicated region
      $region37: #{tpu_custom_call.1} parent=15 // pred_check
        %p385 = pneg %p182
      $region38: #{tpu_custom_call.1} parent=15 // pred_check_branch
        %387 = sbr.rel (%p385) target = $region40
      $region39: #{tpu_custom_call.1} parent=15 // pred_region
        %p388 = scmp.lt.s32.totalorder %s23, 1
        %s389 = scalar_select %p388, %s23, 1
        %s390 = scalar_lea.vmem %s5, %s389
      $region40: #{tpu_custom_call.1} parent=15 // pred_fallthru
        _
      // Predicated region
      $region41: #{tpu_custom_call.1} parent=15 // pred_check
        %p391 = pneg %p208
      $region42: #{tpu_custom_call.1} parent=15 // pred_check_branch
        %393 = sbr.rel (%p391) target = $region44
      $region43: #{tpu_custom_call.1} parent=15 // pred_region
        %p394 = scmp.lt.s32.totalorder %s23, 1
        %s395 = scalar_select %p394, %s23, 1
        %s396 = smul.addr %s395, 2
        %s397 = smul.addr %s396, 4
        %s398 = scalar_lea.vmem %s6, %s397
      $region44: #{tpu_custom_call.1} parent=15 // pred_fallthru
        _
      // Predicated region
      $region45: #{tpu_custom_call.1} parent=15 // pred_check
        %p399 = pneg %p234
      $region46: #{tpu_custom_call.1} parent=15 // pred_check_branch
        %401 = sbr.rel (%p399) target = $region48
      $region47: #{tpu_custom_call.1} parent=15 // pred_region
        %p402 = scmp.lt.s32.totalorder %s23, 1
        %s403 = scalar_select %p402, %s23, 1
        %s404 = scalar_lea.vmem %s7, %s403
      $region48: #{tpu_custom_call.1} parent=15 // pred_fallthru
        _
      // Predicated region
      $region49: #{tpu_custom_call.1} parent=15 // pred_check
        %p405 = pneg %p260
      $region50: #{tpu_custom_call.1} parent=15 // pred_check_branch
        %407 = sbr.rel (%p405) target = $region52
      $region51: #{tpu_custom_call.1} parent=15 // pred_region
        %p408 = scmp.lt.s32.totalorder %s23, 1
        %s409 = scalar_select %p408, %s23, 1
        %s410 = smul.addr %s409, 2
        %s411 = smul.addr %s410, 4
        %s412 = scalar_lea.vmem %s8, %s411
      $region52: #{tpu_custom_call.1} parent=15 // pred_fallthru
        _
      // Predicated region
      $region53: #{tpu_custom_call.1} parent=15 // pred_check
        %p413 = pneg %p286
      $region54: #{tpu_custom_call.1} parent=15 // pred_check_branch
        %415 = sbr.rel (%p413) target = $region56
      $region55: #{tpu_custom_call.1} parent=15 // pred_region
        %p416 = scmp.lt.s32.totalorder %s23, 1
        %s417 = scalar_select %p416, %s23, 1
        %s418 = scalar_lea.vmem %s9, %s417
      $region56: #{tpu_custom_call.1} parent=15 // pred_fallthru
        _
    $region16: #{tpu_custom_call.1} parent=5 // pred_fallthru
      _
    %p419 = scmp.le.s32.totalorder 1, %s16
    %p420 = scmp.lt.s32.totalorder %s16, 5
    %p421 = pnand %p419, %p420
    %p422 = pneg %p421
    // Predicated region
    $region57: #{tpu_custom_call.1} parent=5 // pred_check
      _
    $region58: #{tpu_custom_call.1} parent=5 // pred_check_branch
      %424 = sbr.rel (%p421) target = $region60
    $region59: #{tpu_custom_call.1} parent=5 // pred_region
      %s425 = ssub.s32 %s16, 1
      %p426 = scmp.lt.s32.totalorder %s25, 1
      %s427 = scalar_select %p426, %s25, 1
      %p428 = scmp.lt.s32.totalorder %s26, 1
      %s429 = scalar_select %p428, %s26, 1
      %s430 = smul.addr %s429, 8
      %s431 = smul.addr %s427, 16
      %s432 = sadd.s32 %s430, %s431
      %s433 = smul.addr %s432, 4
      %s434 = scalar_lea.vmem %s0, %s433
      %p435 = pneg %p56
      %p436 = pneg %p53
      %p437 = scmp.lt.s32.totalorder %s25, 1
      %s438 = scalar_select %p437, %s25, 1
      %p439 = scmp.lt.s32.totalorder %s26, 1
      %s440 = scalar_select %p439, %s26, 1
      %s441 = smul.addr %s440, 32
      %s442 = smul.addr %s438, 64
      %s443 = sadd.s32 %s441, %s442
      %s444 = smul.addr %s443, 4
      %s445 = scalar_lea.vmem %s1, %s444
      %p446 = pneg %p84
      %p447 = pneg %p81
      %p448 = scmp.lt.s32.totalorder %s25, 1
      %s449 = scalar_select %p448, %s25, 1
      %s450 = smul.addr %s449, 9
      %s451 = smul.addr %s450, 4
      %s452 = scalar_lea.vmem %s2, %s451
      %p453 = pneg %p110
      %p454 = pneg %p107
      %p455 = scmp.lt.s32.totalorder %s25, 1
      %s456 = scalar_select %p455, %s25, 1
      %s457 = scalar_lea.vmem %s3, %s456
      %p458 = pneg %p136
      %p459 = pneg %p133
      %p460 = scmp.lt.s32.totalorder %s25, 1
      %s461 = scalar_select %p460, %s25, 1
      %s462 = smul.addr %s461, 9
      %s463 = smul.addr %s462, 4
      %s464 = scalar_lea.vmem %s4, %s463
      %p465 = pneg %p162
      %p466 = pneg %p159
      %p467 = scmp.lt.s32.totalorder %s25, 1
      %s468 = scalar_select %p467, %s25, 1
      %s469 = scalar_lea.vmem %s5, %s468
      %p470 = pneg %p188
      %p471 = pneg %p185
      %p472 = scmp.lt.s32.totalorder %s25, 1
      %s473 = scalar_select %p472, %s25, 1
      %s474 = smul.addr %s473, 2
      %s475 = smul.addr %s474, 4
      %s476 = scalar_lea.vmem %s6, %s475
      %p477 = pneg %p214
      %p478 = pneg %p211
      %p479 = scmp.lt.s32.totalorder %s25, 1
      %s480 = scalar_select %p479, %s25, 1
      %s481 = scalar_lea.vmem %s7, %s480
      %p482 = pneg %p240
      %p483 = pneg %p237
      %p484 = scmp.lt.s32.totalorder %s25, 1
      %s485 = scalar_select %p484, %s25, 1
      %s486 = smul.addr %s485, 2
      %s487 = smul.addr %s486, 4
      %s488 = scalar_lea.vmem %s8, %s487
      %p489 = pneg %p266
      %p490 = pneg %p263
      %p491 = scmp.lt.s32.totalorder %s25, 1
      %s492 = scalar_select %p491, %s25, 1
      %s493 = scalar_lea.vmem %s9, %s492
      %p494 = pneg %p292
      %p495 = pneg %p289
      %p496 = pneg %p320
      %p497 = pneg %p317
      %p498 = scmp.lt.s32.totalorder %s25, 1
      %s499 = scalar_select %p498, %s25, 1
      %p500 = scmp.lt.s32.totalorder %s26, 1
      %s501 = scalar_select %p500, %s26, 1
      %s502 = smul.addr %s501, 18
      %s503 = smul.addr %s499, 36
      %s504 = sadd.s32 %s502, %s503
      %s505 = smul.addr %s504, 8
      %s506 = scalar_lea.vmem %s10, %s505
      %p507 = scmp.lt.s32.totalorder %s25, 1
      %s508 = scalar_select %p507, %s25, 1
      %p509 = scmp.lt.s32.totalorder %s26, 1
      %s510 = scalar_select %p509, %s26, 1
      %s511 = smul.addr %s510, 8
      %s512 = smul.addr %s508, 16
      %s513 = sadd.s32 %s511, %s512
      %s514 = smul.addr %s513, 4
      %s515 = scalar_lea.vmem %s0, %s514
      %p516 = scmp.lt.s32.totalorder %s25, 1
      %s517 = scalar_select %p516, %s25, 1
      %p518 = scmp.lt.s32.totalorder %s26, 1
      %s519 = scalar_select %p518, %s26, 1
      %s520 = smul.addr %s519, 32
      %s521 = smul.addr %s517, 64
      %s522 = sadd.s32 %s520, %s521
      %s523 = smul.addr %s522, 4
      %s524 = scalar_lea.vmem %s1, %s523
      %p525 = scmp.lt.s32.totalorder %s25, 1
      %s526 = scalar_select %p525, %s25, 1
      %s527 = smul.addr %s526, 9
      %s528 = smul.addr %s527, 4
      %s529 = scalar_lea.vmem %s2, %s528
      %p530 = scmp.lt.s32.totalorder %s25, 1
      %s531 = scalar_select %p530, %s25, 1
      %s532 = scalar_lea.vmem %s3, %s531
      %p533 = scmp.lt.s32.totalorder %s25, 1
      %s534 = scalar_select %p533, %s25, 1
      %s535 = smul.addr %s534, 9
      %s536 = smul.addr %s535, 4
      %s537 = scalar_lea.vmem %s4, %s536
      %p538 = scmp.lt.s32.totalorder %s25, 1
      %s539 = scalar_select %p538, %s25, 1
      %s540 = scalar_lea.vmem %s5, %s539
      %p541 = scmp.lt.s32.totalorder %s25, 1
      %s542 = scalar_select %p541, %s25, 1
      %s543 = smul.addr %s542, 2
      %s544 = smul.addr %s543, 4
      %s545 = scalar_lea.vmem %s6, %s544
      %p546 = scmp.lt.s32.totalorder %s25, 1
      %s547 = scalar_select %p546, %s25, 1
      %s548 = scalar_lea.vmem %s7, %s547
      %p549 = scmp.lt.s32.totalorder %s25, 1
      %s550 = scalar_select %p549, %s25, 1
      %s551 = smul.addr %s550, 2
      %s552 = smul.addr %s551, 4
      %s553 = scalar_lea.vmem %s8, %s552
      %p554 = scmp.lt.s32.totalorder %s25, 1
      %s555 = scalar_select %p554, %s25, 1
      %s556 = scalar_lea.vmem %s9, %s555
      %p557 = scmp.lt.s32.totalorder %s25, 1
      %s558 = scalar_select %p557, %s25, 1
      %p559 = scmp.lt.s32.totalorder %s26, 1
      %s560 = scalar_select %p559, %s26, 1
      %s561 = smul.addr %s560, 18
      %s562 = smul.addr %s558, 36
      %s563 = sadd.s32 %s561, %s562
      %s564 = smul.addr %s563, 8
      %s565 = scalar_lea.vmem %s10, %s564
      %v567 = vld [vmem:[%s515] sm:$0xf]
      %v568 = vld [vmem:[%s515 + $0x4] sm:$0xf]
      %v569 = vld [vmem:[%s515 + $0x8] sm:$0xf]
      %v570 = vld [vmem:[%s515 + $0xc] sm:$0xf]
      %v571 = vld [vmem:[%s515 + $0x10] sm:$0xf]
      %v572 = vld [vmem:[%s515 + $0x14] sm:$0x7]
      %v573 = vld [vmem:[%s529] sm:$0xf]
      %v574 = vld [vmem:[%s515 + $0x14] sm:$0xf]
      %s575 = scalar_lea.vmem %s529, 4
      %v576 = vld [vmem:[%s575] sm:$0xf]
      %v583 = vunpack.c.l.b16 %v567
      %v584 = vunpack.c.l.b16 %v568
      %v585 = vunpack.c.l.b16 %v569
      %v586 = vunpack.c.l.b16 %v570
      %v587 = vunpack.c.l.b16 %v571
      %v588 = vunpack.c.l.b16 %v574
      %v589 = vpack.c.b16 %v584, %v583
      %v590 = vpack.c.b16 %v586, %v585
      %v591 = vpack.c.b16 %v588, %v587
      %vm592 = vsmask.f32 7424
      %v594 = vshrl.u32 %v589, 16
      %v596 = vshll.u32 %v589, 16
      %v598 = vrot.slane %v596, 1
      %v599 = vor.u32 %v594, %v598
      %v601 = vshll.u32 %v590, 16
      %v603 = vrot.slane %v601, 1
      %v604 = vsel %vm592, %v599, %v603
      %v605 = vshrl.u32 %v590, 16
      %v607 = vor.u32 %v605, %v603
      %v609 = vshll.u32 %v591, 16
      %v611 = vrot.slane %v609, 1
      %v612 = vsel %vm592, %v607, %v611
      %v613 = vshrl.u32 %v591, 16
      %v615 = vor.u32 %v613, %v611
      %vm616 = vcmask 64512
      %v618 = vsel %vm616, %v604, 0
      %v621 = vsel %vm616, %v612, 0
      %v624 = vsel %vm616, %v615, 0
      %vm626 = vcmask 1043456
      %v628 = vsel %vm626, %v576, 0
      %630 = vmatpush.bf16.msra.mxu0 0
      %631 = vmatpush.bf16.msra.mxu0 0
      %632 = vmatpush.bf16.msra.mxu0 0
      %633 = vmatpush.bf16.msra.mxu0 0
      %634 = vmatpush.bf16.msra.mxu0 0
      %635 = vmatpush.bf16.msra.mxu0 0
      %636 = vmatpush.bf16.msra.mxu0 0
      %637 = vmatpush.bf16.msra.mxu0 %v628
      %638 = vmatmul.bf16.gmra.mxu0 %v618
      %v639 = vpop.f32.mrf.mxu0
      %v640 = vadd.f32 0.0, %v639
      %v641 = vpop.f32.mrf.mxu0
      %v642 = vadd.f32 0.0, %v641
      %643 = vmatmul.bf16.gmra.mxu0 %v621
      %v644 = vpop.f32.mrf.mxu0
      %v645 = vadd.f32 0.0, %v644
      %v646 = vpop.f32.mrf.mxu0
      %v647 = vadd.f32 0.0, %v646
      %648 = vmatmul.bf16.gmra.mxu0 %v624
      %v649 = vpop.f32.mrf.mxu0
      %v650 = vadd.f32 0.0, %v649
      %v651 = vpop.f32.mrf.mxu0
      %v652 = vadd.f32 0.0, %v651
      %653 = vdwg.mxu0
      %v655 = vunpack.c.l.b16 %v572
      %v656 = vpack.c.b16 %v655, %v587
      %v657 = vsel %vm616, %v589, 0
      %v659 = vsel %vm616, %v590, 0
      %v662 = vsel %vm616, %v656, 0
      %v665 = vsel %vm626, %v573, 0
      %667 = vmatpush.bf16.msra.mxu0 0
      %668 = vmatpush.bf16.msra.mxu0 0
      %669 = vmatpush.bf16.msra.mxu0 0
      %670 = vmatpush.bf16.msra.mxu0 0
      %671 = vmatpush.bf16.msra.mxu0 0
      %672 = vmatpush.bf16.msra.mxu0 0
      %673 = vmatpush.bf16.msra.mxu0 0
      %674 = vmatpush.bf16.msra.mxu0 %v665
      %675 = vmatmul.bf16.gmra.mxu0 %v657
      %v676 = vpop.f32.mrf.mxu0
      %v677 = vadd.f32 %v640, %v676
      %v678 = vpop.f32.mrf.mxu0
      %v679 = vadd.f32 %v642, %v678
      %680 = vmatmul.bf16.gmra.mxu0 %v659
      %v681 = vpop.f32.mrf.mxu0
      %v682 = vadd.f32 %v645, %v681
      %v683 = vpop.f32.mrf.mxu0
      %v684 = vadd.f32 %v647, %v683
      %685 = vmatmul.bf16.gmra.mxu0 %v662
      %v686 = vpop.f32.mrf.mxu0
      %v687 = vadd.f32 %v650, %v686
      %v688 = vpop.f32.mrf.mxu0
      %v689 = vadd.f32 %v652, %v688
      %690 = vdwg.mxu0
      %v691 = vld [vmem:[%s515] sm:$0xe]
      %s692 = scalar_lea.vmem %s529, 8
      %v693 = vld [vmem:[%s692] sm:$0xf]
      %v695 = vunpack.c.l.b16 %v691
      %v696 = vpack.c.b16 %v584, %v695
      %vm697 = vcmask 1046528
      %v698 = vrot.slane %v696, 1
      %v699 = vrot.slane %v590, 1
      %v700 = vsel %vm697, %v698, %v699
      %v701 = vrot.slane %v591, 1
      %v702 = vsel %vm697, %v699, %v701
      %v704 = vsel %vm616, %v700, 0
      %v707 = vsel %vm616, %v702, 0
      %v710 = vsel %vm616, %v701, 0
      %v713 = vsel %vm626, %v693, 0
      %715 = vmatpush.bf16.msra.mxu0 0
      %716 = vmatpush.bf16.msra.mxu0 0
      %717 = vmatpush.bf16.msra.mxu0 0
      %718 = vmatpush.bf16.msra.mxu0 0
      %719 = vmatpush.bf16.msra.mxu0 0
      %720 = vmatpush.bf16.msra.mxu0 0
      %721 = vmatpush.bf16.msra.mxu0 0
      %722 = vmatpush.bf16.msra.mxu0 %v713
      %723 = vmatmul.bf16.gmra.mxu0 %v704
      %v724 = vpop.f32.mrf.mxu0
      %v725 = vadd.f32 0.0, %v724
      %v726 = vpop.f32.mrf.mxu0
      %v727 = vadd.f32 0.0, %v726
      %728 = vmatmul.bf16.gmra.mxu0 %v707
      %v729 = vpop.f32.mrf.mxu0
      %v730 = vadd.f32 0.0, %v729
      %v731 = vpop.f32.mrf.mxu0
      %v732 = vadd.f32 0.0, %v731
      %733 = vmatmul.bf16.gmra.mxu0 %v710
      %v734 = vpop.f32.mrf.mxu0
      %v735 = vadd.f32 0.0, %v734
      %v736 = vpop.f32.mrf.mxu0
      %v737 = vadd.f32 0.0, %v736
      %738 = vdwg.mxu0
      %v739 = vadd.f32 %v677, %v725
      %v740 = vadd.f32 %v679, %v727
      %v741 = vadd.f32 %v682, %v730
      %v742 = vadd.f32 %v684, %v732
      %v743 = vadd.f32 %v687, %v735
      %v744 = vadd.f32 %v689, %v737
      %v745 = vld [vmem:[%s515 + $0x4] sm:$0xf]
      %v746 = vld [vmem:[%s515 + $0x8] sm:$0xf]
      %v747 = vld [vmem:[%s515 + $0xc] sm:$0xf]
      %v748 = vld [vmem:[%s515 + $0x10] sm:$0xf]
      %v749 = vld [vmem:[%s515 + $0x14] sm:$0xf]
      %v750 = vld [vmem:[%s515 + $0x18] sm:$0x7]
      %s751 = scalar_lea.vmem %s529, 12
      %v752 = vld [vmem:[%s751] sm:$0xf]
      %v759 = vunpack.c.l.b16 %v745
      %v760 = vunpack.c.l.b16 %v746
      %v761 = vunpack.c.l.b16 %v747
      %v762 = vunpack.c.l.b16 %v748
      %v763 = vunpack.c.l.b16 %v749
      %v764 = vunpack.c.l.b16 %v750
      %v765 = vpack.c.b16 %v760, %v759
      %v766 = vpack.c.b16 %v762, %v761
      %v767 = vpack.c.b16 %v764, %v763
      %v769 = vsel %vm616, %v765, 0
      %v772 = vsel %vm616, %v766, 0
      %v775 = vsel %vm616, %v767, 0
      %v778 = vsel %vm626, %v752, 0
      %780 = vmatpush.bf16.msra.mxu0 0
      %781 = vmatpush.bf16.msra.mxu0 0
      %782 = vmatpush.bf16.msra.mxu0 0
      %783 = vmatpush.bf16.msra.mxu0 0
      %784 = vmatpush.bf16.msra.mxu0 0
      %785 = vmatpush.bf16.msra.mxu0 0
      %786 = vmatpush.bf16.msra.mxu0 0
      %787 = vmatpush.bf16.msra.mxu0 %v778
      %788 = vmatmul.bf16.gmra.mxu0 %v769
      %v789 = vpop.f32.mrf.mxu0
      %v790 = vadd.f32 0.0, %v789
      %v791 = vpop.f32.mrf.mxu0
      %v792 = vadd.f32 0.0, %v791
      %793 = vmatmul.bf16.gmra.mxu0 %v772
      %v794 = vpop.f32.mrf.mxu0
      %v795 = vadd.f32 0.0, %v794
      %v796 = vpop.f32.mrf.mxu0
      %v797 = vadd.f32 0.0, %v796
      %798 = vmatmul.bf16.gmra.mxu0 %v775
      %v799 = vpop.f32.mrf.mxu0
      %v800 = vadd.f32 0.0, %v799
      %v801 = vpop.f32.mrf.mxu0
      %v802 = vadd.f32 0.0, %v801
      %803 = vdwg.mxu0
      %v804 = vadd.f32 %v739, %v790
      %v805 = vadd.f32 %v740, %v792
      %v806 = vadd.f32 %v741, %v795
      %v807 = vadd.f32 %v742, %v797
      %v808 = vadd.f32 %v743, %v800
      %v809 = vadd.f32 %v744, %v802
      %v810 = vld [vmem:[%s515 + $0x18] sm:$0xf]
      %s811 = scalar_lea.vmem %s529, 16
      %v812 = vld [vmem:[%s811] sm:$0xf]
      %v814 = vunpack.c.l.b16 %v810
      %v815 = vpack.c.b16 %v814, %v763
      %v816 = vshrl.u32 %v765, 16
      %v818 = vshll.u32 %v765, 16
      %v820 = vrot.slane %v818, 1
      %v821 = vor.u32 %v816, %v820
      %v822 = vshll.u32 %v766, 16
      %v824 = vrot.slane %v822, 1
      %v825 = vsel %vm592, %v821, %v824
      %v826 = vshrl.u32 %v766, 16
      %v828 = vor.u32 %v826, %v824
      %v830 = vshll.u32 %v815, 16
      %v832 = vrot.slane %v830, 1
      %v833 = vsel %vm592, %v828, %v832
      %v834 = vshrl.u32 %v815, 16
      %v836 = vor.u32 %v834, %v832
      %v838 = vsel %vm616, %v825, 0
      %v841 = vsel %vm616, %v833, 0
      %v844 = vsel %vm616, %v836, 0
      %v847 = vsel %vm626, %v812, 0
      %849 = vmatpush.bf16.msra.mxu0 0
      %850 = vmatpush.bf16.msra.mxu0 0
      %851 = vmatpush.bf16.msra.mxu0 0
      %852 = vmatpush.bf16.msra.mxu0 0
      %853 = vmatpush.bf16.msra.mxu0 0
      %854 = vmatpush.bf16.msra.mxu0 0
      %855 = vmatpush.bf16.msra.mxu0 0
      %856 = vmatpush.bf16.msra.mxu0 %v847
      %857 = vmatmul.bf16.gmra.mxu0 %v838
      %v858 = vpop.f32.mrf.mxu0
      %v859 = vadd.f32 0.0, %v858
      %v860 = vpop.f32.mrf.mxu0
      %v861 = vadd.f32 0.0, %v860
      %862 = vmatmul.bf16.gmra.mxu0 %v841
      %v863 = vpop.f32.mrf.mxu0
      %v864 = vadd.f32 0.0, %v863
      %v865 = vpop.f32.mrf.mxu0
      %v866 = vadd.f32 0.0, %v865
      %867 = vmatmul.bf16.gmra.mxu0 %v844
      %v868 = vpop.f32.mrf.mxu0
      %v869 = vadd.f32 0.0, %v868
      %v870 = vpop.f32.mrf.mxu0
      %v871 = vadd.f32 0.0, %v870
      %872 = vdwg.mxu0
      %v873 = vadd.f32 %v804, %v859
      %v874 = vadd.f32 %v805, %v861
      %v875 = vadd.f32 %v806, %v864
      %v876 = vadd.f32 %v807, %v866
      %v877 = vadd.f32 %v808, %v869
      %v878 = vadd.f32 %v809, %v871
      %v879 = vld [vmem:[%s515 + $0x4] sm:$0xe]
      %s880 = scalar_lea.vmem %s529, 20
      %v881 = vld [vmem:[%s880] sm:$0xf]
      %v883 = vunpack.c.l.b16 %v879
      %v884 = vpack.c.b16 %v760, %v883
      %v885 = vrot.slane %v884, 1
      %v886 = vrot.slane %v766, 1
      %v887 = vsel %vm697, %v885, %v886
      %v888 = vrot.slane %v815, 1
      %v889 = vsel %vm697, %v886, %v888
      %v891 = vsel %vm616, %v887, 0
      %v894 = vsel %vm616, %v889, 0
      %v897 = vsel %vm616, %v888, 0
      %v900 = vsel %vm626, %v881, 0
      %902 = vmatpush.bf16.msra.mxu0 0
      %903 = vmatpush.bf16.msra.mxu0 0
      %904 = vmatpush.bf16.msra.mxu0 0
      %905 = vmatpush.bf16.msra.mxu0 0
      %906 = vmatpush.bf16.msra.mxu0 0
      %907 = vmatpush.bf16.msra.mxu0 0
      %908 = vmatpush.bf16.msra.mxu0 0
      %909 = vmatpush.bf16.msra.mxu0 %v900
      %910 = vmatmul.bf16.gmra.mxu0 %v891
      %v911 = vpop.f32.mrf.mxu0
      %v912 = vadd.f32 0.0, %v911
      %v913 = vpop.f32.mrf.mxu0
      %v914 = vadd.f32 0.0, %v913
      %915 = vmatmul.bf16.gmra.mxu0 %v894
      %v916 = vpop.f32.mrf.mxu0
      %v917 = vadd.f32 0.0, %v916
      %v918 = vpop.f32.mrf.mxu0
      %v919 = vadd.f32 0.0, %v918
      %920 = vmatmul.bf16.gmra.mxu0 %v897
      %v921 = vpop.f32.mrf.mxu0
      %v922 = vadd.f32 0.0, %v921
      %v923 = vpop.f32.mrf.mxu0
      %v924 = vadd.f32 0.0, %v923
      %925 = vdwg.mxu0
      %v926 = vadd.f32 %v873, %v912
      %v927 = vadd.f32 %v874, %v914
      %v928 = vadd.f32 %v875, %v917
      %v929 = vadd.f32 %v876, %v919
      %v930 = vadd.f32 %v877, %v922
      %v931 = vadd.f32 %v878, %v924
      %v932 = vld [vmem:[%s515 + $0x8] sm:$0xf]
      %v933 = vld [vmem:[%s515 + $0xc] sm:$0xf]
      %v934 = vld [vmem:[%s515 + $0x10] sm:$0xf]
      %v935 = vld [vmem:[%s515 + $0x14] sm:$0xf]
      %v936 = vld [vmem:[%s515 + $0x18] sm:$0xf]
      %v937 = vld [vmem:[%s515 + $0x1c] sm:$0x7]
      %s938 = scalar_lea.vmem %s529, 24
      %v939 = vld [vmem:[%s938] sm:$0xf]
      %v946 = vunpack.c.l.b16 %v932
      %v947 = vunpack.c.l.b16 %v933
      %v948 = vunpack.c.l.b16 %v934
      %v949 = vunpack.c.l.b16 %v935
      %v950 = vunpack.c.l.b16 %v936
      %v951 = vunpack.c.l.b16 %v937
      %v952 = vpack.c.b16 %v947, %v946
      %v953 = vpack.c.b16 %v949, %v948
      %v954 = vpack.c.b16 %v951, %v950
      %v956 = vsel %vm616, %v952, 0
      %v959 = vsel %vm616, %v953, 0
      %v962 = vsel %vm616, %v954, 0
      %v965 = vsel %vm626, %v939, 0
      %967 = vmatpush.bf16.msra.mxu0 0
      %968 = vmatpush.bf16.msra.mxu0 0
      %969 = vmatpush.bf16.msra.mxu0 0
      %970 = vmatpush.bf16.msra.mxu0 0
      %971 = vmatpush.bf16.msra.mxu0 0
      %972 = vmatpush.bf16.msra.mxu0 0
      %973 = vmatpush.bf16.msra.mxu0 0
      %974 = vmatpush.bf16.msra.mxu0 %v965
      %975 = vmatmul.bf16.gmra.mxu0 %v956
      %v976 = vpop.f32.mrf.mxu0
      %v977 = vadd.f32 0.0, %v976
      %v978 = vpop.f32.mrf.mxu0
      %v979 = vadd.f32 0.0, %v978
      %980 = vmatmul.bf16.gmra.mxu0 %v959
      %v981 = vpop.f32.mrf.mxu0
      %v982 = vadd.f32 0.0, %v981
      %v983 = vpop.f32.mrf.mxu0
      %v984 = vadd.f32 0.0, %v983
      %985 = vmatmul.bf16.gmra.mxu0 %v962
      %v986 = vpop.f32.mrf.mxu0
      %v987 = vadd.f32 0.0, %v986
      %v988 = vpop.f32.mrf.mxu0
      %v989 = vadd.f32 0.0, %v988
      %990 = vdwg.mxu0
      %v991 = vadd.f32 %v926, %v977
      %v992 = vadd.f32 %v927, %v979
      %v993 = vadd.f32 %v928, %v982
      %v994 = vadd.f32 %v929, %v984
      %v995 = vadd.f32 %v930, %v987
      %v996 = vadd.f32 %v931, %v989
      %v997 = vld [vmem:[%s515 + $0x1c] sm:$0xf]
      %s998 = scalar_lea.vmem %s529, 28
      %v999 = vld [vmem:[%s998] sm:$0xf]
      %v1001 = vunpack.c.l.b16 %v997
      %v1002 = vpack.c.b16 %v1001, %v950
      %v1003 = vshrl.u32 %v952, 16
      %v1005 = vshll.u32 %v952, 16
      %v1007 = vrot.slane %v1005, 1
      %v1008 = vor.u32 %v1003, %v1007
      %v1009 = vshll.u32 %v953, 16
      %v1011 = vrot.slane %v1009, 1
      %v1012 = vsel %vm592, %v1008, %v1011
      %v1013 = vshrl.u32 %v953, 16
      %v1015 = vor.u32 %v1013, %v1011
      %v1017 = vshll.u32 %v1002, 16
      %v1019 = vrot.slane %v1017, 1
      %v1020 = vsel %vm592, %v1015, %v1019
      %v1021 = vshrl.u32 %v1002, 16
      %v1023 = vor.u32 %v1021, %v1019
      %v1025 = vsel %vm616, %v1012, 0
      %v1028 = vsel %vm616, %v1020, 0
      %v1031 = vsel %vm616, %v1023, 0
      %v1034 = vsel %vm626, %v999, 0
      %1036 = vmatpush.bf16.msra.mxu0 0
      %1037 = vmatpush.bf16.msra.mxu0 0
      %1038 = vmatpush.bf16.msra.mxu0 0
      %1039 = vmatpush.bf16.msra.mxu0 0
      %1040 = vmatpush.bf16.msra.mxu0 0
      %1041 = vmatpush.bf16.msra.mxu0 0
      %1042 = vmatpush.bf16.msra.mxu0 0
      %1043 = vmatpush.bf16.msra.mxu0 %v1034
      %1044 = vmatmul.bf16.gmra.mxu0 %v1025
      %v1045 = vpop.f32.mrf.mxu0
      %v1046 = vadd.f32 0.0, %v1045
      %v1047 = vpop.f32.mrf.mxu0
      %v1048 = vadd.f32 0.0, %v1047
      %1049 = vmatmul.bf16.gmra.mxu0 %v1028
      %v1050 = vpop.f32.mrf.mxu0
      %v1051 = vadd.f32 0.0, %v1050
      %v1052 = vpop.f32.mrf.mxu0
      %v1053 = vadd.f32 0.0, %v1052
      %1054 = vmatmul.bf16.gmra.mxu0 %v1031
      %v1055 = vpop.f32.mrf.mxu0
      %v1056 = vadd.f32 0.0, %v1055
      %v1057 = vpop.f32.mrf.mxu0
      %v1058 = vadd.f32 0.0, %v1057
      %1059 = vdwg.mxu0
      %v1060 = vadd.f32 %v991, %v1046
      %v1061 = vadd.f32 %v992, %v1048
      %v1062 = vadd.f32 %v993, %v1051
      %v1063 = vadd.f32 %v994, %v1053
      %v1064 = vadd.f32 %v995, %v1056
      %v1065 = vadd.f32 %v996, %v1058
      %v1066 = vld [vmem:[%s515 + $0x8] sm:$0xe]
      %s1067 = scalar_lea.vmem %s529, 32
      %v1068 = vld [vmem:[%s1067] sm:$0xf]
      %v1070 = vunpack.c.l.b16 %v1066
      %v1071 = vpack.c.b16 %v947, %v1070
      %v1072 = vrot.slane %v1071, 1
      %v1073 = vrot.slane %v953, 1
      %v1074 = vsel %vm697, %v1072, %v1073
      %v1075 = vrot.slane %v1002, 1
      %v1076 = vsel %vm697, %v1073, %v1075
      %v1078 = vsel %vm616, %v1074, 0
      %v1081 = vsel %vm616, %v1076, 0
      %v1084 = vsel %vm616, %v1075, 0
      %v1087 = vsel %vm626, %v1068, 0
      %1089 = vmatpush.bf16.msra.mxu0 0
      %1090 = vmatpush.bf16.msra.mxu0 0
      %1091 = vmatpush.bf16.msra.mxu0 0
      %1092 = vmatpush.bf16.msra.mxu0 0
      %1093 = vmatpush.bf16.msra.mxu0 0
      %1094 = vmatpush.bf16.msra.mxu0 0
      %1095 = vmatpush.bf16.msra.mxu0 0
      %1096 = vmatpush.bf16.msra.mxu0 %v1087
      %1097 = vmatmul.bf16.gmra.mxu0 %v1078
      %v1098 = vpop.f32.mrf.mxu0
      %v1099 = vadd.f32 0.0, %v1098
      %v1100 = vpop.f32.mrf.mxu0
      %v1101 = vadd.f32 0.0, %v1100
      %1102 = vmatmul.bf16.gmra.mxu0 %v1081
      %v1103 = vpop.f32.mrf.mxu0
      %v1104 = vadd.f32 0.0, %v1103
      %v1105 = vpop.f32.mrf.mxu0
      %v1106 = vadd.f32 0.0, %v1105
      %1107 = vmatmul.bf16.gmra.mxu0 %v1084
      %v1108 = vpop.f32.mrf.mxu0
      %v1109 = vadd.f32 0.0, %v1108
      %v1110 = vpop.f32.mrf.mxu0
      %v1111 = vadd.f32 0.0, %v1110
      %1112 = vdwg.mxu0
      %v1113 = vadd.f32 %v1060, %v1099
      %v1114 = vadd.f32 %v1061, %v1101
      %v1115 = vadd.f32 %v1062, %v1104
      %v1116 = vadd.f32 %v1063, %v1106
      %v1117 = vadd.f32 %v1064, %v1109
      %v1118 = vadd.f32 %v1065, %v1111
      %v1119 = vld [vmem:[%s532] sm:$0x1]
      %v1121 = vperm.slane %v1119, 0
      %v1123 = vadd.f32 %v1113, %v1121
      %v1124 = vadd.f32 %v1114, %v1121
      %v1125 = vadd.f32 %v1115, %v1121
      %v1126 = vadd.f32 %v1116, %v1121
      %v1127 = vadd.f32 %v1117, %v1121
      %v1128 = vadd.f32 %v1118, %v1121
      %v1129 = vmax.f32 %v1123, 0.0
      %v1130 = vmax.f32 %v1124, 0.0
      %v1131 = vmax.f32 %v1125, 0.0
      %v1132 = vmax.f32 %v1126, 0.0
      %v1133 = vmax.f32 %v1127, 0.0
      %v1134 = vmax.f32 %v1128, 0.0
      %vm1135 = vcmask 130048
      %1136 = vst.msk [vmem:[#allocation2] sm:$0xff] %vm1135, %v1129
      %1137 = vst.msk [vmem:[#allocation2 + $0x8] sm:$0xff] %vm1135, %v1130
      %1138 = vst.msk [vmem:[#allocation2 + $0x10] sm:$0xff] %vm1135, %v1131
      %1139 = vst.msk [vmem:[#allocation2 + $0x18] sm:$0xff] %vm1135, %v1132
      %1140 = vst.msk [vmem:[#allocation2 + $0x20] sm:$0xff] %vm1135, %v1133
      %vm1141 = vcmask 128000
      %1142 = vst.msk [vmem:[#allocation2 + $0x28] sm:$0x3f] %vm1141, %v1134
      %v1143 = vld [vmem:[%s524] sm:$0xf]
      %v1144 = vld [vmem:[%s524 + $0x4] sm:$0xf]
      %v1145 = vld [vmem:[%s524 + $0x8] sm:$0xf]
      %v1146 = vld [vmem:[%s524 + $0xc] sm:$0xf]
      %v1147 = vld [vmem:[%s524 + $0x10] sm:$0xf]
      %v1148 = vld [vmem:[%s524 + $0x14] sm:$0xf]
      %v1149 = vld [vmem:[%s524 + $0x18] sm:$0xf]
      %v1150 = vld [vmem:[%s524 + $0x1c] sm:$0xf]
      %v1151 = vld [vmem:[%s524 + $0x20] sm:$0xf]
      %v1152 = vld [vmem:[%s524 + $0x24] sm:$0xf]
      %v1153 = vld [vmem:[%s524 + $0x28] sm:$0xf]
      %v1154 = vld [vmem:[%s524 + $0x2c] sm:$0xf]
      %v1155 = vld [vmem:[%s524 + $0x30] sm:$0xf]
      %v1156 = vld [vmem:[%s524 + $0x34] sm:$0xf]
      %v1157 = vld [vmem:[%s524 + $0x38] sm:$0xf]
      %v1158 = vld [vmem:[%s524 + $0x3c] sm:$0xf]
      %v1159 = vld [vmem:[%s524 + $0x40] sm:$0xf]
      %v1160 = vld [vmem:[%s524 + $0x44] sm:$0xf]
      %v1161 = vld [vmem:[%s524 + $0x48] sm:$0xf]
      %v1162 = vld [vmem:[%s524 + $0x4c] sm:$0xf]
      %v1163 = vld [vmem:[%s524 + $0x50] sm:$0xf]
      %v1164 = vld [vmem:[%s524 + $0x54] sm:$0xf]
      %v1165 = vld [vmem:[%s524 + $0x58] sm:$0xf]
      %v1166 = vld [vmem:[%s524 + $0x5c] sm:$0xf]
      %v1167 = vld [vmem:[%s524 + $0x60] sm:$0xf]
      %v1168 = vld [vmem:[%s524 + $0x64] sm:$0xf]
      %v1169 = vld [vmem:[%s524 + $0x68] sm:$0xf]
      %v1170 = vld [vmem:[%s524 + $0x6c] sm:$0x7]
      %v1171 = vld [vmem:[%s537] sm:$0xf]
      %v1172 = vld [vmem:[%s524 + $0x6c] sm:$0xf]
      %s1173 = scalar_lea.vmem %s537, 4
      %v1174 = vld [vmem:[%s1173] sm:$0xf]
      %v1203 = vunpack.c.l.b16 %v1143
      %v1204 = vunpack.c.l.b16 %v1144
      %v1205 = vunpack.c.l.b16 %v1145
      %v1206 = vunpack.c.l.b16 %v1146
      %v1207 = vunpack.c.l.b16 %v1147
      %v1208 = vunpack.c.l.b16 %v1148
      %v1209 = vunpack.c.l.b16 %v1149
      %v1210 = vunpack.c.l.b16 %v1150
      %v1211 = vunpack.c.l.b16 %v1151
      %v1212 = vunpack.c.l.b16 %v1152
      %v1213 = vunpack.c.l.b16 %v1153
      %v1214 = vunpack.c.l.b16 %v1154
      %v1215 = vunpack.c.l.b16 %v1155
      %v1216 = vunpack.c.l.b16 %v1156
      %v1217 = vunpack.c.l.b16 %v1157
      %v1218 = vunpack.c.l.b16 %v1158
      %v1219 = vunpack.c.l.b16 %v1159
      %v1220 = vunpack.c.l.b16 %v1160
      %v1221 = vunpack.c.l.b16 %v1161
      %v1222 = vunpack.c.l.b16 %v1162
      %v1223 = vunpack.c.l.b16 %v1163
      %v1224 = vunpack.c.l.b16 %v1164
      %v1225 = vunpack.c.l.b16 %v1165
      %v1226 = vunpack.c.l.b16 %v1166
      %v1227 = vunpack.c.l.b16 %v1167
      %v1228 = vunpack.c.l.b16 %v1168
      %v1229 = vunpack.c.l.b16 %v1169
      %v1230 = vunpack.c.l.b16 %v1172
      %v1231 = vpack.c.b16 %v1204, %v1203
      %v1232 = vpack.c.b16 %v1206, %v1205
      %v1233 = vpack.c.b16 %v1208, %v1207
      %v1234 = vpack.c.b16 %v1210, %v1209
      %v1235 = vpack.c.b16 %v1212, %v1211
      %v1236 = vpack.c.b16 %v1214, %v1213
      %v1237 = vpack.c.b16 %v1216, %v1215
      %v1238 = vpack.c.b16 %v1218, %v1217
      %v1239 = vpack.c.b16 %v1220, %v1219
      %v1240 = vpack.c.b16 %v1222, %v1221
      %v1241 = vpack.c.b16 %v1224, %v1223
      %v1242 = vpack.c.b16 %v1226, %v1225
      %v1243 = vpack.c.b16 %v1228, %v1227
      %v1244 = vpack.c.b16 %v1230, %v1229
      %v1246 = vshrl.u32 %v1231, 16
      %v1248 = vshll.u32 %v1231, 16
      %v1250 = vrot.slane %v1248, 1
      %v1251 = vor.u32 %v1246, %v1250
      %v1253 = vshll.u32 %v1232, 16
      %v1255 = vrot.slane %v1253, 1
      %v1256 = vsel %vm592, %v1251, %v1255
      %v1257 = vshrl.u32 %v1232, 16
      %v1259 = vor.u32 %v1257, %v1255
      %v1261 = vshll.u32 %v1233, 16
      %v1263 = vrot.slane %v1261, 1
      %v1264 = vsel %vm592, %v1259, %v1263
      %v1265 = vshrl.u32 %v1233, 16
      %v1267 = vor.u32 %v1265, %v1263
      %v1269 = vshll.u32 %v1234, 16
      %v1271 = vrot.slane %v1269, 1
      %v1272 = vsel %vm592, %v1267, %v1271
      %v1273 = vshrl.u32 %v1234, 16
      %v1275 = vor.u32 %v1273, %v1271
      %v1277 = vshll.u32 %v1235, 16
      %v1279 = vrot.slane %v1277, 1
      %v1280 = vsel %vm592, %v1275, %v1279
      %v1281 = vshrl.u32 %v1235, 16
      %v1283 = vor.u32 %v1281, %v1279
      %v1285 = vshll.u32 %v1236, 16
      %v1287 = vrot.slane %v1285, 1
      %v1288 = vsel %vm592, %v1283, %v1287
      %v1289 = vshrl.u32 %v1236, 16
      %v1291 = vor.u32 %v1289, %v1287
      %v1293 = vshll.u32 %v1237, 16
      %v1295 = vrot.slane %v1293, 1
      %v1296 = vsel %vm592, %v1291, %v1295
      %v1297 = vshrl.u32 %v1237, 16
      %v1299 = vor.u32 %v1297, %v1295
      %v1301 = vshll.u32 %v1238, 16
      %v1303 = vrot.slane %v1301, 1
      %v1304 = vsel %vm592, %v1299, %v1303
      %v1305 = vshrl.u32 %v1238, 16
      %v1307 = vor.u32 %v1305, %v1303
      %v1309 = vshll.u32 %v1239, 16
      %v1311 = vrot.slane %v1309, 1
      %v1312 = vsel %vm592, %v1307, %v1311
      %v1313 = vshrl.u32 %v1239, 16
      %v1315 = vor.u32 %v1313, %v1311
      %v1317 = vshll.u32 %v1240, 16
      %v1319 = vrot.slane %v1317, 1
      %v1320 = vsel %vm592, %v1315, %v1319
      %v1321 = vshrl.u32 %v1240, 16
      %v1323 = vor.u32 %v1321, %v1319
      %v1325 = vshll.u32 %v1241, 16
      %v1327 = vrot.slane %v1325, 1
      %v1328 = vsel %vm592, %v1323, %v1327
      %v1329 = vshrl.u32 %v1241, 16
      %v1331 = vor.u32 %v1329, %v1327
      %v1333 = vshll.u32 %v1242, 16
      %v1335 = vrot.slane %v1333, 1
      %v1336 = vsel %vm592, %v1331, %v1335
      %v1337 = vshrl.u32 %v1242, 16
      %v1339 = vor.u32 %v1337, %v1335
      %v1341 = vshll.u32 %v1243, 16
      %v1343 = vrot.slane %v1341, 1
      %v1344 = vsel %vm592, %v1339, %v1343
      %v1345 = vshrl.u32 %v1243, 16
      %v1347 = vor.u32 %v1345, %v1343
      %v1349 = vshll.u32 %v1244, 16
      %v1351 = vrot.slane %v1349, 1
      %v1352 = vsel %vm592, %v1347, %v1351
      %v1353 = vshrl.u32 %v1244, 16
      %v1355 = vor.u32 %v1353, %v1351
      %v1357 = vsel %vm616, %v1256, 0
      %v1360 = vsel %vm616, %v1264, 0
      %v1363 = vsel %vm616, %v1272, 0
      %v1366 = vsel %vm616, %v1280, 0
      %v1369 = vsel %vm616, %v1288, 0
      %v1372 = vsel %vm616, %v1296, 0
      %v1375 = vsel %vm616, %v1304, 0
      %v1378 = vsel %vm616, %v1312, 0
      %v1381 = vsel %vm616, %v1320, 0
      %v1384 = vsel %vm616, %v1328, 0
      %v1387 = vsel %vm616, %v1336, 0
      %v1390 = vsel %vm616, %v1344, 0
      %v1393 = vsel %vm616, %v1352, 0
      %v1396 = vsel %vm616, %v1355, 0
      %v1399 = vsel %vm626, %v1174, 0
      %1401 = vmatpush.bf16.msra.mxu0 0
      %1402 = vmatpush.bf16.msra.mxu0 0
      %1403 = vmatpush.bf16.msra.mxu0 0
      %1404 = vmatpush.bf16.msra.mxu0 0
      %1405 = vmatpush.bf16.msra.mxu0 0
      %1406 = vmatpush.bf16.msra.mxu0 0
      %1407 = vmatpush.bf16.msra.mxu0 0
      %1408 = vmatpush.bf16.msra.mxu0 %v1399
      %1409 = vmatmul.bf16.gmra.mxu0 %v1357
      %v1410 = vpop.f32.mrf.mxu0
      %v1411 = vadd.f32 0.0, %v1410
      %v1412 = vpop.f32.mrf.mxu0
      %v1413 = vadd.f32 0.0, %v1412
      %1414 = vmatmul.bf16.gmra.mxu0 %v1360
      %v1415 = vpop.f32.mrf.mxu0
      %v1416 = vadd.f32 0.0, %v1415
      %v1417 = vpop.f32.mrf.mxu0
      %v1418 = vadd.f32 0.0, %v1417
      %1419 = vmatmul.bf16.gmra.mxu0 %v1363
      %v1420 = vpop.f32.mrf.mxu0
      %v1421 = vadd.f32 0.0, %v1420
      %v1422 = vpop.f32.mrf.mxu0
      %v1423 = vadd.f32 0.0, %v1422
      %1424 = vmatmul.bf16.gmra.mxu0 %v1366
      %v1425 = vpop.f32.mrf.mxu0
      %v1426 = vadd.f32 0.0, %v1425
      %v1427 = vpop.f32.mrf.mxu0
      %v1428 = vadd.f32 0.0, %v1427
      %1429 = vmatmul.bf16.gmra.mxu0 %v1369
      %v1430 = vpop.f32.mrf.mxu0
      %v1431 = vadd.f32 0.0, %v1430
      %v1432 = vpop.f32.mrf.mxu0
      %v1433 = vadd.f32 0.0, %v1432
      %1434 = vmatmul.bf16.gmra.mxu0 %v1372
      %v1435 = vpop.f32.mrf.mxu0
      %v1436 = vadd.f32 0.0, %v1435
      %v1437 = vpop.f32.mrf.mxu0
      %v1438 = vadd.f32 0.0, %v1437
      %1439 = vmatmul.bf16.gmra.mxu0 %v1375
      %v1440 = vpop.f32.mrf.mxu0
      %v1441 = vadd.f32 0.0, %v1440
      %v1442 = vpop.f32.mrf.mxu0
      %v1443 = vadd.f32 0.0, %v1442
      %1444 = vmatmul.bf16.gmra.mxu0 %v1378
      %v1445 = vpop.f32.mrf.mxu0
      %v1446 = vadd.f32 0.0, %v1445
      %v1447 = vpop.f32.mrf.mxu0
      %v1448 = vadd.f32 0.0, %v1447
      %1449 = vmatmul.bf16.gmra.mxu0 %v1381
      %v1450 = vpop.f32.mrf.mxu0
      %v1451 = vadd.f32 0.0, %v1450
      %v1452 = vpop.f32.mrf.mxu0
      %v1453 = vadd.f32 0.0, %v1452
      %1454 = vmatmul.bf16.gmra.mxu0 %v1384
      %v1455 = vpop.f32.mrf.mxu0
      %v1456 = vadd.f32 0.0, %v1455
      %v1457 = vpop.f32.mrf.mxu0
      %v1458 = vadd.f32 0.0, %v1457
      %1459 = vmatmul.bf16.gmra.mxu0 %v1387
      %v1460 = vpop.f32.mrf.mxu0
      %v1461 = vadd.f32 0.0, %v1460
      %v1462 = vpop.f32.mrf.mxu0
      %v1463 = vadd.f32 0.0, %v1462
      %1464 = vmatmul.bf16.gmra.mxu0 %v1390
      %v1465 = vpop.f32.mrf.mxu0
      %v1466 = vadd.f32 0.0, %v1465
      %v1467 = vpop.f32.mrf.mxu0
      %v1468 = vadd.f32 0.0, %v1467
      %1469 = vmatmul.bf16.gmra.mxu0 %v1393
      %v1470 = vpop.f32.mrf.mxu0
      %v1471 = vadd.f32 0.0, %v1470
      %v1472 = vpop.f32.mrf.mxu0
      %v1473 = vadd.f32 0.0, %v1472
      %1474 = vmatmul.bf16.gmra.mxu0 %v1396
      %v1475 = vpop.f32.mrf.mxu0
      %v1476 = vadd.f32 0.0, %v1475
      %v1477 = vpop.f32.mrf.mxu0
      %v1478 = vadd.f32 0.0, %v1477
      %1479 = vdwg.mxu0
      %v1481 = vunpack.c.l.b16 %v1170
      %v1482 = vpack.c.b16 %v1481, %v1229
      %v1483 = vsel %vm616, %v1231, 0
      %v1485 = vsel %vm616, %v1232, 0
      %v1487 = vsel %vm616, %v1233, 0
      %v1489 = vsel %vm616, %v1234, 0
      %v1491 = vsel %vm616, %v1235, 0
      %v1493 = vsel %vm616, %v1236, 0
      %v1495 = vsel %vm616, %v1237, 0
      %v1497 = vsel %vm616, %v1238, 0
      %v1499 = vsel %vm616, %v1239, 0
      %v1501 = vsel %vm616, %v1240, 0
      %v1503 = vsel %vm616, %v1241, 0
      %v1505 = vsel %vm616, %v1242, 0
      %v1507 = vsel %vm616, %v1243, 0
      %v1510 = vsel %vm616, %v1482, 0
      %v1513 = vsel %vm626, %v1171, 0
      %1515 = vmatpush.bf16.msra.mxu0 0
      %1516 = vmatpush.bf16.msra.mxu0 0
      %1517 = vmatpush.bf16.msra.mxu0 0
      %1518 = vmatpush.bf16.msra.mxu0 0
      %1519 = vmatpush.bf16.msra.mxu0 0
      %1520 = vmatpush.bf16.msra.mxu0 0
      %1521 = vmatpush.bf16.msra.mxu0 0
      %1522 = vmatpush.bf16.msra.mxu0 %v1513
      %1523 = vmatmul.bf16.gmra.mxu0 %v1483
      %v1524 = vpop.f32.mrf.mxu0
      %v1525 = vadd.f32 %v1411, %v1524
      %v1526 = vpop.f32.mrf.mxu0
      %v1527 = vadd.f32 %v1413, %v1526
      %1528 = vmatmul.bf16.gmra.mxu0 %v1485
      %v1529 = vpop.f32.mrf.mxu0
      %v1530 = vadd.f32 %v1416, %v1529
      %v1531 = vpop.f32.mrf.mxu0
      %v1532 = vadd.f32 %v1418, %v1531
      %1533 = vmatmul.bf16.gmra.mxu0 %v1487
      %v1534 = vpop.f32.mrf.mxu0
      %v1535 = vadd.f32 %v1421, %v1534
      %v1536 = vpop.f32.mrf.mxu0
      %v1537 = vadd.f32 %v1423, %v1536
      %1538 = vmatmul.bf16.gmra.mxu0 %v1489
      %v1539 = vpop.f32.mrf.mxu0
      %v1540 = vadd.f32 %v1426, %v1539
      %v1541 = vpop.f32.mrf.mxu0
      %v1542 = vadd.f32 %v1428, %v1541
      %1543 = vmatmul.bf16.gmra.mxu0 %v1491
      %v1544 = vpop.f32.mrf.mxu0
      %v1545 = vadd.f32 %v1431, %v1544
      %v1546 = vpop.f32.mrf.mxu0
      %v1547 = vadd.f32 %v1433, %v1546
      %1548 = vmatmul.bf16.gmra.mxu0 %v1493
      %v1549 = vpop.f32.mrf.mxu0
      %v1550 = vadd.f32 %v1436, %v1549
      %v1551 = vpop.f32.mrf.mxu0
      %v1552 = vadd.f32 %v1438, %v1551
      %1553 = vmatmul.bf16.gmra.mxu0 %v1495
      %v1554 = vpop.f32.mrf.mxu0
      %v1555 = vadd.f32 %v1441, %v1554
      %v1556 = vpop.f32.mrf.mxu0
      %v1557 = vadd.f32 %v1443, %v1556
      %1558 = vmatmul.bf16.gmra.mxu0 %v1497
      %v1559 = vpop.f32.mrf.mxu0
      %v1560 = vadd.f32 %v1446, %v1559
      %v1561 = vpop.f32.mrf.mxu0
      %v1562 = vadd.f32 %v1448, %v1561
      %1563 = vmatmul.bf16.gmra.mxu0 %v1499
      %v1564 = vpop.f32.mrf.mxu0
      %v1565 = vadd.f32 %v1451, %v1564
      %v1566 = vpop.f32.mrf.mxu0
      %v1567 = vadd.f32 %v1453, %v1566
      %1568 = vmatmul.bf16.gmra.mxu0 %v1501
      %v1569 = vpop.f32.mrf.mxu0
      %v1570 = vadd.f32 %v1456, %v1569
      %v1571 = vpop.f32.mrf.mxu0
      %v1572 = vadd.f32 %v1458, %v1571
      %1573 = vmatmul.bf16.gmra.mxu0 %v1503
      %v1574 = vpop.f32.mrf.mxu0
      %v1575 = vadd.f32 %v1461, %v1574
      %v1576 = vpop.f32.mrf.mxu0
      %v1577 = vadd.f32 %v1463, %v1576
      %1578 = vmatmul.bf16.gmra.mxu0 %v1505
      %v1579 = vpop.f32.mrf.mxu0
      %v1580 = vadd.f32 %v1466, %v1579
      %v1581 = vpop.f32.mrf.mxu0
      %v1582 = vadd.f32 %v1468, %v1581
      %1583 = vmatmul.bf16.gmra.mxu0 %v1507
      %v1584 = vpop.f32.mrf.mxu0
      %v1585 = vadd.f32 %v1471, %v1584
      %v1586 = vpop.f32.mrf.mxu0
      %v1587 = vadd.f32 %v1473, %v1586
      %1588 = vmatmul.bf16.gmra.mxu0 %v1510
      %v1589 = vpop.f32.mrf.mxu0
      %v1590 = vadd.f32 %v1476, %v1589
      %v1591 = vpop.f32.mrf.mxu0
      %v1592 = vadd.f32 %v1478, %v1591
      %1593 = vdwg.mxu0
      %v1594 = vld [vmem:[%s524] sm:$0xe]
      %s1595 = scalar_lea.vmem %s537, 8
      %v1596 = vld [vmem:[%s1595] sm:$0xf]
      %v1598 = vunpack.c.l.b16 %v1594
      %v1599 = vpack.c.b16 %v1204, %v1598
      %v1600 = vrot.slane %v1599, 1
      %v1601 = vrot.slane %v1232, 1
      %v1602 = vsel %vm697, %v1600, %v1601
      %v1603 = vrot.slane %v1233, 1
      %v1604 = vsel %vm697, %v1601, %v1603
      %v1605 = vrot.slane %v1234, 1
      %v1606 = vsel %vm697, %v1603, %v1605
      %v1607 = vrot.slane %v1235, 1
      %v1608 = vsel %vm697, %v1605, %v1607
      %v1609 = vrot.slane %v1236, 1
      %v1610 = vsel %vm697, %v1607, %v1609
      %v1611 = vrot.slane %v1237, 1
      %v1612 = vsel %vm697, %v1609, %v1611
      %v1613 = vrot.slane %v1238, 1
      %v1614 = vsel %vm697, %v1611, %v1613
      %v1615 = vrot.slane %v1239, 1
      %v1616 = vsel %vm697, %v1613, %v1615
      %v1617 = vrot.slane %v1240, 1
      %v1618 = vsel %vm697, %v1615, %v1617
      %v1619 = vrot.slane %v1241, 1
      %v1620 = vsel %vm697, %v1617, %v1619
      %v1621 = vrot.slane %v1242, 1
      %v1622 = vsel %vm697, %v1619, %v1621
      %v1623 = vrot.slane %v1243, 1
      %v1624 = vsel %vm697, %v1621, %v1623
      %v1625 = vrot.slane %v1244, 1
      %v1626 = vsel %vm697, %v1623, %v1625
      %v1628 = vsel %vm616, %v1602, 0
      %v1631 = vsel %vm616, %v1604, 0
      %v1634 = vsel %vm616, %v1606, 0
      %v1637 = vsel %vm616, %v1608, 0
      %v1640 = vsel %vm616, %v1610, 0
      %v1643 = vsel %vm616, %v1612, 0
      %v1646 = vsel %vm616, %v1614, 0
      %v1649 = vsel %vm616, %v1616, 0
      %v1652 = vsel %vm616, %v1618, 0
      %v1655 = vsel %vm616, %v1620, 0
      %v1658 = vsel %vm616, %v1622, 0
      %v1661 = vsel %vm616, %v1624, 0
      %v1664 = vsel %vm616, %v1626, 0
      %v1667 = vsel %vm616, %v1625, 0
      %v1670 = vsel %vm626, %v1596, 0
      %1672 = vmatpush.bf16.msra.mxu0 0
      %1673 = vmatpush.bf16.msra.mxu0 0
      %1674 = vmatpush.bf16.msra.mxu0 0
      %1675 = vmatpush.bf16.msra.mxu0 0
      %1676 = vmatpush.bf16.msra.mxu0 0
      %1677 = vmatpush.bf16.msra.mxu0 0
      %1678 = vmatpush.bf16.msra.mxu0 0
      %1679 = vmatpush.bf16.msra.mxu0 %v1670
      %1680 = vmatmul.bf16.gmra.mxu0 %v1628
      %v1681 = vpop.f32.mrf.mxu0
      %v1682 = vadd.f32 0.0, %v1681
      %v1683 = vpop.f32.mrf.mxu0
      %v1684 = vadd.f32 0.0, %v1683
      %1685 = vmatmul.bf16.gmra.mxu0 %v1631
      %v1686 = vpop.f32.mrf.mxu0
      %v1687 = vadd.f32 0.0, %v1686
      %v1688 = vpop.f32.mrf.mxu0
      %v1689 = vadd.f32 0.0, %v1688
      %1690 = vmatmul.bf16.gmra.mxu0 %v1634
      %v1691 = vpop.f32.mrf.mxu0
      %v1692 = vadd.f32 0.0, %v1691
      %v1693 = vpop.f32.mrf.mxu0
      %v1694 = vadd.f32 0.0, %v1693
      %1695 = vmatmul.bf16.gmra.mxu0 %v1637
      %v1696 = vpop.f32.mrf.mxu0
      %v1697 = vadd.f32 0.0, %v1696
      %v1698 = vpop.f32.mrf.mxu0
      %v1699 = vadd.f32 0.0, %v1698
      %1700 = vmatmul.bf16.gmra.mxu0 %v1640
      %v1701 = vpop.f32.mrf.mxu0
      %v1702 = vadd.f32 0.0, %v1701
      %v1703 = vpop.f32.mrf.mxu0
      %v1704 = vadd.f32 0.0, %v1703
      %1705 = vmatmul.bf16.gmra.mxu0 %v1643
      %v1706 = vpop.f32.mrf.mxu0
      %v1707 = vadd.f32 0.0, %v1706
      %v1708 = vpop.f32.mrf.mxu0
      %v1709 = vadd.f32 0.0, %v1708
      %1710 = vmatmul.bf16.gmra.mxu0 %v1646
      %v1711 = vpop.f32.mrf.mxu0
      %v1712 = vadd.f32 0.0, %v1711
      %v1713 = vpop.f32.mrf.mxu0
      %v1714 = vadd.f32 0.0, %v1713
      %1715 = vmatmul.bf16.gmra.mxu0 %v1649
      %v1716 = vpop.f32.mrf.mxu0
      %v1717 = vadd.f32 0.0, %v1716
      %v1718 = vpop.f32.mrf.mxu0
      %v1719 = vadd.f32 0.0, %v1718
      %1720 = vmatmul.bf16.gmra.mxu0 %v1652
      %v1721 = vpop.f32.mrf.mxu0
      %v1722 = vadd.f32 0.0, %v1721
      %v1723 = vpop.f32.mrf.mxu0
      %v1724 = vadd.f32 0.0, %v1723
      %1725 = vmatmul.bf16.gmra.mxu0 %v1655
      %v1726 = vpop.f32.mrf.mxu0
      %v1727 = vadd.f32 0.0, %v1726
      %v1728 = vpop.f32.mrf.mxu0
      %v1729 = vadd.f32 0.0, %v1728
      %1730 = vmatmul.bf16.gmra.mxu0 %v1658
      %v1731 = vpop.f32.mrf.mxu0
      %v1732 = vadd.f32 0.0, %v1731
      %v1733 = vpop.f32.mrf.mxu0
      %v1734 = vadd.f32 0.0, %v1733
      %1735 = vmatmul.bf16.gmra.mxu0 %v1661
      %v1736 = vpop.f32.mrf.mxu0
      %v1737 = vadd.f32 0.0, %v1736
      %v1738 = vpop.f32.mrf.mxu0
      %v1739 = vadd.f32 0.0, %v1738
      %1740 = vmatmul.bf16.gmra.mxu0 %v1664
      %v1741 = vpop.f32.mrf.mxu0
      %v1742 = vadd.f32 0.0, %v1741
      %v1743 = vpop.f32.mrf.mxu0
      %v1744 = vadd.f32 0.0, %v1743
      %1745 = vmatmul.bf16.gmra.mxu0 %v1667
      %v1746 = vpop.f32.mrf.mxu0
      %v1747 = vadd.f32 0.0, %v1746
      %v1748 = vpop.f32.mrf.mxu0
      %v1749 = vadd.f32 0.0, %v1748
      %1750 = vdwg.mxu0
      %v1751 = vadd.f32 %v1525, %v1682
      %v1752 = vadd.f32 %v1527, %v1684
      %v1753 = vadd.f32 %v1530, %v1687
      %v1754 = vadd.f32 %v1532, %v1689
      %v1755 = vadd.f32 %v1535, %v1692
      %v1756 = vadd.f32 %v1537, %v1694
      %v1757 = vadd.f32 %v1540, %v1697
      %v1758 = vadd.f32 %v1542, %v1699
      %v1759 = vadd.f32 %v1545, %v1702
      %v1760 = vadd.f32 %v1547, %v1704
      %v1761 = vadd.f32 %v1550, %v1707
      %v1762 = vadd.f32 %v1552, %v1709
      %v1763 = vadd.f32 %v1555, %v1712
      %v1764 = vadd.f32 %v1557, %v1714
      %v1765 = vadd.f32 %v1560, %v1717
      %v1766 = vadd.f32 %v1562, %v1719
      %v1767 = vadd.f32 %v1565, %v1722
      %v1768 = vadd.f32 %v1567, %v1724
      %v1769 = vadd.f32 %v1570, %v1727
      %v1770 = vadd.f32 %v1572, %v1729
      %v1771 = vadd.f32 %v1575, %v1732
      %v1772 = vadd.f32 %v1577, %v1734
      %v1773 = vadd.f32 %v1580, %v1737
      %v1774 = vadd.f32 %v1582, %v1739
      %v1775 = vadd.f32 %v1585, %v1742
      %v1776 = vadd.f32 %v1587, %v1744
      %v1777 = vadd.f32 %v1590, %v1747
      %v1778 = vadd.f32 %v1592, %v1749
      %v1779 = vld [vmem:[%s524 + $0x8] sm:$0xf]
      %v1780 = vld [vmem:[%s524 + $0xc] sm:$0xf]
      %v1781 = vld [vmem:[%s524 + $0x10] sm:$0xf]
      %v1782 = vld [vmem:[%s524 + $0x14] sm:$0xf]
      %v1783 = vld [vmem:[%s524 + $0x18] sm:$0xf]
      %v1784 = vld [vmem:[%s524 + $0x1c] sm:$0xf]
      %v1785 = vld [vmem:[%s524 + $0x20] sm:$0xf]
      %v1786 = vld [vmem:[%s524 + $0x24] sm:$0xf]
      %v1787 = vld [vmem:[%s524 + $0x28] sm:$0xf]
      %v1788 = vld [vmem:[%s524 + $0x2c] sm:$0xf]
      %v1789 = vld [vmem:[%s524 + $0x30] sm:$0xf]
      %v1790 = vld [vmem:[%s524 + $0x34] sm:$0xf]
      %v1791 = vld [vmem:[%s524 + $0x38] sm:$0xf]
      %v1792 = vld [vmem:[%s524 + $0x3c] sm:$0xf]
      %v1793 = vld [vmem:[%s524 + $0x40] sm:$0xf]
      %v1794 = vld [vmem:[%s524 + $0x44] sm:$0xf]
      %v1795 = vld [vmem:[%s524 + $0x48] sm:$0xf]
      %v1796 = vld [vmem:[%s524 + $0x4c] sm:$0xf]
      %v1797 = vld [vmem:[%s524 + $0x50] sm:$0xf]
      %v1798 = vld [vmem:[%s524 + $0x54] sm:$0xf]
      %v1799 = vld [vmem:[%s524 + $0x58] sm:$0xf]
      %v1800 = vld [vmem:[%s524 + $0x5c] sm:$0xf]
      %v1801 = vld [vmem:[%s524 + $0x60] sm:$0xf]
      %v1802 = vld [vmem:[%s524 + $0x64] sm:$0xf]
      %v1803 = vld [vmem:[%s524 + $0x68] sm:$0xf]
      %v1804 = vld [vmem:[%s524 + $0x6c] sm:$0xf]
      %v1805 = vld [vmem:[%s524 + $0x70] sm:$0xf]
      %v1806 = vld [vmem:[%s524 + $0x74] sm:$0x7]
      %s1807 = scalar_lea.vmem %s537, 12
      %v1808 = vld [vmem:[%s1807] sm:$0xf]
      %v1837 = vunpack.c.l.b16 %v1779
      %v1838 = vunpack.c.l.b16 %v1780
      %v1839 = vunpack.c.l.b16 %v1781
      %v1840 = vunpack.c.l.b16 %v1782
      %v1841 = vunpack.c.l.b16 %v1783
      %v1842 = vunpack.c.l.b16 %v1784
      %v1843 = vunpack.c.l.b16 %v1785
      %v1844 = vunpack.c.l.b16 %v1786
      %v1845 = vunpack.c.l.b16 %v1787
      %v1846 = vunpack.c.l.b16 %v1788
      %v1847 = vunpack.c.l.b16 %v1789
      %v1848 = vunpack.c.l.b16 %v1790
      %v1849 = vunpack.c.l.b16 %v1791
      %v1850 = vunpack.c.l.b16 %v1792
      %v1851 = vunpack.c.l.b16 %v1793
      %v1852 = vunpack.c.l.b16 %v1794
      %v1853 = vunpack.c.l.b16 %v1795
      %v1854 = vunpack.c.l.b16 %v1796
      %v1855 = vunpack.c.l.b16 %v1797
      %v1856 = vunpack.c.l.b16 %v1798
      %v1857 = vunpack.c.l.b16 %v1799
      %v1858 = vunpack.c.l.b16 %v1800
      %v1859 = vunpack.c.l.b16 %v1801
      %v1860 = vunpack.c.l.b16 %v1802
      %v1861 = vunpack.c.l.b16 %v1803
      %v1862 = vunpack.c.l.b16 %v1804
      %v1863 = vunpack.c.l.b16 %v1805
      %v1864 = vunpack.c.l.b16 %v1806
      %v1865 = vpack.c.b16 %v1838, %v1837
      %v1866 = vpack.c.b16 %v1840, %v1839
      %v1867 = vpack.c.b16 %v1842, %v1841
      %v1868 = vpack.c.b16 %v1844, %v1843
      %v1869 = vpack.c.b16 %v1846, %v1845
      %v1870 = vpack.c.b16 %v1848, %v1847
      %v1871 = vpack.c.b16 %v1850, %v1849
      %v1872 = vpack.c.b16 %v1852, %v1851
      %v1873 = vpack.c.b16 %v1854, %v1853
      %v1874 = vpack.c.b16 %v1856, %v1855
      %v1875 = vpack.c.b16 %v1858, %v1857
      %v1876 = vpack.c.b16 %v1860, %v1859
      %v1877 = vpack.c.b16 %v1862, %v1861
      %v1878 = vpack.c.b16 %v1864, %v1863
      %v1880 = vsel %vm616, %v1865, 0
      %v1883 = vsel %vm616, %v1866, 0
      %v1886 = vsel %vm616, %v1867, 0
      %v1889 = vsel %vm616, %v1868, 0
      %v1892 = vsel %vm616, %v1869, 0
      %v1895 = vsel %vm616, %v1870, 0
      %v1898 = vsel %vm616, %v1871, 0
      %v1901 = vsel %vm616, %v1872, 0
      %v1904 = vsel %vm616, %v1873, 0
      %v1907 = vsel %vm616, %v1874, 0
      %v1910 = vsel %vm616, %v1875, 0
      %v1913 = vsel %vm616, %v1876, 0
      %v1916 = vsel %vm616, %v1877, 0
      %v1919 = vsel %vm616, %v1878, 0
      %v1922 = vsel %vm626, %v1808, 0
      %1924 = vmatpush.bf16.msra.mxu0 0
      %1925 = vmatpush.bf16.msra.mxu0 0
      %1926 = vmatpush.bf16.msra.mxu0 0
      %1927 = vmatpush.bf16.msra.mxu0 0
      %1928 = vmatpush.bf16.msra.mxu0 0
      %1929 = vmatpush.bf16.msra.mxu0 0
      %1930 = vmatpush.bf16.msra.mxu0 0
      %1931 = vmatpush.bf16.msra.mxu0 %v1922
      %1932 = vmatmul.bf16.gmra.mxu0 %v1880
      %v1933 = vpop.f32.mrf.mxu0
      %v1934 = vadd.f32 0.0, %v1933
      %v1935 = vpop.f32.mrf.mxu0
      %v1936 = vadd.f32 0.0, %v1935
      %1937 = vmatmul.bf16.gmra.mxu0 %v1883
      %v1938 = vpop.f32.mrf.mxu0
      %v1939 = vadd.f32 0.0, %v1938
      %v1940 = vpop.f32.mrf.mxu0
      %v1941 = vadd.f32 0.0, %v1940
      %1942 = vmatmul.bf16.gmra.mxu0 %v1886
      %v1943 = vpop.f32.mrf.mxu0
      %v1944 = vadd.f32 0.0, %v1943
      %v1945 = vpop.f32.mrf.mxu0
      %v1946 = vadd.f32 0.0, %v1945
      %1947 = vmatmul.bf16.gmra.mxu0 %v1889
      %v1948 = vpop.f32.mrf.mxu0
      %v1949 = vadd.f32 0.0, %v1948
      %v1950 = vpop.f32.mrf.mxu0
      %v1951 = vadd.f32 0.0, %v1950
      %1952 = vmatmul.bf16.gmra.mxu0 %v1892
      %v1953 = vpop.f32.mrf.mxu0
      %v1954 = vadd.f32 0.0, %v1953
      %v1955 = vpop.f32.mrf.mxu0
      %v1956 = vadd.f32 0.0, %v1955
      %1957 = vmatmul.bf16.gmra.mxu0 %v1895
      %v1958 = vpop.f32.mrf.mxu0
      %v1959 = vadd.f32 0.0, %v1958
      %v1960 = vpop.f32.mrf.mxu0
      %v1961 = vadd.f32 0.0, %v1960
      %1962 = vmatmul.bf16.gmra.mxu0 %v1898
      %v1963 = vpop.f32.mrf.mxu0
      %v1964 = vadd.f32 0.0, %v1963
      %v1965 = vpop.f32.mrf.mxu0
      %v1966 = vadd.f32 0.0, %v1965
      %1967 = vmatmul.bf16.gmra.mxu0 %v1901
      %v1968 = vpop.f32.mrf.mxu0
      %v1969 = vadd.f32 0.0, %v1968
      %v1970 = vpop.f32.mrf.mxu0
      %v1971 = vadd.f32 0.0, %v1970
      %1972 = vmatmul.bf16.gmra.mxu0 %v1904
      %v1973 = vpop.f32.mrf.mxu0
      %v1974 = vadd.f32 0.0, %v1973
      %v1975 = vpop.f32.mrf.mxu0
      %v1976 = vadd.f32 0.0, %v1975
      %1977 = vmatmul.bf16.gmra.mxu0 %v1907
      %v1978 = vpop.f32.mrf.mxu0
      %v1979 = vadd.f32 0.0, %v1978
      %v1980 = vpop.f32.mrf.mxu0
      %v1981 = vadd.f32 0.0, %v1980
      %1982 = vmatmul.bf16.gmra.mxu0 %v1910
      %v1983 = vpop.f32.mrf.mxu0
      %v1984 = vadd.f32 0.0, %v1983
      %v1985 = vpop.f32.mrf.mxu0
      %v1986 = vadd.f32 0.0, %v1985
      %1987 = vmatmul.bf16.gmra.mxu0 %v1913
      %v1988 = vpop.f32.mrf.mxu0
      %v1989 = vadd.f32 0.0, %v1988
      %v1990 = vpop.f32.mrf.mxu0
      %v1991 = vadd.f32 0.0, %v1990
      %1992 = vmatmul.bf16.gmra.mxu0 %v1916
      %v1993 = vpop.f32.mrf.mxu0
      %v1994 = vadd.f32 0.0, %v1993
      %v1995 = vpop.f32.mrf.mxu0
      %v1996 = vadd.f32 0.0, %v1995
      %1997 = vmatmul.bf16.gmra.mxu0 %v1919
      %v1998 = vpop.f32.mrf.mxu0
      %v1999 = vadd.f32 0.0, %v1998
      %v2000 = vpop.f32.mrf.mxu0
      %v2001 = vadd.f32 0.0, %v2000
      %2002 = vdwg.mxu0
      %v2003 = vadd.f32 %v1751, %v1934
      %v2004 = vadd.f32 %v1752, %v1936
      %v2005 = vadd.f32 %v1753, %v1939
      %v2006 = vadd.f32 %v1754, %v1941
      %v2007 = vadd.f32 %v1755, %v1944
      %v2008 = vadd.f32 %v1756, %v1946
      %v2009 = vadd.f32 %v1757, %v1949
      %v2010 = vadd.f32 %v1758, %v1951
      %v2011 = vadd.f32 %v1759, %v1954
      %v2012 = vadd.f32 %v1760, %v1956
      %v2013 = vadd.f32 %v1761, %v1959
      %v2014 = vadd.f32 %v1762, %v1961
      %v2015 = vadd.f32 %v1763, %v1964
      %v2016 = vadd.f32 %v1764, %v1966
      %v2017 = vadd.f32 %v1765, %v1969
      %v2018 = vadd.f32 %v1766, %v1971
      %v2019 = vadd.f32 %v1767, %v1974
      %v2020 = vadd.f32 %v1768, %v1976
      %v2021 = vadd.f32 %v1769, %v1979
      %v2022 = vadd.f32 %v1770, %v1981
      %v2023 = vadd.f32 %v1771, %v1984
      %v2024 = vadd.f32 %v1772, %v1986
      %v2025 = vadd.f32 %v1773, %v1989
      %v2026 = vadd.f32 %v1774, %v1991
      %v2027 = vadd.f32 %v1775, %v1994
      %v2028 = vadd.f32 %v1776, %v1996
      %v2029 = vadd.f32 %v1777, %v1999
      %v2030 = vadd.f32 %v1778, %v2001
      %v2031 = vld [vmem:[%s524 + $0x74] sm:$0xf]
      %s2032 = scalar_lea.vmem %s537, 16
      %v2033 = vld [vmem:[%s2032] sm:$0xf]
      %v2035 = vunpack.c.l.b16 %v2031
      %v2036 = vpack.c.b16 %v2035, %v1863
      %v2037 = vshrl.u32 %v1865, 16
      %v2039 = vshll.u32 %v1865, 16
      %v2041 = vrot.slane %v2039, 1
      %v2042 = vor.u32 %v2037, %v2041
      %v2043 = vshll.u32 %v1866, 16
      %v2045 = vrot.slane %v2043, 1
      %v2046 = vsel %vm592, %v2042, %v2045
      %v2047 = vshrl.u32 %v1866, 16
      %v2049 = vor.u32 %v2047, %v2045
      %v2050 = vshll.u32 %v1867, 16
      %v2052 = vrot.slane %v2050, 1
      %v2053 = vsel %vm592, %v2049, %v2052
      %v2054 = vshrl.u32 %v1867, 16
      %v2056 = vor.u32 %v2054, %v2052
      %v2057 = vshll.u32 %v1868, 16
      %v2059 = vrot.slane %v2057, 1
      %v2060 = vsel %vm592, %v2056, %v2059
      %v2061 = vshrl.u32 %v1868, 16
      %v2063 = vor.u32 %v2061, %v2059
      %v2064 = vshll.u32 %v1869, 16
      %v2066 = vrot.slane %v2064, 1
      %v2067 = vsel %vm592, %v2063, %v2066
      %v2068 = vshrl.u32 %v1869, 16
      %v2070 = vor.u32 %v2068, %v2066
      %v2071 = vshll.u32 %v1870, 16
      %v2073 = vrot.slane %v2071, 1
      %v2074 = vsel %vm592, %v2070, %v2073
      %v2075 = vshrl.u32 %v1870, 16
      %v2077 = vor.u32 %v2075, %v2073
      %v2078 = vshll.u32 %v1871, 16
      %v2080 = vrot.slane %v2078, 1
      %v2081 = vsel %vm592, %v2077, %v2080
      %v2082 = vshrl.u32 %v1871, 16
      %v2084 = vor.u32 %v2082, %v2080
      %v2085 = vshll.u32 %v1872, 16
      %v2087 = vrot.slane %v2085, 1
      %v2088 = vsel %vm592, %v2084, %v2087
      %v2089 = vshrl.u32 %v1872, 16
      %v2091 = vor.u32 %v2089, %v2087
      %v2092 = vshll.u32 %v1873, 16
      %v2094 = vrot.slane %v2092, 1
      %v2095 = vsel %vm592, %v2091, %v2094
      %v2096 = vshrl.u32 %v1873, 16
      %v2098 = vor.u32 %v2096, %v2094
      %v2099 = vshll.u32 %v1874, 16
      %v2101 = vrot.slane %v2099, 1
      %v2102 = vsel %vm592, %v2098, %v2101
      %v2103 = vshrl.u32 %v1874, 16
      %v2105 = vor.u32 %v2103, %v2101
      %v2106 = vshll.u32 %v1875, 16
      %v2108 = vrot.slane %v2106, 1
      %v2109 = vsel %vm592, %v2105, %v2108
      %v2110 = vshrl.u32 %v1875, 16
      %v2112 = vor.u32 %v2110, %v2108
      %v2113 = vshll.u32 %v1876, 16
      %v2115 = vrot.slane %v2113, 1
      %v2116 = vsel %vm592, %v2112, %v2115
      %v2117 = vshrl.u32 %v1876, 16
      %v2119 = vor.u32 %v2117, %v2115
      %v2120 = vshll.u32 %v1877, 16
      %v2122 = vrot.slane %v2120, 1
      %v2123 = vsel %vm592, %v2119, %v2122
      %v2124 = vshrl.u32 %v1877, 16
      %v2126 = vor.u32 %v2124, %v2122
      %v2128 = vshll.u32 %v2036, 16
      %v2130 = vrot.slane %v2128, 1
      %v2131 = vsel %vm592, %v2126, %v2130
      %v2132 = vshrl.u32 %v2036, 16
      %v2134 = vor.u32 %v2132, %v2130
      %v2136 = vsel %vm616, %v2046, 0
      %v2139 = vsel %vm616, %v2053, 0
      %v2142 = vsel %vm616, %v2060, 0
      %v2145 = vsel %vm616, %v2067, 0
      %v2148 = vsel %vm616, %v2074, 0
      %v2151 = vsel %vm616, %v2081, 0
      %v2154 = vsel %vm616, %v2088, 0
      %v2157 = vsel %vm616, %v2095, 0
      %v2160 = vsel %vm616, %v2102, 0
      %v2163 = vsel %vm616, %v2109, 0
      %v2166 = vsel %vm616, %v2116, 0
      %v2169 = vsel %vm616, %v2123, 0
      %v2172 = vsel %vm616, %v2131, 0
      %v2175 = vsel %vm616, %v2134, 0
      %v2178 = vsel %vm626, %v2033, 0
      %2180 = vmatpush.bf16.msra.mxu0 0
      %2181 = vmatpush.bf16.msra.mxu0 0
      %2182 = vmatpush.bf16.msra.mxu0 0
      %2183 = vmatpush.bf16.msra.mxu0 0
      %2184 = vmatpush.bf16.msra.mxu0 0
      %2185 = vmatpush.bf16.msra.mxu0 0
      %2186 = vmatpush.bf16.msra.mxu0 0
      %2187 = vmatpush.bf16.msra.mxu0 %v2178
      %2188 = vmatmul.bf16.gmra.mxu0 %v2136
      %v2189 = vpop.f32.mrf.mxu0
      %v2190 = vadd.f32 0.0, %v2189
      %v2191 = vpop.f32.mrf.mxu0
      %v2192 = vadd.f32 0.0, %v2191
      %2193 = vmatmul.bf16.gmra.mxu0 %v2139
      %v2194 = vpop.f32.mrf.mxu0
      %v2195 = vadd.f32 0.0, %v2194
      %v2196 = vpop.f32.mrf.mxu0
      %v2197 = vadd.f32 0.0, %v2196
      %2198 = vmatmul.bf16.gmra.mxu0 %v2142
      %v2199 = vpop.f32.mrf.mxu0
      %v2200 = vadd.f32 0.0, %v2199
      %v2201 = vpop.f32.mrf.mxu0
      %v2202 = vadd.f32 0.0, %v2201
      %2203 = vmatmul.bf16.gmra.mxu0 %v2145
      %v2204 = vpop.f32.mrf.mxu0
      %v2205 = vadd.f32 0.0, %v2204
      %v2206 = vpop.f32.mrf.mxu0
      %v2207 = vadd.f32 0.0, %v2206
      %2208 = vmatmul.bf16.gmra.mxu0 %v2148
      %v2209 = vpop.f32.mrf.mxu0
      %v2210 = vadd.f32 0.0, %v2209
      %v2211 = vpop.f32.mrf.mxu0
      %v2212 = vadd.f32 0.0, %v2211
      %2213 = vmatmul.bf16.gmra.mxu0 %v2151
      %v2214 = vpop.f32.mrf.mxu0
      %v2215 = vadd.f32 0.0, %v2214
      %v2216 = vpop.f32.mrf.mxu0
      %v2217 = vadd.f32 0.0, %v2216
      %2218 = vmatmul.bf16.gmra.mxu0 %v2154
      %v2219 = vpop.f32.mrf.mxu0
      %v2220 = vadd.f32 0.0, %v2219
      %v2221 = vpop.f32.mrf.mxu0
      %v2222 = vadd.f32 0.0, %v2221
      %2223 = vmatmul.bf16.gmra.mxu0 %v2157
      %v2224 = vpop.f32.mrf.mxu0
      %v2225 = vadd.f32 0.0, %v2224
      %v2226 = vpop.f32.mrf.mxu0
      %v2227 = vadd.f32 0.0, %v2226
      %2228 = vmatmul.bf16.gmra.mxu0 %v2160
      %v2229 = vpop.f32.mrf.mxu0
      %v2230 = vadd.f32 0.0, %v2229
      %v2231 = vpop.f32.mrf.mxu0
      %v2232 = vadd.f32 0.0, %v2231
      %2233 = vmatmul.bf16.gmra.mxu0 %v2163
      %v2234 = vpop.f32.mrf.mxu0
      %v2235 = vadd.f32 0.0, %v2234
      %v2236 = vpop.f32.mrf.mxu0
      %v2237 = vadd.f32 0.0, %v2236
      %2238 = vmatmul.bf16.gmra.mxu0 %v2166
      %v2239 = vpop.f32.mrf.mxu0
      %v2240 = vadd.f32 0.0, %v2239
      %v2241 = vpop.f32.mrf.mxu0
      %v2242 = vadd.f32 0.0, %v2241
      %2243 = vmatmul.bf16.gmra.mxu0 %v2169
      %v2244 = vpop.f32.mrf.mxu0
      %v2245 = vadd.f32 0.0, %v2244
      %v2246 = vpop.f32.mrf.mxu0
      %v2247 = vadd.f32 0.0, %v2246
      %2248 = vmatmul.bf16.gmra.mxu0 %v2172
      %v2249 = vpop.f32.mrf.mxu0
      %v2250 = vadd.f32 0.0, %v2249
      %v2251 = vpop.f32.mrf.mxu0
      %v2252 = vadd.f32 0.0, %v2251
      %2253 = vmatmul.bf16.gmra.mxu0 %v2175
      %v2254 = vpop.f32.mrf.mxu0
      %v2255 = vadd.f32 0.0, %v2254
      %v2256 = vpop.f32.mrf.mxu0
      %v2257 = vadd.f32 0.0, %v2256
      %2258 = vdwg.mxu0
      %v2259 = vadd.f32 %v2003, %v2190
      %v2260 = vadd.f32 %v2004, %v2192
      %v2261 = vadd.f32 %v2005, %v2195
      %v2262 = vadd.f32 %v2006, %v2197
      %v2263 = vadd.f32 %v2007, %v2200
      %v2264 = vadd.f32 %v2008, %v2202
      %v2265 = vadd.f32 %v2009, %v2205
      %v2266 = vadd.f32 %v2010, %v2207
      %v2267 = vadd.f32 %v2011, %v2210
      %v2268 = vadd.f32 %v2012, %v2212
      %v2269 = vadd.f32 %v2013, %v2215
      %v2270 = vadd.f32 %v2014, %v2217
      %v2271 = vadd.f32 %v2015, %v2220
      %v2272 = vadd.f32 %v2016, %v2222
      %v2273 = vadd.f32 %v2017, %v2225
      %v2274 = vadd.f32 %v2018, %v2227
      %v2275 = vadd.f32 %v2019, %v2230
      %v2276 = vadd.f32 %v2020, %v2232
      %v2277 = vadd.f32 %v2021, %v2235
      %v2278 = vadd.f32 %v2022, %v2237
      %v2279 = vadd.f32 %v2023, %v2240
      %v2280 = vadd.f32 %v2024, %v2242
      %v2281 = vadd.f32 %v2025, %v2245
      %v2282 = vadd.f32 %v2026, %v2247
      %v2283 = vadd.f32 %v2027, %v2250
      %v2284 = vadd.f32 %v2028, %v2252
      %v2285 = vadd.f32 %v2029, %v2255
      %v2286 = vadd.f32 %v2030, %v2257
      %v2287 = vld [vmem:[%s524 + $0x8] sm:$0xe]
      %s2288 = scalar_lea.vmem %s537, 20
      %v2289 = vld [vmem:[%s2288] sm:$0xf]
      %v2291 = vunpack.c.l.b16 %v2287
      %v2292 = vpack.c.b16 %v1838, %v2291
      %v2293 = vrot.slane %v2292, 1
      %v2294 = vrot.slane %v1866, 1
      %v2295 = vsel %vm697, %v2293, %v2294
      %v2296 = vrot.slane %v1867, 1
      %v2297 = vsel %vm697, %v2294, %v2296
      %v2298 = vrot.slane %v1868, 1
      %v2299 = vsel %vm697, %v2296, %v2298
      %v2300 = vrot.slane %v1869, 1
      %v2301 = vsel %vm697, %v2298, %v2300
      %v2302 = vrot.slane %v1870, 1
      %v2303 = vsel %vm697, %v2300, %v2302
      %v2304 = vrot.slane %v1871, 1
      %v2305 = vsel %vm697, %v2302, %v2304
      %v2306 = vrot.slane %v1872, 1
      %v2307 = vsel %vm697, %v2304, %v2306
      %v2308 = vrot.slane %v1873, 1
      %v2309 = vsel %vm697, %v2306, %v2308
      %v2310 = vrot.slane %v1874, 1
      %v2311 = vsel %vm697, %v2308, %v2310
      %v2312 = vrot.slane %v1875, 1
      %v2313 = vsel %vm697, %v2310, %v2312
      %v2314 = vrot.slane %v1876, 1
      %v2315 = vsel %vm697, %v2312, %v2314
      %v2316 = vrot.slane %v1877, 1
      %v2317 = vsel %vm697, %v2314, %v2316
      %v2318 = vrot.slane %v2036, 1
      %v2319 = vsel %vm697, %v2316, %v2318
      %v2321 = vsel %vm616, %v2295, 0
      %v2324 = vsel %vm616, %v2297, 0
      %v2327 = vsel %vm616, %v2299, 0
      %v2330 = vsel %vm616, %v2301, 0
      %v2333 = vsel %vm616, %v2303, 0
      %v2336 = vsel %vm616, %v2305, 0
      %v2339 = vsel %vm616, %v2307, 0
      %v2342 = vsel %vm616, %v2309, 0
      %v2345 = vsel %vm616, %v2311, 0
      %v2348 = vsel %vm616, %v2313, 0
      %v2351 = vsel %vm616, %v2315, 0
      %v2354 = vsel %vm616, %v2317, 0
      %v2357 = vsel %vm616, %v2319, 0
      %v2360 = vsel %vm616, %v2318, 0
      %v2363 = vsel %vm626, %v2289, 0
      %2365 = vmatpush.bf16.msra.mxu0 0
      %2366 = vmatpush.bf16.msra.mxu0 0
      %2367 = vmatpush.bf16.msra.mxu0 0
      %2368 = vmatpush.bf16.msra.mxu0 0
      %2369 = vmatpush.bf16.msra.mxu0 0
      %2370 = vmatpush.bf16.msra.mxu0 0
      %2371 = vmatpush.bf16.msra.mxu0 0
      %2372 = vmatpush.bf16.msra.mxu0 %v2363
      %2373 = vmatmul.bf16.gmra.mxu0 %v2321
      %v2374 = vpop.f32.mrf.mxu0
      %v2375 = vadd.f32 0.0, %v2374
      %v2376 = vpop.f32.mrf.mxu0
      %v2377 = vadd.f32 0.0, %v2376
      %2378 = vmatmul.bf16.gmra.mxu0 %v2324
      %v2379 = vpop.f32.mrf.mxu0
      %v2380 = vadd.f32 0.0, %v2379
      %v2381 = vpop.f32.mrf.mxu0
      %v2382 = vadd.f32 0.0, %v2381
      %2383 = vmatmul.bf16.gmra.mxu0 %v2327
      %v2384 = vpop.f32.mrf.mxu0
      %v2385 = vadd.f32 0.0, %v2384
      %v2386 = vpop.f32.mrf.mxu0
      %v2387 = vadd.f32 0.0, %v2386
      %2388 = vmatmul.bf16.gmra.mxu0 %v2330
      %v2389 = vpop.f32.mrf.mxu0
      %v2390 = vadd.f32 0.0, %v2389
      %v2391 = vpop.f32.mrf.mxu0
      %v2392 = vadd.f32 0.0, %v2391
      %2393 = vmatmul.bf16.gmra.mxu0 %v2333
      %v2394 = vpop.f32.mrf.mxu0
      %v2395 = vadd.f32 0.0, %v2394
      %v2396 = vpop.f32.mrf.mxu0
      %v2397 = vadd.f32 0.0, %v2396
      %2398 = vmatmul.bf16.gmra.mxu0 %v2336
      %v2399 = vpop.f32.mrf.mxu0
      %v2400 = vadd.f32 0.0, %v2399
      %v2401 = vpop.f32.mrf.mxu0
      %v2402 = vadd.f32 0.0, %v2401
      %2403 = vmatmul.bf16.gmra.mxu0 %v2339
      %v2404 = vpop.f32.mrf.mxu0
      %v2405 = vadd.f32 0.0, %v2404
      %v2406 = vpop.f32.mrf.mxu0
      %v2407 = vadd.f32 0.0, %v2406
      %2408 = vmatmul.bf16.gmra.mxu0 %v2342
      %v2409 = vpop.f32.mrf.mxu0
      %v2410 = vadd.f32 0.0, %v2409
      %v2411 = vpop.f32.mrf.mxu0
      %v2412 = vadd.f32 0.0, %v2411
      %2413 = vmatmul.bf16.gmra.mxu0 %v2345
      %v2414 = vpop.f32.mrf.mxu0
      %v2415 = vadd.f32 0.0, %v2414
      %v2416 = vpop.f32.mrf.mxu0
      %v2417 = vadd.f32 0.0, %v2416
      %2418 = vmatmul.bf16.gmra.mxu0 %v2348
      %v2419 = vpop.f32.mrf.mxu0
      %v2420 = vadd.f32 0.0, %v2419
      %v2421 = vpop.f32.mrf.mxu0
      %v2422 = vadd.f32 0.0, %v2421
      %2423 = vmatmul.bf16.gmra.mxu0 %v2351
      %v2424 = vpop.f32.mrf.mxu0
      %v2425 = vadd.f32 0.0, %v2424
      %v2426 = vpop.f32.mrf.mxu0
      %v2427 = vadd.f32 0.0, %v2426
      %2428 = vmatmul.bf16.gmra.mxu0 %v2354
      %v2429 = vpop.f32.mrf.mxu0
      %v2430 = vadd.f32 0.0, %v2429
      %v2431 = vpop.f32.mrf.mxu0
      %v2432 = vadd.f32 0.0, %v2431
      %2433 = vmatmul.bf16.gmra.mxu0 %v2357
      %v2434 = vpop.f32.mrf.mxu0
      %v2435 = vadd.f32 0.0, %v2434
      %v2436 = vpop.f32.mrf.mxu0
      %v2437 = vadd.f32 0.0, %v2436
      %2438 = vmatmul.bf16.gmra.mxu0 %v2360
      %v2439 = vpop.f32.mrf.mxu0
      %v2440 = vadd.f32 0.0, %v2439
      %v2441 = vpop.f32.mrf.mxu0
      %v2442 = vadd.f32 0.0, %v2441
      %2443 = vdwg.mxu0
      %v2444 = vadd.f32 %v2259, %v2375
      %v2445 = vadd.f32 %v2260, %v2377
      %v2446 = vadd.f32 %v2261, %v2380
      %v2447 = vadd.f32 %v2262, %v2382
      %v2448 = vadd.f32 %v2263, %v2385
      %v2449 = vadd.f32 %v2264, %v2387
      %v2450 = vadd.f32 %v2265, %v2390
      %v2451 = vadd.f32 %v2266, %v2392
      %v2452 = vadd.f32 %v2267, %v2395
      %v2453 = vadd.f32 %v2268, %v2397
      %v2454 = vadd.f32 %v2269, %v2400
      %v2455 = vadd.f32 %v2270, %v2402
      %v2456 = vadd.f32 %v2271, %v2405
      %v2457 = vadd.f32 %v2272, %v2407
      %v2458 = vadd.f32 %v2273, %v2410
      %v2459 = vadd.f32 %v2274, %v2412
      %v2460 = vadd.f32 %v2275, %v2415
      %v2461 = vadd.f32 %v2276, %v2417
      %v2462 = vadd.f32 %v2277, %v2420
      %v2463 = vadd.f32 %v2278, %v2422
      %v2464 = vadd.f32 %v2279, %v2425
      %v2465 = vadd.f32 %v2280, %v2427
      %v2466 = vadd.f32 %v2281, %v2430
      %v2467 = vadd.f32 %v2282, %v2432
      %v2468 = vadd.f32 %v2283, %v2435
      %v2469 = vadd.f32 %v2284, %v2437
      %v2470 = vadd.f32 %v2285, %v2440
      %v2471 = vadd.f32 %v2286, %v2442
      %v2472 = vld [vmem:[%s524 + $0x10] sm:$0xf]
      %v2473 = vld [vmem:[%s524 + $0x14] sm:$0xf]
      %v2474 = vld [vmem:[%s524 + $0x18] sm:$0xf]
      %v2475 = vld [vmem:[%s524 + $0x1c] sm:$0xf]
      %v2476 = vld [vmem:[%s524 + $0x20] sm:$0xf]
      %v2477 = vld [vmem:[%s524 + $0x24] sm:$0xf]
      %v2478 = vld [vmem:[%s524 + $0x28] sm:$0xf]
      %v2479 = vld [vmem:[%s524 + $0x2c] sm:$0xf]
      %v2480 = vld [vmem:[%s524 + $0x30] sm:$0xf]
      %v2481 = vld [vmem:[%s524 + $0x34] sm:$0xf]
      %v2482 = vld [vmem:[%s524 + $0x38] sm:$0xf]
      %v2483 = vld [vmem:[%s524 + $0x3c] sm:$0xf]
      %v2484 = vld [vmem:[%s524 + $0x40] sm:$0xf]
      %v2485 = vld [vmem:[%s524 + $0x44] sm:$0xf]
      %v2486 = vld [vmem:[%s524 + $0x48] sm:$0xf]
      %v2487 = vld [vmem:[%s524 + $0x4c] sm:$0xf]
      %v2488 = vld [vmem:[%s524 + $0x50] sm:$0xf]
      %v2489 = vld [vmem:[%s524 + $0x54] sm:$0xf]
      %v2490 = vld [vmem:[%s524 + $0x58] sm:$0xf]
      %v2491 = vld [vmem:[%s524 + $0x5c] sm:$0xf]
      %v2492 = vld [vmem:[%s524 + $0x60] sm:$0xf]
      %v2493 = vld [vmem:[%s524 + $0x64] sm:$0xf]
      %v2494 = vld [vmem:[%s524 + $0x68] sm:$0xf]
      %v2495 = vld [vmem:[%s524 + $0x6c] sm:$0xf]
      %v2496 = vld [vmem:[%s524 + $0x70] sm:$0xf]
      %v2497 = vld [vmem:[%s524 + $0x74] sm:$0xf]
      %v2498 = vld [vmem:[%s524 + $0x78] sm:$0xf]
      %v2499 = vld [vmem:[%s524 + $0x7c] sm:$0x7]
      %s2500 = scalar_lea.vmem %s537, 24
      %v2501 = vld [vmem:[%s2500] sm:$0xf]
      %v2530 = vunpack.c.l.b16 %v2472
      %v2531 = vunpack.c.l.b16 %v2473
      %v2532 = vunpack.c.l.b16 %v2474
      %v2533 = vunpack.c.l.b16 %v2475
      %v2534 = vunpack.c.l.b16 %v2476
      %v2535 = vunpack.c.l.b16 %v2477
      %v2536 = vunpack.c.l.b16 %v2478
      %v2537 = vunpack.c.l.b16 %v2479
      %v2538 = vunpack.c.l.b16 %v2480
      %v2539 = vunpack.c.l.b16 %v2481
      %v2540 = vunpack.c.l.b16 %v2482
      %v2541 = vunpack.c.l.b16 %v2483
      %v2542 = vunpack.c.l.b16 %v2484
      %v2543 = vunpack.c.l.b16 %v2485
      %v2544 = vunpack.c.l.b16 %v2486
      %v2545 = vunpack.c.l.b16 %v2487
      %v2546 = vunpack.c.l.b16 %v2488
      %v2547 = vunpack.c.l.b16 %v2489
      %v2548 = vunpack.c.l.b16 %v2490
      %v2549 = vunpack.c.l.b16 %v2491
      %v2550 = vunpack.c.l.b16 %v2492
      %v2551 = vunpack.c.l.b16 %v2493
      %v2552 = vunpack.c.l.b16 %v2494
      %v2553 = vunpack.c.l.b16 %v2495
      %v2554 = vunpack.c.l.b16 %v2496
      %v2555 = vunpack.c.l.b16 %v2497
      %v2556 = vunpack.c.l.b16 %v2498
      %v2557 = vunpack.c.l.b16 %v2499
      %v2558 = vpack.c.b16 %v2531, %v2530
      %v2559 = vpack.c.b16 %v2533, %v2532
      %v2560 = vpack.c.b16 %v2535, %v2534
      %v2561 = vpack.c.b16 %v2537, %v2536
      %v2562 = vpack.c.b16 %v2539, %v2538
      %v2563 = vpack.c.b16 %v2541, %v2540
      %v2564 = vpack.c.b16 %v2543, %v2542
      %v2565 = vpack.c.b16 %v2545, %v2544
      %v2566 = vpack.c.b16 %v2547, %v2546
      %v2567 = vpack.c.b16 %v2549, %v2548
      %v2568 = vpack.c.b16 %v2551, %v2550
      %v2569 = vpack.c.b16 %v2553, %v2552
      %v2570 = vpack.c.b16 %v2555, %v2554
      %v2571 = vpack.c.b16 %v2557, %v2556
      %v2573 = vsel %vm616, %v2558, 0
      %v2576 = vsel %vm616, %v2559, 0
      %v2579 = vsel %vm616, %v2560, 0
      %v2582 = vsel %vm616, %v2561, 0
      %v2585 = vsel %vm616, %v2562, 0
      %v2588 = vsel %vm616, %v2563, 0
      %v2591 = vsel %vm616, %v2564, 0
      %v2594 = vsel %vm616, %v2565, 0
      %v2597 = vsel %vm616, %v2566, 0
      %v2600 = vsel %vm616, %v2567, 0
      %v2603 = vsel %vm616, %v2568, 0
      %v2606 = vsel %vm616, %v2569, 0
      %v2609 = vsel %vm616, %v2570, 0
      %v2612 = vsel %vm616, %v2571, 0
      %v2615 = vsel %vm626, %v2501, 0
      %2617 = vmatpush.bf16.msra.mxu0 0
      %2618 = vmatpush.bf16.msra.mxu0 0
      %2619 = vmatpush.bf16.msra.mxu0 0
      %2620 = vmatpush.bf16.msra.mxu0 0
      %2621 = vmatpush.bf16.msra.mxu0 0
      %2622 = vmatpush.bf16.msra.mxu0 0
      %2623 = vmatpush.bf16.msra.mxu0 0
      %2624 = vmatpush.bf16.msra.mxu0 %v2615
      %2625 = vmatmul.bf16.gmra.mxu0 %v2573
      %v2626 = vpop.f32.mrf.mxu0
      %v2627 = vadd.f32 0.0, %v2626
      %v2628 = vpop.f32.mrf.mxu0
      %v2629 = vadd.f32 0.0, %v2628
      %2630 = vmatmul.bf16.gmra.mxu0 %v2576
      %v2631 = vpop.f32.mrf.mxu0
      %v2632 = vadd.f32 0.0, %v2631
      %v2633 = vpop.f32.mrf.mxu0
      %v2634 = vadd.f32 0.0, %v2633
      %2635 = vmatmul.bf16.gmra.mxu0 %v2579
      %v2636 = vpop.f32.mrf.mxu0
      %v2637 = vadd.f32 0.0, %v2636
      %v2638 = vpop.f32.mrf.mxu0
      %v2639 = vadd.f32 0.0, %v2638
      %2640 = vmatmul.bf16.gmra.mxu0 %v2582
      %v2641 = vpop.f32.mrf.mxu0
      %v2642 = vadd.f32 0.0, %v2641
      %v2643 = vpop.f32.mrf.mxu0
      %v2644 = vadd.f32 0.0, %v2643
      %2645 = vmatmul.bf16.gmra.mxu0 %v2585
      %v2646 = vpop.f32.mrf.mxu0
      %v2647 = vadd.f32 0.0, %v2646
      %v2648 = vpop.f32.mrf.mxu0
      %v2649 = vadd.f32 0.0, %v2648
      %2650 = vmatmul.bf16.gmra.mxu0 %v2588
      %v2651 = vpop.f32.mrf.mxu0
      %v2652 = vadd.f32 0.0, %v2651
      %v2653 = vpop.f32.mrf.mxu0
      %v2654 = vadd.f32 0.0, %v2653
      %2655 = vmatmul.bf16.gmra.mxu0 %v2591
      %v2656 = vpop.f32.mrf.mxu0
      %v2657 = vadd.f32 0.0, %v2656
      %v2658 = vpop.f32.mrf.mxu0
      %v2659 = vadd.f32 0.0, %v2658
      %2660 = vmatmul.bf16.gmra.mxu0 %v2594
      %v2661 = vpop.f32.mrf.mxu0
      %v2662 = vadd.f32 0.0, %v2661
      %v2663 = vpop.f32.mrf.mxu0
      %v2664 = vadd.f32 0.0, %v2663
      %2665 = vmatmul.bf16.gmra.mxu0 %v2597
      %v2666 = vpop.f32.mrf.mxu0
      %v2667 = vadd.f32 0.0, %v2666
      %v2668 = vpop.f32.mrf.mxu0
      %v2669 = vadd.f32 0.0, %v2668
      %2670 = vmatmul.bf16.gmra.mxu0 %v2600
      %v2671 = vpop.f32.mrf.mxu0
      %v2672 = vadd.f32 0.0, %v2671
      %v2673 = vpop.f32.mrf.mxu0
      %v2674 = vadd.f32 0.0, %v2673
      %2675 = vmatmul.bf16.gmra.mxu0 %v2603
      %v2676 = vpop.f32.mrf.mxu0
      %v2677 = vadd.f32 0.0, %v2676
      %v2678 = vpop.f32.mrf.mxu0
      %v2679 = vadd.f32 0.0, %v2678
      %2680 = vmatmul.bf16.gmra.mxu0 %v2606
      %v2681 = vpop.f32.mrf.mxu0
      %v2682 = vadd.f32 0.0, %v2681
      %v2683 = vpop.f32.mrf.mxu0
      %v2684 = vadd.f32 0.0, %v2683
      %2685 = vmatmul.bf16.gmra.mxu0 %v2609
      %v2686 = vpop.f32.mrf.mxu0
      %v2687 = vadd.f32 0.0, %v2686
      %v2688 = vpop.f32.mrf.mxu0
      %v2689 = vadd.f32 0.0, %v2688
      %2690 = vmatmul.bf16.gmra.mxu0 %v2612
      %v2691 = vpop.f32.mrf.mxu0
      %v2692 = vadd.f32 0.0, %v2691
      %v2693 = vpop.f32.mrf.mxu0
      %v2694 = vadd.f32 0.0, %v2693
      %2695 = vdwg.mxu0
      %v2696 = vadd.f32 %v2444, %v2627
      %v2697 = vadd.f32 %v2445, %v2629
      %v2698 = vadd.f32 %v2446, %v2632
      %v2699 = vadd.f32 %v2447, %v2634
      %v2700 = vadd.f32 %v2448, %v2637
      %v2701 = vadd.f32 %v2449, %v2639
      %v2702 = vadd.f32 %v2450, %v2642
      %v2703 = vadd.f32 %v2451, %v2644
      %v2704 = vadd.f32 %v2452, %v2647
      %v2705 = vadd.f32 %v2453, %v2649
      %v2706 = vadd.f32 %v2454, %v2652
      %v2707 = vadd.f32 %v2455, %v2654
      %v2708 = vadd.f32 %v2456, %v2657
      %v2709 = vadd.f32 %v2457, %v2659
      %v2710 = vadd.f32 %v2458, %v2662
      %v2711 = vadd.f32 %v2459, %v2664
      %v2712 = vadd.f32 %v2460, %v2667
      %v2713 = vadd.f32 %v2461, %v2669
      %v2714 = vadd.f32 %v2462, %v2672
      %v2715 = vadd.f32 %v2463, %v2674
      %v2716 = vadd.f32 %v2464, %v2677
      %v2717 = vadd.f32 %v2465, %v2679
      %v2718 = vadd.f32 %v2466, %v2682
      %v2719 = vadd.f32 %v2467, %v2684
      %v2720 = vadd.f32 %v2468, %v2687
      %v2721 = vadd.f32 %v2469, %v2689
      %v2722 = vadd.f32 %v2470, %v2692
      %v2723 = vadd.f32 %v2471, %v2694
      %v2724 = vld [vmem:[%s524 + $0x7c] sm:$0xf]
      %s2725 = scalar_lea.vmem %s537, 28
      %v2726 = vld [vmem:[%s2725] sm:$0xf]
      %v2728 = vunpack.c.l.b16 %v2724
      %v2729 = vpack.c.b16 %v2728, %v2556
      %v2730 = vshrl.u32 %v2558, 16
      %v2732 = vshll.u32 %v2558, 16
      %v2734 = vrot.slane %v2732, 1
      %v2735 = vor.u32 %v2730, %v2734
      %v2736 = vshll.u32 %v2559, 16
      %v2738 = vrot.slane %v2736, 1
      %v2739 = vsel %vm592, %v2735, %v2738
      %v2740 = vshrl.u32 %v2559, 16
      %v2742 = vor.u32 %v2740, %v2738
      %v2743 = vshll.u32 %v2560, 16
      %v2745 = vrot.slane %v2743, 1
      %v2746 = vsel %vm592, %v2742, %v2745
      %v2747 = vshrl.u32 %v2560, 16
      %v2749 = vor.u32 %v2747, %v2745
      %v2750 = vshll.u32 %v2561, 16
      %v2752 = vrot.slane %v2750, 1
      %v2753 = vsel %vm592, %v2749, %v2752
      %v2754 = vshrl.u32 %v2561, 16
      %v2756 = vor.u32 %v2754, %v2752
      %v2757 = vshll.u32 %v2562, 16
      %v2759 = vrot.slane %v2757, 1
      %v2760 = vsel %vm592, %v2756, %v2759
      %v2761 = vshrl.u32 %v2562, 16
      %v2763 = vor.u32 %v2761, %v2759
      %v2764 = vshll.u32 %v2563, 16
      %v2766 = vrot.slane %v2764, 1
      %v2767 = vsel %vm592, %v2763, %v2766
      %v2768 = vshrl.u32 %v2563, 16
      %v2770 = vor.u32 %v2768, %v2766
      %v2771 = vshll.u32 %v2564, 16
      %v2773 = vrot.slane %v2771, 1
      %v2774 = vsel %vm592, %v2770, %v2773
      %v2775 = vshrl.u32 %v2564, 16
      %v2777 = vor.u32 %v2775, %v2773
      %v2778 = vshll.u32 %v2565, 16
      %v2780 = vrot.slane %v2778, 1
      %v2781 = vsel %vm592, %v2777, %v2780
      %v2782 = vshrl.u32 %v2565, 16
      %v2784 = vor.u32 %v2782, %v2780
      %v2785 = vshll.u32 %v2566, 16
      %v2787 = vrot.slane %v2785, 1
      %v2788 = vsel %vm592, %v2784, %v2787
      %v2789 = vshrl.u32 %v2566, 16
      %v2791 = vor.u32 %v2789, %v2787
      %v2792 = vshll.u32 %v2567, 16
      %v2794 = vrot.slane %v2792, 1
      %v2795 = vsel %vm592, %v2791, %v2794
      %v2796 = vshrl.u32 %v2567, 16
      %v2798 = vor.u32 %v2796, %v2794
      %v2799 = vshll.u32 %v2568, 16
      %v2801 = vrot.slane %v2799, 1
      %v2802 = vsel %vm592, %v2798, %v2801
      %v2803 = vshrl.u32 %v2568, 16
      %v2805 = vor.u32 %v2803, %v2801
      %v2806 = vshll.u32 %v2569, 16
      %v2808 = vrot.slane %v2806, 1
      %v2809 = vsel %vm592, %v2805, %v2808
      %v2810 = vshrl.u32 %v2569, 16
      %v2812 = vor.u32 %v2810, %v2808
      %v2813 = vshll.u32 %v2570, 16
      %v2815 = vrot.slane %v2813, 1
      %v2816 = vsel %vm592, %v2812, %v2815
      %v2817 = vshrl.u32 %v2570, 16
      %v2819 = vor.u32 %v2817, %v2815
      %v2821 = vshll.u32 %v2729, 16
      %v2823 = vrot.slane %v2821, 1
      %v2824 = vsel %vm592, %v2819, %v2823
      %v2825 = vshrl.u32 %v2729, 16
      %v2827 = vor.u32 %v2825, %v2823
      %v2829 = vsel %vm616, %v2739, 0
      %v2832 = vsel %vm616, %v2746, 0
      %v2835 = vsel %vm616, %v2753, 0
      %v2838 = vsel %vm616, %v2760, 0
      %v2841 = vsel %vm616, %v2767, 0
      %v2844 = vsel %vm616, %v2774, 0
      %v2847 = vsel %vm616, %v2781, 0
      %v2850 = vsel %vm616, %v2788, 0
      %v2853 = vsel %vm616, %v2795, 0
      %v2856 = vsel %vm616, %v2802, 0
      %v2859 = vsel %vm616, %v2809, 0
      %v2862 = vsel %vm616, %v2816, 0
      %v2865 = vsel %vm616, %v2824, 0
      %v2868 = vsel %vm616, %v2827, 0
      %v2871 = vsel %vm626, %v2726, 0
      %2873 = vmatpush.bf16.msra.mxu0 0
      %2874 = vmatpush.bf16.msra.mxu0 0
      %2875 = vmatpush.bf16.msra.mxu0 0
      %2876 = vmatpush.bf16.msra.mxu0 0
      %2877 = vmatpush.bf16.msra.mxu0 0
      %2878 = vmatpush.bf16.msra.mxu0 0
      %2879 = vmatpush.bf16.msra.mxu0 0
      %2880 = vmatpush.bf16.msra.mxu0 %v2871
      %2881 = vmatmul.bf16.gmra.mxu0 %v2829
      %v2882 = vpop.f32.mrf.mxu0
      %v2883 = vadd.f32 0.0, %v2882
      %v2884 = vpop.f32.mrf.mxu0
      %v2885 = vadd.f32 0.0, %v2884
      %2886 = vmatmul.bf16.gmra.mxu0 %v2832
      %v2887 = vpop.f32.mrf.mxu0
      %v2888 = vadd.f32 0.0, %v2887
      %v2889 = vpop.f32.mrf.mxu0
      %v2890 = vadd.f32 0.0, %v2889
      %2891 = vmatmul.bf16.gmra.mxu0 %v2835
      %v2892 = vpop.f32.mrf.mxu0
      %v2893 = vadd.f32 0.0, %v2892
      %v2894 = vpop.f32.mrf.mxu0
      %v2895 = vadd.f32 0.0, %v2894
      %2896 = vmatmul.bf16.gmra.mxu0 %v2838
      %v2897 = vpop.f32.mrf.mxu0
      %v2898 = vadd.f32 0.0, %v2897
      %v2899 = vpop.f32.mrf.mxu0
      %v2900 = vadd.f32 0.0, %v2899
      %2901 = vmatmul.bf16.gmra.mxu0 %v2841
      %v2902 = vpop.f32.mrf.mxu0
      %v2903 = vadd.f32 0.0, %v2902
      %v2904 = vpop.f32.mrf.mxu0
      %v2905 = vadd.f32 0.0, %v2904
      %2906 = vmatmul.bf16.gmra.mxu0 %v2844
      %v2907 = vpop.f32.mrf.mxu0
      %v2908 = vadd.f32 0.0, %v2907
      %v2909 = vpop.f32.mrf.mxu0
      %v2910 = vadd.f32 0.0, %v2909
      %2911 = vmatmul.bf16.gmra.mxu0 %v2847
      %v2912 = vpop.f32.mrf.mxu0
      %v2913 = vadd.f32 0.0, %v2912
      %v2914 = vpop.f32.mrf.mxu0
      %v2915 = vadd.f32 0.0, %v2914
      %2916 = vmatmul.bf16.gmra.mxu0 %v2850
      %v2917 = vpop.f32.mrf.mxu0
      %v2918 = vadd.f32 0.0, %v2917
      %v2919 = vpop.f32.mrf.mxu0
      %v2920 = vadd.f32 0.0, %v2919
      %2921 = vmatmul.bf16.gmra.mxu0 %v2853
      %v2922 = vpop.f32.mrf.mxu0
      %v2923 = vadd.f32 0.0, %v2922
      %v2924 = vpop.f32.mrf.mxu0
      %v2925 = vadd.f32 0.0, %v2924
      %2926 = vmatmul.bf16.gmra.mxu0 %v2856
      %v2927 = vpop.f32.mrf.mxu0
      %v2928 = vadd.f32 0.0, %v2927
      %v2929 = vpop.f32.mrf.mxu0
      %v2930 = vadd.f32 0.0, %v2929
      %2931 = vmatmul.bf16.gmra.mxu0 %v2859
      %v2932 = vpop.f32.mrf.mxu0
      %v2933 = vadd.f32 0.0, %v2932
      %v2934 = vpop.f32.mrf.mxu0
      %v2935 = vadd.f32 0.0, %v2934
      %2936 = vmatmul.bf16.gmra.mxu0 %v2862
      %v2937 = vpop.f32.mrf.mxu0
      %v2938 = vadd.f32 0.0, %v2937
      %v2939 = vpop.f32.mrf.mxu0
      %v2940 = vadd.f32 0.0, %v2939
      %2941 = vmatmul.bf16.gmra.mxu0 %v2865
      %v2942 = vpop.f32.mrf.mxu0
      %v2943 = vadd.f32 0.0, %v2942
      %v2944 = vpop.f32.mrf.mxu0
      %v2945 = vadd.f32 0.0, %v2944
      %2946 = vmatmul.bf16.gmra.mxu0 %v2868
      %v2947 = vpop.f32.mrf.mxu0
      %v2948 = vadd.f32 0.0, %v2947
      %v2949 = vpop.f32.mrf.mxu0
      %v2950 = vadd.f32 0.0, %v2949
      %2951 = vdwg.mxu0
      %v2952 = vadd.f32 %v2696, %v2883
      %v2953 = vadd.f32 %v2697, %v2885
      %v2954 = vadd.f32 %v2698, %v2888
      %v2955 = vadd.f32 %v2699, %v2890
      %v2956 = vadd.f32 %v2700, %v2893
      %v2957 = vadd.f32 %v2701, %v2895
      %v2958 = vadd.f32 %v2702, %v2898
      %v2959 = vadd.f32 %v2703, %v2900
      %v2960 = vadd.f32 %v2704, %v2903
      %v2961 = vadd.f32 %v2705, %v2905
      %v2962 = vadd.f32 %v2706, %v2908
      %v2963 = vadd.f32 %v2707, %v2910
      %v2964 = vadd.f32 %v2708, %v2913
      %v2965 = vadd.f32 %v2709, %v2915
      %v2966 = vadd.f32 %v2710, %v2918
      %v2967 = vadd.f32 %v2711, %v2920
      %v2968 = vadd.f32 %v2712, %v2923
      %v2969 = vadd.f32 %v2713, %v2925
      %v2970 = vadd.f32 %v2714, %v2928
      %v2971 = vadd.f32 %v2715, %v2930
      %v2972 = vadd.f32 %v2716, %v2933
      %v2973 = vadd.f32 %v2717, %v2935
      %v2974 = vadd.f32 %v2718, %v2938
      %v2975 = vadd.f32 %v2719, %v2940
      %v2976 = vadd.f32 %v2720, %v2943
      %v2977 = vadd.f32 %v2721, %v2945
      %v2978 = vadd.f32 %v2722, %v2948
      %v2979 = vadd.f32 %v2723, %v2950
      %v2980 = vld [vmem:[%s524 + $0x10] sm:$0xe]
      %s2981 = scalar_lea.vmem %s537, 32
      %v2982 = vld [vmem:[%s2981] sm:$0xf]
      %v2984 = vunpack.c.l.b16 %v2980
      %v2985 = vpack.c.b16 %v2531, %v2984
      %v2986 = vrot.slane %v2985, 1
      %v2987 = vrot.slane %v2559, 1
      %v2988 = vsel %vm697, %v2986, %v2987
      %v2989 = vrot.slane %v2560, 1
      %v2990 = vsel %vm697, %v2987, %v2989
      %v2991 = vrot.slane %v2561, 1
      %v2992 = vsel %vm697, %v2989, %v2991
      %v2993 = vrot.slane %v2562, 1
      %v2994 = vsel %vm697, %v2991, %v2993
      %v2995 = vrot.slane %v2563, 1
      %v2996 = vsel %vm697, %v2993, %v2995
      %v2997 = vrot.slane %v2564, 1
      %v2998 = vsel %vm697, %v2995, %v2997
      %v2999 = vrot.slane %v2565, 1
      %v3000 = vsel %vm697, %v2997, %v2999
      %v3001 = vrot.slane %v2566, 1
      %v3002 = vsel %vm697, %v2999, %v3001
      %v3003 = vrot.slane %v2567, 1
      %v3004 = vsel %vm697, %v3001, %v3003
      %v3005 = vrot.slane %v2568, 1
      %v3006 = vsel %vm697, %v3003, %v3005
      %v3007 = vrot.slane %v2569, 1
      %v3008 = vsel %vm697, %v3005, %v3007
      %v3009 = vrot.slane %v2570, 1
      %v3010 = vsel %vm697, %v3007, %v3009
      %v3011 = vrot.slane %v2729, 1
      %v3012 = vsel %vm697, %v3009, %v3011
      %v3014 = vsel %vm616, %v2988, 0
      %v3017 = vsel %vm616, %v2990, 0
      %v3020 = vsel %vm616, %v2992, 0
      %v3023 = vsel %vm616, %v2994, 0
      %v3026 = vsel %vm616, %v2996, 0
      %v3029 = vsel %vm616, %v2998, 0
      %v3032 = vsel %vm616, %v3000, 0
      %v3035 = vsel %vm616, %v3002, 0
      %v3038 = vsel %vm616, %v3004, 0
      %v3041 = vsel %vm616, %v3006, 0
      %v3044 = vsel %vm616, %v3008, 0
      %v3047 = vsel %vm616, %v3010, 0
      %v3050 = vsel %vm616, %v3012, 0
      %v3053 = vsel %vm616, %v3011, 0
      %v3056 = vsel %vm626, %v2982, 0
      %3058 = vmatpush.bf16.msra.mxu0 0
      %3059 = vmatpush.bf16.msra.mxu0 0
      %3060 = vmatpush.bf16.msra.mxu0 0
      %3061 = vmatpush.bf16.msra.mxu0 0
      %3062 = vmatpush.bf16.msra.mxu0 0
      %3063 = vmatpush.bf16.msra.mxu0 0
      %3064 = vmatpush.bf16.msra.mxu0 0
      %3065 = vmatpush.bf16.msra.mxu0 %v3056
      %3066 = vmatmul.bf16.gmra.mxu0 %v3014
      %v3067 = vpop.f32.mrf.mxu0
      %v3068 = vadd.f32 0.0, %v3067
      %v3069 = vpop.f32.mrf.mxu0
      %v3070 = vadd.f32 0.0, %v3069
      %3071 = vmatmul.bf16.gmra.mxu0 %v3017
      %v3072 = vpop.f32.mrf.mxu0
      %v3073 = vadd.f32 0.0, %v3072
      %v3074 = vpop.f32.mrf.mxu0
      %v3075 = vadd.f32 0.0, %v3074
      %3076 = vmatmul.bf16.gmra.mxu0 %v3020
      %v3077 = vpop.f32.mrf.mxu0
      %v3078 = vadd.f32 0.0, %v3077
      %v3079 = vpop.f32.mrf.mxu0
      %v3080 = vadd.f32 0.0, %v3079
      %3081 = vmatmul.bf16.gmra.mxu0 %v3023
      %v3082 = vpop.f32.mrf.mxu0
      %v3083 = vadd.f32 0.0, %v3082
      %v3084 = vpop.f32.mrf.mxu0
      %v3085 = vadd.f32 0.0, %v3084
      %3086 = vmatmul.bf16.gmra.mxu0 %v3026
      %v3087 = vpop.f32.mrf.mxu0
      %v3088 = vadd.f32 0.0, %v3087
      %v3089 = vpop.f32.mrf.mxu0
      %v3090 = vadd.f32 0.0, %v3089
      %3091 = vmatmul.bf16.gmra.mxu0 %v3029
      %v3092 = vpop.f32.mrf.mxu0
      %v3093 = vadd.f32 0.0, %v3092
      %v3094 = vpop.f32.mrf.mxu0
      %v3095 = vadd.f32 0.0, %v3094
      %3096 = vmatmul.bf16.gmra.mxu0 %v3032
      %v3097 = vpop.f32.mrf.mxu0
      %v3098 = vadd.f32 0.0, %v3097
      %v3099 = vpop.f32.mrf.mxu0
      %v3100 = vadd.f32 0.0, %v3099
      %3101 = vmatmul.bf16.gmra.mxu0 %v3035
      %v3102 = vpop.f32.mrf.mxu0
      %v3103 = vadd.f32 0.0, %v3102
      %v3104 = vpop.f32.mrf.mxu0
      %v3105 = vadd.f32 0.0, %v3104
      %3106 = vmatmul.bf16.gmra.mxu0 %v3038
      %v3107 = vpop.f32.mrf.mxu0
      %v3108 = vadd.f32 0.0, %v3107
      %v3109 = vpop.f32.mrf.mxu0
      %v3110 = vadd.f32 0.0, %v3109
      %3111 = vmatmul.bf16.gmra.mxu0 %v3041
      %v3112 = vpop.f32.mrf.mxu0
      %v3113 = vadd.f32 0.0, %v3112
      %v3114 = vpop.f32.mrf.mxu0
      %v3115 = vadd.f32 0.0, %v3114
      %3116 = vmatmul.bf16.gmra.mxu0 %v3044
      %v3117 = vpop.f32.mrf.mxu0
      %v3118 = vadd.f32 0.0, %v3117
      %v3119 = vpop.f32.mrf.mxu0
      %v3120 = vadd.f32 0.0, %v3119
      %3121 = vmatmul.bf16.gmra.mxu0 %v3047
      %v3122 = vpop.f32.mrf.mxu0
      %v3123 = vadd.f32 0.0, %v3122
      %v3124 = vpop.f32.mrf.mxu0
      %v3125 = vadd.f32 0.0, %v3124
      %3126 = vmatmul.bf16.gmra.mxu0 %v3050
      %v3127 = vpop.f32.mrf.mxu0
      %v3128 = vadd.f32 0.0, %v3127
      %v3129 = vpop.f32.mrf.mxu0
      %v3130 = vadd.f32 0.0, %v3129
      %3131 = vmatmul.bf16.gmra.mxu0 %v3053
      %v3132 = vpop.f32.mrf.mxu0
      %v3133 = vadd.f32 0.0, %v3132
      %v3134 = vpop.f32.mrf.mxu0
      %v3135 = vadd.f32 0.0, %v3134
      %3136 = vdwg.mxu0
      %v3137 = vadd.f32 %v2952, %v3068
      %v3138 = vadd.f32 %v2953, %v3070
      %v3139 = vadd.f32 %v2954, %v3073
      %v3140 = vadd.f32 %v2955, %v3075
      %v3141 = vadd.f32 %v2956, %v3078
      %v3142 = vadd.f32 %v2957, %v3080
      %v3143 = vadd.f32 %v2958, %v3083
      %v3144 = vadd.f32 %v2959, %v3085
      %v3145 = vadd.f32 %v2960, %v3088
      %v3146 = vadd.f32 %v2961, %v3090
      %v3147 = vadd.f32 %v2962, %v3093
      %v3148 = vadd.f32 %v2963, %v3095
      %v3149 = vadd.f32 %v2964, %v3098
      %v3150 = vadd.f32 %v2965, %v3100
      %v3151 = vadd.f32 %v2966, %v3103
      %v3152 = vadd.f32 %v2967, %v3105
      %v3153 = vadd.f32 %v2968, %v3108
      %v3154 = vadd.f32 %v2969, %v3110
      %v3155 = vadd.f32 %v2970, %v3113
      %v3156 = vadd.f32 %v2971, %v3115
      %v3157 = vadd.f32 %v2972, %v3118
      %v3158 = vadd.f32 %v2973, %v3120
      %v3159 = vadd.f32 %v2974, %v3123
      %v3160 = vadd.f32 %v2975, %v3125
      %v3161 = vadd.f32 %v2976, %v3128
      %v3162 = vadd.f32 %v2977, %v3130
      %v3163 = vadd.f32 %v2978, %v3133
      %v3164 = vadd.f32 %v2979, %v3135
      %v3165 = vld [vmem:[%s540] sm:$0x1]
      %v3167 = vperm.slane %v3165, 0
      %v3169 = vadd.f32 %v3137, %v3167
      %v3170 = vadd.f32 %v3138, %v3167
      %v3171 = vadd.f32 %v3139, %v3167
      %v3172 = vadd.f32 %v3140, %v3167
      %v3173 = vadd.f32 %v3141, %v3167
      %v3174 = vadd.f32 %v3142, %v3167
      %v3175 = vadd.f32 %v3143, %v3167
      %v3176 = vadd.f32 %v3144, %v3167
      %v3177 = vadd.f32 %v3145, %v3167
      %v3178 = vadd.f32 %v3146, %v3167
      %v3179 = vadd.f32 %v3147, %v3167
      %v3180 = vadd.f32 %v3148, %v3167
      %v3181 = vadd.f32 %v3149, %v3167
      %v3182 = vadd.f32 %v3150, %v3167
      %v3183 = vadd.f32 %v3151, %v3167
      %v3184 = vadd.f32 %v3152, %v3167
      %v3185 = vadd.f32 %v3153, %v3167
      %v3186 = vadd.f32 %v3154, %v3167
      %v3187 = vadd.f32 %v3155, %v3167
      %v3188 = vadd.f32 %v3156, %v3167
      %v3189 = vadd.f32 %v3157, %v3167
      %v3190 = vadd.f32 %v3158, %v3167
      %v3191 = vadd.f32 %v3159, %v3167
      %v3192 = vadd.f32 %v3160, %v3167
      %v3193 = vadd.f32 %v3161, %v3167
      %v3194 = vadd.f32 %v3162, %v3167
      %v3195 = vadd.f32 %v3163, %v3167
      %v3196 = vadd.f32 %v3164, %v3167
      %v3197 = vmax.f32 %v3169, 0.0
      %v3198 = vmax.f32 %v3170, 0.0
      %v3199 = vmax.f32 %v3171, 0.0
      %v3200 = vmax.f32 %v3172, 0.0
      %v3201 = vmax.f32 %v3173, 0.0
      %v3202 = vmax.f32 %v3174, 0.0
      %v3203 = vmax.f32 %v3175, 0.0
      %v3204 = vmax.f32 %v3176, 0.0
      %v3205 = vmax.f32 %v3177, 0.0
      %v3206 = vmax.f32 %v3178, 0.0
      %v3207 = vmax.f32 %v3179, 0.0
      %v3208 = vmax.f32 %v3180, 0.0
      %v3209 = vmax.f32 %v3181, 0.0
      %v3210 = vmax.f32 %v3182, 0.0
      %v3211 = vmax.f32 %v3183, 0.0
      %v3212 = vmax.f32 %v3184, 0.0
      %v3213 = vmax.f32 %v3185, 0.0
      %v3214 = vmax.f32 %v3186, 0.0
      %v3215 = vmax.f32 %v3187, 0.0
      %v3216 = vmax.f32 %v3188, 0.0
      %v3217 = vmax.f32 %v3189, 0.0
      %v3218 = vmax.f32 %v3190, 0.0
      %v3219 = vmax.f32 %v3191, 0.0
      %v3220 = vmax.f32 %v3192, 0.0
      %v3221 = vmax.f32 %v3193, 0.0
      %v3222 = vmax.f32 %v3194, 0.0
      %v3223 = vmax.f32 %v3195, 0.0
      %v3224 = vmax.f32 %v3196, 0.0
      %3225 = vst.msk [vmem:[#allocation3] sm:$0xff] %vm1135, %v3197
      %3226 = vst.msk [vmem:[#allocation3 + $0x8] sm:$0xff] %vm1135, %v3198
      %3227 = vst.msk [vmem:[#allocation3 + $0x10] sm:$0xff] %vm1135, %v3199
      %3228 = vst.msk [vmem:[#allocation3 + $0x18] sm:$0xff] %vm1135, %v3200
      %3229 = vst.msk [vmem:[#allocation3 + $0x20] sm:$0xff] %vm1135, %v3201
      %3230 = vst.msk [vmem:[#allocation3 + $0x28] sm:$0xff] %vm1135, %v3202
      %3231 = vst.msk [vmem:[#allocation3 + $0x30] sm:$0xff] %vm1135, %v3203
      %3232 = vst.msk [vmem:[#allocation3 + $0x38] sm:$0xff] %vm1135, %v3204
      %3233 = vst.msk [vmem:[#allocation3 + $0x40] sm:$0xff] %vm1135, %v3205
      %3234 = vst.msk [vmem:[#allocation3 + $0x48] sm:$0xff] %vm1135, %v3206
      %3235 = vst.msk [vmem:[#allocation3 + $0x50] sm:$0xff] %vm1135, %v3207
      %3236 = vst.msk [vmem:[#allocation3 + $0x58] sm:$0xff] %vm1135, %v3208
      %3237 = vst.msk [vmem:[#allocation3 + $0x60] sm:$0xff] %vm1135, %v3209
      %3238 = vst.msk [vmem:[#allocation3 + $0x68] sm:$0xff] %vm1135, %v3210
      %3239 = vst.msk [vmem:[#allocation3 + $0x70] sm:$0xff] %vm1135, %v3211
      %3240 = vst.msk [vmem:[#allocation3 + $0x78] sm:$0xff] %vm1135, %v3212
      %3241 = vst.msk [vmem:[#allocation3 + $0x80] sm:$0xff] %vm1135, %v3213
      %3242 = vst.msk [vmem:[#allocation3 + $0x88] sm:$0xff] %vm1135, %v3214
      %3243 = vst.msk [vmem:[#allocation3 + $0x90] sm:$0xff] %vm1135, %v3215
      %3244 = vst.msk [vmem:[#allocation3 + $0x98] sm:$0xff] %vm1135, %v3216
      %3245 = vst.msk [vmem:[#allocation3 + $0xa0] sm:$0xff] %vm1135, %v3217
      %3246 = vst.msk [vmem:[#allocation3 + $0xa8] sm:$0xff] %vm1135, %v3218
      %3247 = vst.msk [vmem:[#allocation3 + $0xb0] sm:$0xff] %vm1135, %v3219
      %3248 = vst.msk [vmem:[#allocation3 + $0xb8] sm:$0xff] %vm1135, %v3220
      %3249 = vst.msk [vmem:[#allocation3 + $0xc0] sm:$0xff] %vm1135, %v3221
      %3250 = vst.msk [vmem:[#allocation3 + $0xc8] sm:$0xff] %vm1135, %v3222
      %3251 = vst.msk [vmem:[#allocation3 + $0xd0] sm:$0xff] %vm1135, %v3223
      %3252 = vst.msk [vmem:[#allocation3 + $0xd8] sm:$0x3f] %vm1141, %v3224
      %vm3253 = vcmask 129024
      %3254 = vst.msk [vmem:[#allocation3 + $0xde] sm:$0x7f] %vm3253, 0.0
      %v3255 = vld [vmem:[#allocation3] sm:$0xff]
      %v3256 = vld [vmem:[#allocation3 + $0x8] sm:$0xff]
      %v3257 = vld [vmem:[#allocation3 + $0x10] sm:$0xff]
      %v3258 = vld [vmem:[#allocation3 + $0x18] sm:$0xff]
      %v3259 = vld [vmem:[#allocation3 + $0x20] sm:$0xff]
      %v3260 = vld [vmem:[#allocation3 + $0x28] sm:$0xff]
      %v3261 = vld [vmem:[#allocation3 + $0x30] sm:$0xff]
      %v3262 = vld [vmem:[#allocation3 + $0x38] sm:$0xff]
      %v3263 = vld [vmem:[#allocation3 + $0x40] sm:$0xff]
      %v3264 = vld [vmem:[#allocation3 + $0x48] sm:$0xff]
      %v3265 = vld [vmem:[#allocation3 + $0x50] sm:$0xff]
      %v3266 = vld [vmem:[#allocation3 + $0x58] sm:$0xff]
      %v3267 = vld [vmem:[#allocation3 + $0x60] sm:$0xff]
      %v3268 = vld [vmem:[#allocation3 + $0x68] sm:$0xff]
      %v3269 = vld [vmem:[#allocation3 + $0x70] sm:$0xff]
      %v3270 = vld [vmem:[#allocation3 + $0x78] sm:$0xff]
      %v3271 = vld [vmem:[#allocation3 + $0x80] sm:$0xff]
      %v3272 = vld [vmem:[#allocation3 + $0x88] sm:$0xff]
      %v3273 = vld [vmem:[#allocation2] sm:$0x1]
      %v3274 = vperm.slane %v3273, 0
      %v3275 = vmul.f32 %v3255, %v3274
      %v3276 = vmul.f32 %v3256, %v3274
      %v3277 = vmul.f32 %v3257, %v3274
      %v3278 = vmul.f32 %v3258, %v3274
      %v3279 = vmul.f32 %v3259, %v3274
      %v3280 = vmul.f32 %v3260, %v3274
      %v3281 = vmul.f32 %v3261, %v3274
      %v3282 = vmul.f32 %v3262, %v3274
      %v3283 = vmul.f32 %v3263, %v3274
      %v3284 = vmul.f32 %v3264, %v3274
      %v3285 = vmul.f32 %v3265, %v3274
      %v3286 = vmul.f32 %v3266, %v3274
      %v3287 = vmul.f32 %v3267, %v3274
      %v3288 = vmul.f32 %v3268, %v3274
      %v3289 = vmul.f32 %v3269, %v3274
      %v3290 = vmul.f32 %v3270, %v3274
      %v3291 = vmul.f32 %v3271, %v3274
      %v3292 = vmul.f32 %v3272, %v3274
      %v3293 = vadd.f32 %v3275, 0.0
      %v3294 = vadd.f32 %v3276, 0.0
      %v3295 = vadd.f32 %v3277, 0.0
      %v3296 = vadd.f32 %v3278, 0.0
      %v3297 = vadd.f32 %v3279, 0.0
      %v3298 = vadd.f32 %v3280, 0.0
      %v3299 = vadd.f32 %v3281, 0.0
      %v3300 = vadd.f32 %v3282, 0.0
      %v3301 = vadd.f32 %v3283, 0.0
      %v3302 = vadd.f32 %v3284, 0.0
      %v3303 = vadd.f32 %v3285, 0.0
      %v3304 = vadd.f32 %v3286, 0.0
      %v3305 = vadd.f32 %v3287, 0.0
      %v3306 = vadd.f32 %v3288, 0.0
      %v3307 = vadd.f32 %v3289, 0.0
      %v3308 = vadd.f32 %v3290, 0.0
      %v3309 = vadd.f32 %v3291, 0.0
      %v3310 = vadd.f32 %v3292, 0.0
      %v3311 = vld [vmem:[#allocation3 + $0x1] sm:$0xff]
      %v3312 = vld [vmem:[#allocation3 + $0x9] sm:$0xff]
      %v3313 = vld [vmem:[#allocation3 + $0x11] sm:$0xff]
      %v3314 = vld [vmem:[#allocation3 + $0x19] sm:$0xff]
      %v3315 = vld [vmem:[#allocation3 + $0x21] sm:$0xff]
      %v3316 = vld [vmem:[#allocation3 + $0x29] sm:$0xff]
      %v3317 = vld [vmem:[#allocation3 + $0x31] sm:$0xff]
      %v3318 = vld [vmem:[#allocation3 + $0x39] sm:$0xff]
      %v3319 = vld [vmem:[#allocation3 + $0x41] sm:$0xff]
      %v3320 = vld [vmem:[#allocation3 + $0x49] sm:$0xff]
      %v3321 = vld [vmem:[#allocation3 + $0x51] sm:$0xff]
      %v3322 = vld [vmem:[#allocation3 + $0x59] sm:$0xff]
      %v3323 = vld [vmem:[#allocation3 + $0x61] sm:$0xff]
      %v3324 = vld [vmem:[#allocation3 + $0x69] sm:$0xff]
      %v3325 = vld [vmem:[#allocation3 + $0x71] sm:$0xff]
      %v3326 = vld [vmem:[#allocation3 + $0x79] sm:$0xff]
      %v3327 = vld [vmem:[#allocation3 + $0x81] sm:$0xff]
      %v3328 = vld [vmem:[#allocation3 + $0x89] sm:$0xff]
      %v3329 = vld [vmem:[#allocation2 + $0x1] sm:$0x1]
      %v3330 = vperm.slane %v3329, 0
      %v3331 = vmul.f32 %v3311, %v3330
      %v3332 = vmul.f32 %v3312, %v3330
      %v3333 = vmul.f32 %v3313, %v3330
      %v3334 = vmul.f32 %v3314, %v3330
      %v3335 = vmul.f32 %v3315, %v3330
      %v3336 = vmul.f32 %v3316, %v3330
      %v3337 = vmul.f32 %v3317, %v3330
      %v3338 = vmul.f32 %v3318, %v3330
      %v3339 = vmul.f32 %v3319, %v3330
      %v3340 = vmul.f32 %v3320, %v3330
      %v3341 = vmul.f32 %v3321, %v3330
      %v3342 = vmul.f32 %v3322, %v3330
      %v3343 = vmul.f32 %v3323, %v3330
      %v3344 = vmul.f32 %v3324, %v3330
      %v3345 = vmul.f32 %v3325, %v3330
      %v3346 = vmul.f32 %v3326, %v3330
      %v3347 = vmul.f32 %v3327, %v3330
      %v3348 = vmul.f32 %v3328, %v3330
      %v3349 = vadd.f32 %v3293, %v3331
      %v3350 = vadd.f32 %v3294, %v3332
      %v3351 = vadd.f32 %v3295, %v3333
      %v3352 = vadd.f32 %v3296, %v3334
      %v3353 = vadd.f32 %v3297, %v3335
      %v3354 = vadd.f32 %v3298, %v3336
      %v3355 = vadd.f32 %v3299, %v3337
      %v3356 = vadd.f32 %v3300, %v3338
      %v3357 = vadd.f32 %v3301, %v3339
      %v3358 = vadd.f32 %v3302, %v3340
      %v3359 = vadd.f32 %v3303, %v3341
      %v3360 = vadd.f32 %v3304, %v3342
      %v3361 = vadd.f32 %v3305, %v3343
      %v3362 = vadd.f32 %v3306, %v3344
      %v3363 = vadd.f32 %v3307, %v3345
      %v3364 = vadd.f32 %v3308, %v3346
      %v3365 = vadd.f32 %v3309, %v3347
      %v3366 = vadd.f32 %v3310, %v3348
      %v3367 = vld [vmem:[#allocation3 + $0x2] sm:$0xff]
      %v3368 = vld [vmem:[#allocation3 + $0xa] sm:$0xff]
      %v3369 = vld [vmem:[#allocation3 + $0x12] sm:$0xff]
      %v3370 = vld [vmem:[#allocation3 + $0x1a] sm:$0xff]
      %v3371 = vld [vmem:[#allocation3 + $0x22] sm:$0xff]
      %v3372 = vld [vmem:[#allocation3 + $0x2a] sm:$0xff]
      %v3373 = vld [vmem:[#allocation3 + $0x32] sm:$0xff]
      %v3374 = vld [vmem:[#allocation3 + $0x3a] sm:$0xff]
      %v3375 = vld [vmem:[#allocation3 + $0x42] sm:$0xff]
      %v3376 = vld [vmem:[#allocation3 + $0x4a] sm:$0xff]
      %v3377 = vld [vmem:[#allocation3 + $0x52] sm:$0xff]
      %v3378 = vld [vmem:[#allocation3 + $0x5a] sm:$0xff]
      %v3379 = vld [vmem:[#allocation3 + $0x62] sm:$0xff]
      %v3380 = vld [vmem:[#allocation3 + $0x6a] sm:$0xff]
      %v3381 = vld [vmem:[#allocation3 + $0x72] sm:$0xff]
      %v3382 = vld [vmem:[#allocation3 + $0x7a] sm:$0xff]
      %v3383 = vld [vmem:[#allocation3 + $0x82] sm:$0xff]
      %v3384 = vld [vmem:[#allocation3 + $0x8a] sm:$0xff]
      %v3385 = vld [vmem:[#allocation2 + $0x2] sm:$0x1]
      %v3386 = vperm.slane %v3385, 0
      %v3387 = vmul.f32 %v3367, %v3386
      %v3388 = vmul.f32 %v3368, %v3386
      %v3389 = vmul.f32 %v3369, %v3386
      %v3390 = vmul.f32 %v3370, %v3386
      %v3391 = vmul.f32 %v3371, %v3386
      %v3392 = vmul.f32 %v3372, %v3386
      %v3393 = vmul.f32 %v3373, %v3386
      %v3394 = vmul.f32 %v3374, %v3386
      %v3395 = vmul.f32 %v3375, %v3386
      %v3396 = vmul.f32 %v3376, %v3386
      %v3397 = vmul.f32 %v3377, %v3386
      %v3398 = vmul.f32 %v3378, %v3386
      %v3399 = vmul.f32 %v3379, %v3386
      %v3400 = vmul.f32 %v3380, %v3386
      %v3401 = vmul.f32 %v3381, %v3386
      %v3402 = vmul.f32 %v3382, %v3386
      %v3403 = vmul.f32 %v3383, %v3386
      %v3404 = vmul.f32 %v3384, %v3386
      %v3405 = vadd.f32 %v3349, %v3387
      %v3406 = vadd.f32 %v3350, %v3388
      %v3407 = vadd.f32 %v3351, %v3389
      %v3408 = vadd.f32 %v3352, %v3390
      %v3409 = vadd.f32 %v3353, %v3391
      %v3410 = vadd.f32 %v3354, %v3392
      %v3411 = vadd.f32 %v3355, %v3393
      %v3412 = vadd.f32 %v3356, %v3394
      %v3413 = vadd.f32 %v3357, %v3395
      %v3414 = vadd.f32 %v3358, %v3396
      %v3415 = vadd.f32 %v3359, %v3397
      %v3416 = vadd.f32 %v3360, %v3398
      %v3417 = vadd.f32 %v3361, %v3399
      %v3418 = vadd.f32 %v3362, %v3400
      %v3419 = vadd.f32 %v3363, %v3401
      %v3420 = vadd.f32 %v3364, %v3402
      %v3421 = vadd.f32 %v3365, %v3403
      %v3422 = vadd.f32 %v3366, %v3404
      %v3423 = vld [vmem:[#allocation3 + $0x3] sm:$0xff]
      %v3424 = vld [vmem:[#allocation3 + $0xb] sm:$0xff]
      %v3425 = vld [vmem:[#allocation3 + $0x13] sm:$0xff]
      %v3426 = vld [vmem:[#allocation3 + $0x1b] sm:$0xff]
      %v3427 = vld [vmem:[#allocation3 + $0x23] sm:$0xff]
      %v3428 = vld [vmem:[#allocation3 + $0x2b] sm:$0xff]
      %v3429 = vld [vmem:[#allocation3 + $0x33] sm:$0xff]
      %v3430 = vld [vmem:[#allocation3 + $0x3b] sm:$0xff]
      %v3431 = vld [vmem:[#allocation3 + $0x43] sm:$0xff]
      %v3432 = vld [vmem:[#allocation3 + $0x4b] sm:$0xff]
      %v3433 = vld [vmem:[#allocation3 + $0x53] sm:$0xff]
      %v3434 = vld [vmem:[#allocation3 + $0x5b] sm:$0xff]
      %v3435 = vld [vmem:[#allocation3 + $0x63] sm:$0xff]
      %v3436 = vld [vmem:[#allocation3 + $0x6b] sm:$0xff]
      %v3437 = vld [vmem:[#allocation3 + $0x73] sm:$0xff]
      %v3438 = vld [vmem:[#allocation3 + $0x7b] sm:$0xff]
      %v3439 = vld [vmem:[#allocation3 + $0x83] sm:$0xff]
      %v3440 = vld [vmem:[#allocation3 + $0x8b] sm:$0xff]
      %v3441 = vld [vmem:[#allocation2 + $0x3] sm:$0x1]
      %v3442 = vperm.slane %v3441, 0
      %v3443 = vmul.f32 %v3423, %v3442
      %v3444 = vmul.f32 %v3424, %v3442
      %v3445 = vmul.f32 %v3425, %v3442
      %v3446 = vmul.f32 %v3426, %v3442
      %v3447 = vmul.f32 %v3427, %v3442
      %v3448 = vmul.f32 %v3428, %v3442
      %v3449 = vmul.f32 %v3429, %v3442
      %v3450 = vmul.f32 %v3430, %v3442
      %v3451 = vmul.f32 %v3431, %v3442
      %v3452 = vmul.f32 %v3432, %v3442
      %v3453 = vmul.f32 %v3433, %v3442
      %v3454 = vmul.f32 %v3434, %v3442
      %v3455 = vmul.f32 %v3435, %v3442
      %v3456 = vmul.f32 %v3436, %v3442
      %v3457 = vmul.f32 %v3437, %v3442
      %v3458 = vmul.f32 %v3438, %v3442
      %v3459 = vmul.f32 %v3439, %v3442
      %v3460 = vmul.f32 %v3440, %v3442
      %v3461 = vadd.f32 %v3405, %v3443
      %v3462 = vadd.f32 %v3406, %v3444
      %v3463 = vadd.f32 %v3407, %v3445
      %v3464 = vadd.f32 %v3408, %v3446
      %v3465 = vadd.f32 %v3409, %v3447
      %v3466 = vadd.f32 %v3410, %v3448
      %v3467 = vadd.f32 %v3411, %v3449
      %v3468 = vadd.f32 %v3412, %v3450
      %v3469 = vadd.f32 %v3413, %v3451
      %v3470 = vadd.f32 %v3414, %v3452
      %v3471 = vadd.f32 %v3415, %v3453
      %v3472 = vadd.f32 %v3416, %v3454
      %v3473 = vadd.f32 %v3417, %v3455
      %v3474 = vadd.f32 %v3418, %v3456
      %v3475 = vadd.f32 %v3419, %v3457
      %v3476 = vadd.f32 %v3420, %v3458
      %v3477 = vadd.f32 %v3421, %v3459
      %v3478 = vadd.f32 %v3422, %v3460
      %v3479 = vld [vmem:[#allocation3 + $0x4] sm:$0xff]
      %v3480 = vld [vmem:[#allocation3 + $0xc] sm:$0xff]
      %v3481 = vld [vmem:[#allocation3 + $0x14] sm:$0xff]
      %v3482 = vld [vmem:[#allocation3 + $0x1c] sm:$0xff]
      %v3483 = vld [vmem:[#allocation3 + $0x24] sm:$0xff]
      %v3484 = vld [vmem:[#allocation3 + $0x2c] sm:$0xff]
      %v3485 = vld [vmem:[#allocation3 + $0x34] sm:$0xff]
      %v3486 = vld [vmem:[#allocation3 + $0x3c] sm:$0xff]
      %v3487 = vld [vmem:[#allocation3 + $0x44] sm:$0xff]
      %v3488 = vld [vmem:[#allocation3 + $0x4c] sm:$0xff]
      %v3489 = vld [vmem:[#allocation3 + $0x54] sm:$0xff]
      %v3490 = vld [vmem:[#allocation3 + $0x5c] sm:$0xff]
      %v3491 = vld [vmem:[#allocation3 + $0x64] sm:$0xff]
      %v3492 = vld [vmem:[#allocation3 + $0x6c] sm:$0xff]
      %v3493 = vld [vmem:[#allocation3 + $0x74] sm:$0xff]
      %v3494 = vld [vmem:[#allocation3 + $0x7c] sm:$0xff]
      %v3495 = vld [vmem:[#allocation3 + $0x84] sm:$0xff]
      %v3496 = vld [vmem:[#allocation3 + $0x8c] sm:$0xff]
      %v3497 = vld [vmem:[#allocation2 + $0x4] sm:$0x1]
      %v3498 = vperm.slane %v3497, 0
      %v3499 = vmul.f32 %v3479, %v3498
      %v3500 = vmul.f32 %v3480, %v3498
      %v3501 = vmul.f32 %v3481, %v3498
      %v3502 = vmul.f32 %v3482, %v3498
      %v3503 = vmul.f32 %v3483, %v3498
      %v3504 = vmul.f32 %v3484, %v3498
      %v3505 = vmul.f32 %v3485, %v3498
      %v3506 = vmul.f32 %v3486, %v3498
      %v3507 = vmul.f32 %v3487, %v3498
      %v3508 = vmul.f32 %v3488, %v3498
      %v3509 = vmul.f32 %v3489, %v3498
      %v3510 = vmul.f32 %v3490, %v3498
      %v3511 = vmul.f32 %v3491, %v3498
      %v3512 = vmul.f32 %v3492, %v3498
      %v3513 = vmul.f32 %v3493, %v3498
      %v3514 = vmul.f32 %v3494, %v3498
      %v3515 = vmul.f32 %v3495, %v3498
      %v3516 = vmul.f32 %v3496, %v3498
      %v3517 = vadd.f32 %v3461, %v3499
      %v3518 = vadd.f32 %v3462, %v3500
      %v3519 = vadd.f32 %v3463, %v3501
      %v3520 = vadd.f32 %v3464, %v3502
      %v3521 = vadd.f32 %v3465, %v3503
      %v3522 = vadd.f32 %v3466, %v3504
      %v3523 = vadd.f32 %v3467, %v3505
      %v3524 = vadd.f32 %v3468, %v3506
      %v3525 = vadd.f32 %v3469, %v3507
      %v3526 = vadd.f32 %v3470, %v3508
      %v3527 = vadd.f32 %v3471, %v3509
      %v3528 = vadd.f32 %v3472, %v3510
      %v3529 = vadd.f32 %v3473, %v3511
      %v3530 = vadd.f32 %v3474, %v3512
      %v3531 = vadd.f32 %v3475, %v3513
      %v3532 = vadd.f32 %v3476, %v3514
      %v3533 = vadd.f32 %v3477, %v3515
      %v3534 = vadd.f32 %v3478, %v3516
      %v3535 = vld [vmem:[#allocation3 + $0x5] sm:$0xff]
      %v3536 = vld [vmem:[#allocation3 + $0xd] sm:$0xff]
      %v3537 = vld [vmem:[#allocation3 + $0x15] sm:$0xff]
      %v3538 = vld [vmem:[#allocation3 + $0x1d] sm:$0xff]
      %v3539 = vld [vmem:[#allocation3 + $0x25] sm:$0xff]
      %v3540 = vld [vmem:[#allocation3 + $0x2d] sm:$0xff]
      %v3541 = vld [vmem:[#allocation3 + $0x35] sm:$0xff]
      %v3542 = vld [vmem:[#allocation3 + $0x3d] sm:$0xff]
      %v3543 = vld [vmem:[#allocation3 + $0x45] sm:$0xff]
      %v3544 = vld [vmem:[#allocation3 + $0x4d] sm:$0xff]
      %v3545 = vld [vmem:[#allocation3 + $0x55] sm:$0xff]
      %v3546 = vld [vmem:[#allocation3 + $0x5d] sm:$0xff]
      %v3547 = vld [vmem:[#allocation3 + $0x65] sm:$0xff]
      %v3548 = vld [vmem:[#allocation3 + $0x6d] sm:$0xff]
      %v3549 = vld [vmem:[#allocation3 + $0x75] sm:$0xff]
      %v3550 = vld [vmem:[#allocation3 + $0x7d] sm:$0xff]
      %v3551 = vld [vmem:[#allocation3 + $0x85] sm:$0xff]
      %v3552 = vld [vmem:[#allocation3 + $0x8d] sm:$0xff]
      %v3553 = vld [vmem:[#allocation2 + $0x5] sm:$0x1]
      %v3554 = vperm.slane %v3553, 0
      %v3555 = vmul.f32 %v3535, %v3554
      %v3556 = vmul.f32 %v3536, %v3554
      %v3557 = vmul.f32 %v3537, %v3554
      %v3558 = vmul.f32 %v3538, %v3554
      %v3559 = vmul.f32 %v3539, %v3554
      %v3560 = vmul.f32 %v3540, %v3554
      %v3561 = vmul.f32 %v3541, %v3554
      %v3562 = vmul.f32 %v3542, %v3554
      %v3563 = vmul.f32 %v3543, %v3554
      %v3564 = vmul.f32 %v3544, %v3554
      %v3565 = vmul.f32 %v3545, %v3554
      %v3566 = vmul.f32 %v3546, %v3554
      %v3567 = vmul.f32 %v3547, %v3554
      %v3568 = vmul.f32 %v3548, %v3554
      %v3569 = vmul.f32 %v3549, %v3554
      %v3570 = vmul.f32 %v3550, %v3554
      %v3571 = vmul.f32 %v3551, %v3554
      %v3572 = vmul.f32 %v3552, %v3554
      %v3573 = vadd.f32 %v3517, %v3555
      %v3574 = vadd.f32 %v3518, %v3556
      %v3575 = vadd.f32 %v3519, %v3557
      %v3576 = vadd.f32 %v3520, %v3558
      %v3577 = vadd.f32 %v3521, %v3559
      %v3578 = vadd.f32 %v3522, %v3560
      %v3579 = vadd.f32 %v3523, %v3561
      %v3580 = vadd.f32 %v3524, %v3562
      %v3581 = vadd.f32 %v3525, %v3563
      %v3582 = vadd.f32 %v3526, %v3564
      %v3583 = vadd.f32 %v3527, %v3565
      %v3584 = vadd.f32 %v3528, %v3566
      %v3585 = vadd.f32 %v3529, %v3567
      %v3586 = vadd.f32 %v3530, %v3568
      %v3587 = vadd.f32 %v3531, %v3569
      %v3588 = vadd.f32 %v3532, %v3570
      %v3589 = vadd.f32 %v3533, %v3571
      %v3590 = vadd.f32 %v3534, %v3572
      %v3591 = vld [vmem:[#allocation3 + $0x90] sm:$0xff]
      %v3592 = vld [vmem:[#allocation3 + $0x98] sm:$0xff]
      %v3593 = vld [vmem:[#allocation2 + $0x8] sm:$0x1]
      %v3594 = vperm.slane %v3593, 0
      %v3595 = vmul.f32 %v3257, %v3594
      %v3596 = vmul.f32 %v3258, %v3594
      %v3597 = vmul.f32 %v3259, %v3594
      %v3598 = vmul.f32 %v3260, %v3594
      %v3599 = vmul.f32 %v3261, %v3594
      %v3600 = vmul.f32 %v3262, %v3594
      %v3601 = vmul.f32 %v3263, %v3594
      %v3602 = vmul.f32 %v3264, %v3594
      %v3603 = vmul.f32 %v3265, %v3594
      %v3604 = vmul.f32 %v3266, %v3594
      %v3605 = vmul.f32 %v3267, %v3594
      %v3606 = vmul.f32 %v3268, %v3594
      %v3607 = vmul.f32 %v3269, %v3594
      %v3608 = vmul.f32 %v3270, %v3594
      %v3609 = vmul.f32 %v3271, %v3594
      %v3610 = vmul.f32 %v3272, %v3594
      %v3611 = vmul.f32 %v3591, %v3594
      %v3612 = vmul.f32 %v3592, %v3594
      %v3613 = vadd.f32 %v3573, %v3595
      %v3614 = vadd.f32 %v3574, %v3596
      %v3615 = vadd.f32 %v3575, %v3597
      %v3616 = vadd.f32 %v3576, %v3598
      %v3617 = vadd.f32 %v3577, %v3599
      %v3618 = vadd.f32 %v3578, %v3600
      %v3619 = vadd.f32 %v3579, %v3601
      %v3620 = vadd.f32 %v3580, %v3602
      %v3621 = vadd.f32 %v3581, %v3603
      %v3622 = vadd.f32 %v3582, %v3604
      %v3623 = vadd.f32 %v3583, %v3605
      %v3624 = vadd.f32 %v3584, %v3606
      %v3625 = vadd.f32 %v3585, %v3607
      %v3626 = vadd.f32 %v3586, %v3608
      %v3627 = vadd.f32 %v3587, %v3609
      %v3628 = vadd.f32 %v3588, %v3610
      %v3629 = vadd.f32 %v3589, %v3611
      %v3630 = vadd.f32 %v3590, %v3612
      %v3631 = vld [vmem:[#allocation3 + $0x91] sm:$0xff]
      %v3632 = vld [vmem:[#allocation3 + $0x99] sm:$0xff]
      %v3633 = vld [vmem:[#allocation2 + $0x9] sm:$0x1]
      %v3634 = vperm.slane %v3633, 0
      %v3635 = vmul.f32 %v3313, %v3634
      %v3636 = vmul.f32 %v3314, %v3634
      %v3637 = vmul.f32 %v3315, %v3634
      %v3638 = vmul.f32 %v3316, %v3634
      %v3639 = vmul.f32 %v3317, %v3634
      %v3640 = vmul.f32 %v3318, %v3634
      %v3641 = vmul.f32 %v3319, %v3634
      %v3642 = vmul.f32 %v3320, %v3634
      %v3643 = vmul.f32 %v3321, %v3634
      %v3644 = vmul.f32 %v3322, %v3634
      %v3645 = vmul.f32 %v3323, %v3634
      %v3646 = vmul.f32 %v3324, %v3634
      %v3647 = vmul.f32 %v3325, %v3634
      %v3648 = vmul.f32 %v3326, %v3634
      %v3649 = vmul.f32 %v3327, %v3634
      %v3650 = vmul.f32 %v3328, %v3634
      %v3651 = vmul.f32 %v3631, %v3634
      %v3652 = vmul.f32 %v3632, %v3634
      %v3653 = vadd.f32 %v3613, %v3635
      %v3654 = vadd.f32 %v3614, %v3636
      %v3655 = vadd.f32 %v3615, %v3637
      %v3656 = vadd.f32 %v3616, %v3638
      %v3657 = vadd.f32 %v3617, %v3639
      %v3658 = vadd.f32 %v3618, %v3640
      %v3659 = vadd.f32 %v3619, %v3641
      %v3660 = vadd.f32 %v3620, %v3642
      %v3661 = vadd.f32 %v3621, %v3643
      %v3662 = vadd.f32 %v3622, %v3644
      %v3663 = vadd.f32 %v3623, %v3645
      %v3664 = vadd.f32 %v3624, %v3646
      %v3665 = vadd.f32 %v3625, %v3647
      %v3666 = vadd.f32 %v3626, %v3648
      %v3667 = vadd.f32 %v3627, %v3649
      %v3668 = vadd.f32 %v3628, %v3650
      %v3669 = vadd.f32 %v3629, %v3651
      %v3670 = vadd.f32 %v3630, %v3652
      %v3671 = vld [vmem:[#allocation3 + $0x92] sm:$0xff]
      %v3672 = vld [vmem:[#allocation3 + $0x9a] sm:$0xff]
      %v3673 = vld [vmem:[#allocation2 + $0xa] sm:$0x1]
      %v3674 = vperm.slane %v3673, 0
      %v3675 = vmul.f32 %v3369, %v3674
      %v3676 = vmul.f32 %v3370, %v3674
      %v3677 = vmul.f32 %v3371, %v3674
      %v3678 = vmul.f32 %v3372, %v3674
      %v3679 = vmul.f32 %v3373, %v3674
      %v3680 = vmul.f32 %v3374, %v3674
      %v3681 = vmul.f32 %v3375, %v3674
      %v3682 = vmul.f32 %v3376, %v3674
      %v3683 = vmul.f32 %v3377, %v3674
      %v3684 = vmul.f32 %v3378, %v3674
      %v3685 = vmul.f32 %v3379, %v3674
      %v3686 = vmul.f32 %v3380, %v3674
      %v3687 = vmul.f32 %v3381, %v3674
      %v3688 = vmul.f32 %v3382, %v3674
      %v3689 = vmul.f32 %v3383, %v3674
      %v3690 = vmul.f32 %v3384, %v3674
      %v3691 = vmul.f32 %v3671, %v3674
      %v3692 = vmul.f32 %v3672, %v3674
      %v3693 = vadd.f32 %v3653, %v3675
      %v3694 = vadd.f32 %v3654, %v3676
      %v3695 = vadd.f32 %v3655, %v3677
      %v3696 = vadd.f32 %v3656, %v3678
      %v3697 = vadd.f32 %v3657, %v3679
      %v3698 = vadd.f32 %v3658, %v3680
      %v3699 = vadd.f32 %v3659, %v3681
      %v3700 = vadd.f32 %v3660, %v3682
      %v3701 = vadd.f32 %v3661, %v3683
      %v3702 = vadd.f32 %v3662, %v3684
      %v3703 = vadd.f32 %v3663, %v3685
      %v3704 = vadd.f32 %v3664, %v3686
      %v3705 = vadd.f32 %v3665, %v3687
      %v3706 = vadd.f32 %v3666, %v3688
      %v3707 = vadd.f32 %v3667, %v3689
      %v3708 = vadd.f32 %v3668, %v3690
      %v3709 = vadd.f32 %v3669, %v3691
      %v3710 = vadd.f32 %v3670, %v3692
      %v3711 = vld [vmem:[#allocation3 + $0x93] sm:$0xff]
      %v3712 = vld [vmem:[#allocation3 + $0x9b] sm:$0xff]
      %v3713 = vld [vmem:[#allocation2 + $0xb] sm:$0x1]
      %v3714 = vperm.slane %v3713, 0
      %v3715 = vmul.f32 %v3425, %v3714
      %v3716 = vmul.f32 %v3426, %v3714
      %v3717 = vmul.f32 %v3427, %v3714
      %v3718 = vmul.f32 %v3428, %v3714
      %v3719 = vmul.f32 %v3429, %v3714
      %v3720 = vmul.f32 %v3430, %v3714
      %v3721 = vmul.f32 %v3431, %v3714
      %v3722 = vmul.f32 %v3432, %v3714
      %v3723 = vmul.f32 %v3433, %v3714
      %v3724 = vmul.f32 %v3434, %v3714
      %v3725 = vmul.f32 %v3435, %v3714
      %v3726 = vmul.f32 %v3436, %v3714
      %v3727 = vmul.f32 %v3437, %v3714
      %v3728 = vmul.f32 %v3438, %v3714
      %v3729 = vmul.f32 %v3439, %v3714
      %v3730 = vmul.f32 %v3440, %v3714
      %v3731 = vmul.f32 %v3711, %v3714
      %v3732 = vmul.f32 %v3712, %v3714
      %v3733 = vadd.f32 %v3693, %v3715
      %v3734 = vadd.f32 %v3694, %v3716
      %v3735 = vadd.f32 %v3695, %v3717
      %v3736 = vadd.f32 %v3696, %v3718
      %v3737 = vadd.f32 %v3697, %v3719
      %v3738 = vadd.f32 %v3698, %v3720
      %v3739 = vadd.f32 %v3699, %v3721
      %v3740 = vadd.f32 %v3700, %v3722
      %v3741 = vadd.f32 %v3701, %v3723
      %v3742 = vadd.f32 %v3702, %v3724
      %v3743 = vadd.f32 %v3703, %v3725
      %v3744 = vadd.f32 %v3704, %v3726
      %v3745 = vadd.f32 %v3705, %v3727
      %v3746 = vadd.f32 %v3706, %v3728
      %v3747 = vadd.f32 %v3707, %v3729
      %v3748 = vadd.f32 %v3708, %v3730
      %v3749 = vadd.f32 %v3709, %v3731
      %v3750 = vadd.f32 %v3710, %v3732
      %v3751 = vld [vmem:[#allocation3 + $0x94] sm:$0xff]
      %v3752 = vld [vmem:[#allocation3 + $0x9c] sm:$0xff]
      %v3753 = vld [vmem:[#allocation2 + $0xc] sm:$0x1]
      %v3754 = vperm.slane %v3753, 0
      %v3755 = vmul.f32 %v3481, %v3754
      %v3756 = vmul.f32 %v3482, %v3754
      %v3757 = vmul.f32 %v3483, %v3754
      %v3758 = vmul.f32 %v3484, %v3754
      %v3759 = vmul.f32 %v3485, %v3754
      %v3760 = vmul.f32 %v3486, %v3754
      %v3761 = vmul.f32 %v3487, %v3754
      %v3762 = vmul.f32 %v3488, %v3754
      %v3763 = vmul.f32 %v3489, %v3754
      %v3764 = vmul.f32 %v3490, %v3754
      %v3765 = vmul.f32 %v3491, %v3754
      %v3766 = vmul.f32 %v3492, %v3754
      %v3767 = vmul.f32 %v3493, %v3754
      %v3768 = vmul.f32 %v3494, %v3754
      %v3769 = vmul.f32 %v3495, %v3754
      %v3770 = vmul.f32 %v3496, %v3754
      %v3771 = vmul.f32 %v3751, %v3754
      %v3772 = vmul.f32 %v3752, %v3754
      %v3773 = vadd.f32 %v3733, %v3755
      %v3774 = vadd.f32 %v3734, %v3756
      %v3775 = vadd.f32 %v3735, %v3757
      %v3776 = vadd.f32 %v3736, %v3758
      %v3777 = vadd.f32 %v3737, %v3759
      %v3778 = vadd.f32 %v3738, %v3760
      %v3779 = vadd.f32 %v3739, %v3761
      %v3780 = vadd.f32 %v3740, %v3762
      %v3781 = vadd.f32 %v3741, %v3763
      %v3782 = vadd.f32 %v3742, %v3764
      %v3783 = vadd.f32 %v3743, %v3765
      %v3784 = vadd.f32 %v3744, %v3766
      %v3785 = vadd.f32 %v3745, %v3767
      %v3786 = vadd.f32 %v3746, %v3768
      %v3787 = vadd.f32 %v3747, %v3769
      %v3788 = vadd.f32 %v3748, %v3770
      %v3789 = vadd.f32 %v3749, %v3771
      %v3790 = vadd.f32 %v3750, %v3772
      %v3791 = vld [vmem:[#allocation3 + $0x95] sm:$0xff]
      %v3792 = vld [vmem:[#allocation3 + $0x9d] sm:$0xff]
      %v3793 = vld [vmem:[#allocation2 + $0xd] sm:$0x1]
      %v3794 = vperm.slane %v3793, 0
      %v3795 = vmul.f32 %v3537, %v3794
      %v3796 = vmul.f32 %v3538, %v3794
      %v3797 = vmul.f32 %v3539, %v3794
      %v3798 = vmul.f32 %v3540, %v3794
      %v3799 = vmul.f32 %v3541, %v3794
      %v3800 = vmul.f32 %v3542, %v3794
      %v3801 = vmul.f32 %v3543, %v3794
      %v3802 = vmul.f32 %v3544, %v3794
      %v3803 = vmul.f32 %v3545, %v3794
      %v3804 = vmul.f32 %v3546, %v3794
      %v3805 = vmul.f32 %v3547, %v3794
      %v3806 = vmul.f32 %v3548, %v3794
      %v3807 = vmul.f32 %v3549, %v3794
      %v3808 = vmul.f32 %v3550, %v3794
      %v3809 = vmul.f32 %v3551, %v3794
      %v3810 = vmul.f32 %v3552, %v3794
      %v3811 = vmul.f32 %v3791, %v3794
      %v3812 = vmul.f32 %v3792, %v3794
      %v3813 = vadd.f32 %v3773, %v3795
      %v3814 = vadd.f32 %v3774, %v3796
      %v3815 = vadd.f32 %v3775, %v3797
      %v3816 = vadd.f32 %v3776, %v3798
      %v3817 = vadd.f32 %v3777, %v3799
      %v3818 = vadd.f32 %v3778, %v3800
      %v3819 = vadd.f32 %v3779, %v3801
      %v3820 = vadd.f32 %v3780, %v3802
      %v3821 = vadd.f32 %v3781, %v3803
      %v3822 = vadd.f32 %v3782, %v3804
      %v3823 = vadd.f32 %v3783, %v3805
      %v3824 = vadd.f32 %v3784, %v3806
      %v3825 = vadd.f32 %v3785, %v3807
      %v3826 = vadd.f32 %v3786, %v3808
      %v3827 = vadd.f32 %v3787, %v3809
      %v3828 = vadd.f32 %v3788, %v3810
      %v3829 = vadd.f32 %v3789, %v3811
      %v3830 = vadd.f32 %v3790, %v3812
      %v3831 = vld [vmem:[#allocation3 + $0xa0] sm:$0xff]
      %v3832 = vld [vmem:[#allocation3 + $0xa8] sm:$0xff]
      %v3833 = vld [vmem:[#allocation2 + $0x10] sm:$0x1]
      %v3834 = vperm.slane %v3833, 0
      %v3835 = vmul.f32 %v3259, %v3834
      %v3836 = vmul.f32 %v3260, %v3834
      %v3837 = vmul.f32 %v3261, %v3834
      %v3838 = vmul.f32 %v3262, %v3834
      %v3839 = vmul.f32 %v3263, %v3834
      %v3840 = vmul.f32 %v3264, %v3834
      %v3841 = vmul.f32 %v3265, %v3834
      %v3842 = vmul.f32 %v3266, %v3834
      %v3843 = vmul.f32 %v3267, %v3834
      %v3844 = vmul.f32 %v3268, %v3834
      %v3845 = vmul.f32 %v3269, %v3834
      %v3846 = vmul.f32 %v3270, %v3834
      %v3847 = vmul.f32 %v3271, %v3834
      %v3848 = vmul.f32 %v3272, %v3834
      %v3849 = vmul.f32 %v3591, %v3834
      %v3850 = vmul.f32 %v3592, %v3834
      %v3851 = vmul.f32 %v3831, %v3834
      %v3852 = vmul.f32 %v3832, %v3834
      %v3853 = vadd.f32 %v3813, %v3835
      %v3854 = vadd.f32 %v3814, %v3836
      %v3855 = vadd.f32 %v3815, %v3837
      %v3856 = vadd.f32 %v3816, %v3838
      %v3857 = vadd.f32 %v3817, %v3839
      %v3858 = vadd.f32 %v3818, %v3840
      %v3859 = vadd.f32 %v3819, %v3841
      %v3860 = vadd.f32 %v3820, %v3842
      %v3861 = vadd.f32 %v3821, %v3843
      %v3862 = vadd.f32 %v3822, %v3844
      %v3863 = vadd.f32 %v3823, %v3845
      %v3864 = vadd.f32 %v3824, %v3846
      %v3865 = vadd.f32 %v3825, %v3847
      %v3866 = vadd.f32 %v3826, %v3848
      %v3867 = vadd.f32 %v3827, %v3849
      %v3868 = vadd.f32 %v3828, %v3850
      %v3869 = vadd.f32 %v3829, %v3851
      %v3870 = vadd.f32 %v3830, %v3852
      %v3871 = vld [vmem:[#allocation3 + $0xa1] sm:$0xff]
      %v3872 = vld [vmem:[#allocation3 + $0xa9] sm:$0xff]
      %v3873 = vld [vmem:[#allocation2 + $0x11] sm:$0x1]
      %v3874 = vperm.slane %v3873, 0
      %v3875 = vmul.f32 %v3315, %v3874
      %v3876 = vmul.f32 %v3316, %v3874
      %v3877 = vmul.f32 %v3317, %v3874
      %v3878 = vmul.f32 %v3318, %v3874
      %v3879 = vmul.f32 %v3319, %v3874
      %v3880 = vmul.f32 %v3320, %v3874
      %v3881 = vmul.f32 %v3321, %v3874
      %v3882 = vmul.f32 %v3322, %v3874
      %v3883 = vmul.f32 %v3323, %v3874
      %v3884 = vmul.f32 %v3324, %v3874
      %v3885 = vmul.f32 %v3325, %v3874
      %v3886 = vmul.f32 %v3326, %v3874
      %v3887 = vmul.f32 %v3327, %v3874
      %v3888 = vmul.f32 %v3328, %v3874
      %v3889 = vmul.f32 %v3631, %v3874
      %v3890 = vmul.f32 %v3632, %v3874
      %v3891 = vmul.f32 %v3871, %v3874
      %v3892 = vmul.f32 %v3872, %v3874
      %v3893 = vadd.f32 %v3853, %v3875
      %v3894 = vadd.f32 %v3854, %v3876
      %v3895 = vadd.f32 %v3855, %v3877
      %v3896 = vadd.f32 %v3856, %v3878
      %v3897 = vadd.f32 %v3857, %v3879
      %v3898 = vadd.f32 %v3858, %v3880
      %v3899 = vadd.f32 %v3859, %v3881
      %v3900 = vadd.f32 %v3860, %v3882
      %v3901 = vadd.f32 %v3861, %v3883
      %v3902 = vadd.f32 %v3862, %v3884
      %v3903 = vadd.f32 %v3863, %v3885
      %v3904 = vadd.f32 %v3864, %v3886
      %v3905 = vadd.f32 %v3865, %v3887
      %v3906 = vadd.f32 %v3866, %v3888
      %v3907 = vadd.f32 %v3867, %v3889
      %v3908 = vadd.f32 %v3868, %v3890
      %v3909 = vadd.f32 %v3869, %v3891
      %v3910 = vadd.f32 %v3870, %v3892
      %v3911 = vld [vmem:[#allocation3 + $0xa2] sm:$0xff]
      %v3912 = vld [vmem:[#allocation3 + $0xaa] sm:$0xff]
      %v3913 = vld [vmem:[#allocation2 + $0x12] sm:$0x1]
      %v3914 = vperm.slane %v3913, 0
      %v3915 = vmul.f32 %v3371, %v3914
      %v3916 = vmul.f32 %v3372, %v3914
      %v3917 = vmul.f32 %v3373, %v3914
      %v3918 = vmul.f32 %v3374, %v3914
      %v3919 = vmul.f32 %v3375, %v3914
      %v3920 = vmul.f32 %v3376, %v3914
      %v3921 = vmul.f32 %v3377, %v3914
      %v3922 = vmul.f32 %v3378, %v3914
      %v3923 = vmul.f32 %v3379, %v3914
      %v3924 = vmul.f32 %v3380, %v3914
      %v3925 = vmul.f32 %v3381, %v3914
      %v3926 = vmul.f32 %v3382, %v3914
      %v3927 = vmul.f32 %v3383, %v3914
      %v3928 = vmul.f32 %v3384, %v3914
      %v3929 = vmul.f32 %v3671, %v3914
      %v3930 = vmul.f32 %v3672, %v3914
      %v3931 = vmul.f32 %v3911, %v3914
      %v3932 = vmul.f32 %v3912, %v3914
      %v3933 = vadd.f32 %v3893, %v3915
      %v3934 = vadd.f32 %v3894, %v3916
      %v3935 = vadd.f32 %v3895, %v3917
      %v3936 = vadd.f32 %v3896, %v3918
      %v3937 = vadd.f32 %v3897, %v3919
      %v3938 = vadd.f32 %v3898, %v3920
      %v3939 = vadd.f32 %v3899, %v3921
      %v3940 = vadd.f32 %v3900, %v3922
      %v3941 = vadd.f32 %v3901, %v3923
      %v3942 = vadd.f32 %v3902, %v3924
      %v3943 = vadd.f32 %v3903, %v3925
      %v3944 = vadd.f32 %v3904, %v3926
      %v3945 = vadd.f32 %v3905, %v3927
      %v3946 = vadd.f32 %v3906, %v3928
      %v3947 = vadd.f32 %v3907, %v3929
      %v3948 = vadd.f32 %v3908, %v3930
      %v3949 = vadd.f32 %v3909, %v3931
      %v3950 = vadd.f32 %v3910, %v3932
      %v3951 = vld [vmem:[#allocation3 + $0xa3] sm:$0xff]
      %v3952 = vld [vmem:[#allocation3 + $0xab] sm:$0xff]
      %v3953 = vld [vmem:[#allocation2 + $0x13] sm:$0x1]
      %v3954 = vperm.slane %v3953, 0
      %v3955 = vmul.f32 %v3427, %v3954
      %v3956 = vmul.f32 %v3428, %v3954
      %v3957 = vmul.f32 %v3429, %v3954
      %v3958 = vmul.f32 %v3430, %v3954
      %v3959 = vmul.f32 %v3431, %v3954
      %v3960 = vmul.f32 %v3432, %v3954
      %v3961 = vmul.f32 %v3433, %v3954
      %v3962 = vmul.f32 %v3434, %v3954
      %v3963 = vmul.f32 %v3435, %v3954
      %v3964 = vmul.f32 %v3436, %v3954
      %v3965 = vmul.f32 %v3437, %v3954
      %v3966 = vmul.f32 %v3438, %v3954
      %v3967 = vmul.f32 %v3439, %v3954
      %v3968 = vmul.f32 %v3440, %v3954
      %v3969 = vmul.f32 %v3711, %v3954
      %v3970 = vmul.f32 %v3712, %v3954
      %v3971 = vmul.f32 %v3951, %v3954
      %v3972 = vmul.f32 %v3952, %v3954
      %v3973 = vadd.f32 %v3933, %v3955
      %v3974 = vadd.f32 %v3934, %v3956
      %v3975 = vadd.f32 %v3935, %v3957
      %v3976 = vadd.f32 %v3936, %v3958
      %v3977 = vadd.f32 %v3937, %v3959
      %v3978 = vadd.f32 %v3938, %v3960
      %v3979 = vadd.f32 %v3939, %v3961
      %v3980 = vadd.f32 %v3940, %v3962
      %v3981 = vadd.f32 %v3941, %v3963
      %v3982 = vadd.f32 %v3942, %v3964
      %v3983 = vadd.f32 %v3943, %v3965
      %v3984 = vadd.f32 %v3944, %v3966
      %v3985 = vadd.f32 %v3945, %v3967
      %v3986 = vadd.f32 %v3946, %v3968
      %v3987 = vadd.f32 %v3947, %v3969
      %v3988 = vadd.f32 %v3948, %v3970
      %v3989 = vadd.f32 %v3949, %v3971
      %v3990 = vadd.f32 %v3950, %v3972
      %v3991 = vld [vmem:[#allocation3 + $0xa4] sm:$0xff]
      %v3992 = vld [vmem:[#allocation3 + $0xac] sm:$0xff]
      %v3993 = vld [vmem:[#allocation2 + $0x14] sm:$0x1]
      %v3994 = vperm.slane %v3993, 0
      %v3995 = vmul.f32 %v3483, %v3994
      %v3996 = vmul.f32 %v3484, %v3994
      %v3997 = vmul.f32 %v3485, %v3994
      %v3998 = vmul.f32 %v3486, %v3994
      %v3999 = vmul.f32 %v3487, %v3994
      %v4000 = vmul.f32 %v3488, %v3994
      %v4001 = vmul.f32 %v3489, %v3994
      %v4002 = vmul.f32 %v3490, %v3994
      %v4003 = vmul.f32 %v3491, %v3994
      %v4004 = vmul.f32 %v3492, %v3994
      %v4005 = vmul.f32 %v3493, %v3994
      %v4006 = vmul.f32 %v3494, %v3994
      %v4007 = vmul.f32 %v3495, %v3994
      %v4008 = vmul.f32 %v3496, %v3994
      %v4009 = vmul.f32 %v3751, %v3994
      %v4010 = vmul.f32 %v3752, %v3994
      %v4011 = vmul.f32 %v3991, %v3994
      %v4012 = vmul.f32 %v3992, %v3994
      %v4013 = vadd.f32 %v3973, %v3995
      %v4014 = vadd.f32 %v3974, %v3996
      %v4015 = vadd.f32 %v3975, %v3997
      %v4016 = vadd.f32 %v3976, %v3998
      %v4017 = vadd.f32 %v3977, %v3999
      %v4018 = vadd.f32 %v3978, %v4000
      %v4019 = vadd.f32 %v3979, %v4001
      %v4020 = vadd.f32 %v3980, %v4002
      %v4021 = vadd.f32 %v3981, %v4003
      %v4022 = vadd.f32 %v3982, %v4004
      %v4023 = vadd.f32 %v3983, %v4005
      %v4024 = vadd.f32 %v3984, %v4006
      %v4025 = vadd.f32 %v3985, %v4007
      %v4026 = vadd.f32 %v3986, %v4008
      %v4027 = vadd.f32 %v3987, %v4009
      %v4028 = vadd.f32 %v3988, %v4010
      %v4029 = vadd.f32 %v3989, %v4011
      %v4030 = vadd.f32 %v3990, %v4012
      %v4031 = vld [vmem:[#allocation3 + $0xa5] sm:$0xff]
      %v4032 = vld [vmem:[#allocation3 + $0xad] sm:$0xff]
      %v4033 = vld [vmem:[#allocation2 + $0x15] sm:$0x1]
      %v4034 = vperm.slane %v4033, 0
      %v4035 = vmul.f32 %v3539, %v4034
      %v4036 = vmul.f32 %v3540, %v4034
      %v4037 = vmul.f32 %v3541, %v4034
      %v4038 = vmul.f32 %v3542, %v4034
      %v4039 = vmul.f32 %v3543, %v4034
      %v4040 = vmul.f32 %v3544, %v4034
      %v4041 = vmul.f32 %v3545, %v4034
      %v4042 = vmul.f32 %v3546, %v4034
      %v4043 = vmul.f32 %v3547, %v4034
      %v4044 = vmul.f32 %v3548, %v4034
      %v4045 = vmul.f32 %v3549, %v4034
      %v4046 = vmul.f32 %v3550, %v4034
      %v4047 = vmul.f32 %v3551, %v4034
      %v4048 = vmul.f32 %v3552, %v4034
      %v4049 = vmul.f32 %v3791, %v4034
      %v4050 = vmul.f32 %v3792, %v4034
      %v4051 = vmul.f32 %v4031, %v4034
      %v4052 = vmul.f32 %v4032, %v4034
      %v4053 = vadd.f32 %v4013, %v4035
      %v4054 = vadd.f32 %v4014, %v4036
      %v4055 = vadd.f32 %v4015, %v4037
      %v4056 = vadd.f32 %v4016, %v4038
      %v4057 = vadd.f32 %v4017, %v4039
      %v4058 = vadd.f32 %v4018, %v4040
      %v4059 = vadd.f32 %v4019, %v4041
      %v4060 = vadd.f32 %v4020, %v4042
      %v4061 = vadd.f32 %v4021, %v4043
      %v4062 = vadd.f32 %v4022, %v4044
      %v4063 = vadd.f32 %v4023, %v4045
      %v4064 = vadd.f32 %v4024, %v4046
      %v4065 = vadd.f32 %v4025, %v4047
      %v4066 = vadd.f32 %v4026, %v4048
      %v4067 = vadd.f32 %v4027, %v4049
      %v4068 = vadd.f32 %v4028, %v4050
      %v4069 = vadd.f32 %v4029, %v4051
      %v4070 = vadd.f32 %v4030, %v4052
      %v4071 = vld [vmem:[#allocation3 + $0xb0] sm:$0xff]
      %v4072 = vld [vmem:[#allocation3 + $0xb8] sm:$0xff]
      %v4073 = vld [vmem:[#allocation2 + $0x18] sm:$0x1]
      %v4074 = vperm.slane %v4073, 0
      %v4075 = vmul.f32 %v3261, %v4074
      %v4076 = vmul.f32 %v3262, %v4074
      %v4077 = vmul.f32 %v3263, %v4074
      %v4078 = vmul.f32 %v3264, %v4074
      %v4079 = vmul.f32 %v3265, %v4074
      %v4080 = vmul.f32 %v3266, %v4074
      %v4081 = vmul.f32 %v3267, %v4074
      %v4082 = vmul.f32 %v3268, %v4074
      %v4083 = vmul.f32 %v3269, %v4074
      %v4084 = vmul.f32 %v3270, %v4074
      %v4085 = vmul.f32 %v3271, %v4074
      %v4086 = vmul.f32 %v3272, %v4074
      %v4087 = vmul.f32 %v3591, %v4074
      %v4088 = vmul.f32 %v3592, %v4074
      %v4089 = vmul.f32 %v3831, %v4074
      %v4090 = vmul.f32 %v3832, %v4074
      %v4091 = vmul.f32 %v4071, %v4074
      %v4092 = vmul.f32 %v4072, %v4074
      %v4093 = vadd.f32 %v4053, %v4075
      %v4094 = vadd.f32 %v4054, %v4076
      %v4095 = vadd.f32 %v4055, %v4077
      %v4096 = vadd.f32 %v4056, %v4078
      %v4097 = vadd.f32 %v4057, %v4079
      %v4098 = vadd.f32 %v4058, %v4080
      %v4099 = vadd.f32 %v4059, %v4081
      %v4100 = vadd.f32 %v4060, %v4082
      %v4101 = vadd.f32 %v4061, %v4083
      %v4102 = vadd.f32 %v4062, %v4084
      %v4103 = vadd.f32 %v4063, %v4085
      %v4104 = vadd.f32 %v4064, %v4086
      %v4105 = vadd.f32 %v4065, %v4087
      %v4106 = vadd.f32 %v4066, %v4088
      %v4107 = vadd.f32 %v4067, %v4089
      %v4108 = vadd.f32 %v4068, %v4090
      %v4109 = vadd.f32 %v4069, %v4091
      %v4110 = vadd.f32 %v4070, %v4092
      %v4111 = vld [vmem:[#allocation3 + $0xb1] sm:$0xff]
      %v4112 = vld [vmem:[#allocation3 + $0xb9] sm:$0xff]
      %v4113 = vld [vmem:[#allocation2 + $0x19] sm:$0x1]
      %v4114 = vperm.slane %v4113, 0
      %v4115 = vmul.f32 %v3317, %v4114
      %v4116 = vmul.f32 %v3318, %v4114
      %v4117 = vmul.f32 %v3319, %v4114
      %v4118 = vmul.f32 %v3320, %v4114
      %v4119 = vmul.f32 %v3321, %v4114
      %v4120 = vmul.f32 %v3322, %v4114
      %v4121 = vmul.f32 %v3323, %v4114
      %v4122 = vmul.f32 %v3324, %v4114
      %v4123 = vmul.f32 %v3325, %v4114
      %v4124 = vmul.f32 %v3326, %v4114
      %v4125 = vmul.f32 %v3327, %v4114
      %v4126 = vmul.f32 %v3328, %v4114
      %v4127 = vmul.f32 %v3631, %v4114
      %v4128 = vmul.f32 %v3632, %v4114
      %v4129 = vmul.f32 %v3871, %v4114
      %v4130 = vmul.f32 %v3872, %v4114
      %v4131 = vmul.f32 %v4111, %v4114
      %v4132 = vmul.f32 %v4112, %v4114
      %v4133 = vadd.f32 %v4093, %v4115
      %v4134 = vadd.f32 %v4094, %v4116
      %v4135 = vadd.f32 %v4095, %v4117
      %v4136 = vadd.f32 %v4096, %v4118
      %v4137 = vadd.f32 %v4097, %v4119
      %v4138 = vadd.f32 %v4098, %v4120
      %v4139 = vadd.f32 %v4099, %v4121
      %v4140 = vadd.f32 %v4100, %v4122
      %v4141 = vadd.f32 %v4101, %v4123
      %v4142 = vadd.f32 %v4102, %v4124
      %v4143 = vadd.f32 %v4103, %v4125
      %v4144 = vadd.f32 %v4104, %v4126
      %v4145 = vadd.f32 %v4105, %v4127
      %v4146 = vadd.f32 %v4106, %v4128
      %v4147 = vadd.f32 %v4107, %v4129
      %v4148 = vadd.f32 %v4108, %v4130
      %v4149 = vadd.f32 %v4109, %v4131
      %v4150 = vadd.f32 %v4110, %v4132
      %v4151 = vld [vmem:[#allocation3 + $0xb2] sm:$0xff]
      %v4152 = vld [vmem:[#allocation3 + $0xba] sm:$0xff]
      %v4153 = vld [vmem:[#allocation2 + $0x1a] sm:$0x1]
      %v4154 = vperm.slane %v4153, 0
      %v4155 = vmul.f32 %v3373, %v4154
      %v4156 = vmul.f32 %v3374, %v4154
      %v4157 = vmul.f32 %v3375, %v4154
      %v4158 = vmul.f32 %v3376, %v4154
      %v4159 = vmul.f32 %v3377, %v4154
      %v4160 = vmul.f32 %v3378, %v4154
      %v4161 = vmul.f32 %v3379, %v4154
      %v4162 = vmul.f32 %v3380, %v4154
      %v4163 = vmul.f32 %v3381, %v4154
      %v4164 = vmul.f32 %v3382, %v4154
      %v4165 = vmul.f32 %v3383, %v4154
      %v4166 = vmul.f32 %v3384, %v4154
      %v4167 = vmul.f32 %v3671, %v4154
      %v4168 = vmul.f32 %v3672, %v4154
      %v4169 = vmul.f32 %v3911, %v4154
      %v4170 = vmul.f32 %v3912, %v4154
      %v4171 = vmul.f32 %v4151, %v4154
      %v4172 = vmul.f32 %v4152, %v4154
      %v4173 = vadd.f32 %v4133, %v4155
      %v4174 = vadd.f32 %v4134, %v4156
      %v4175 = vadd.f32 %v4135, %v4157
      %v4176 = vadd.f32 %v4136, %v4158
      %v4177 = vadd.f32 %v4137, %v4159
      %v4178 = vadd.f32 %v4138, %v4160
      %v4179 = vadd.f32 %v4139, %v4161
      %v4180 = vadd.f32 %v4140, %v4162
      %v4181 = vadd.f32 %v4141, %v4163
      %v4182 = vadd.f32 %v4142, %v4164
      %v4183 = vadd.f32 %v4143, %v4165
      %v4184 = vadd.f32 %v4144, %v4166
      %v4185 = vadd.f32 %v4145, %v4167
      %v4186 = vadd.f32 %v4146, %v4168
      %v4187 = vadd.f32 %v4147, %v4169
      %v4188 = vadd.f32 %v4148, %v4170
      %v4189 = vadd.f32 %v4149, %v4171
      %v4190 = vadd.f32 %v4150, %v4172
      %v4191 = vld [vmem:[#allocation3 + $0xb3] sm:$0xff]
      %v4192 = vld [vmem:[#allocation3 + $0xbb] sm:$0xff]
      %v4193 = vld [vmem:[#allocation2 + $0x1b] sm:$0x1]
      %v4194 = vperm.slane %v4193, 0
      %v4195 = vmul.f32 %v3429, %v4194
      %v4196 = vmul.f32 %v3430, %v4194
      %v4197 = vmul.f32 %v3431, %v4194
      %v4198 = vmul.f32 %v3432, %v4194
      %v4199 = vmul.f32 %v3433, %v4194
      %v4200 = vmul.f32 %v3434, %v4194
      %v4201 = vmul.f32 %v3435, %v4194
      %v4202 = vmul.f32 %v3436, %v4194
      %v4203 = vmul.f32 %v3437, %v4194
      %v4204 = vmul.f32 %v3438, %v4194
      %v4205 = vmul.f32 %v3439, %v4194
      %v4206 = vmul.f32 %v3440, %v4194
      %v4207 = vmul.f32 %v3711, %v4194
      %v4208 = vmul.f32 %v3712, %v4194
      %v4209 = vmul.f32 %v3951, %v4194
      %v4210 = vmul.f32 %v3952, %v4194
      %v4211 = vmul.f32 %v4191, %v4194
      %v4212 = vmul.f32 %v4192, %v4194
      %v4213 = vadd.f32 %v4173, %v4195
      %v4214 = vadd.f32 %v4174, %v4196
      %v4215 = vadd.f32 %v4175, %v4197
      %v4216 = vadd.f32 %v4176, %v4198
      %v4217 = vadd.f32 %v4177, %v4199
      %v4218 = vadd.f32 %v4178, %v4200
      %v4219 = vadd.f32 %v4179, %v4201
      %v4220 = vadd.f32 %v4180, %v4202
      %v4221 = vadd.f32 %v4181, %v4203
      %v4222 = vadd.f32 %v4182, %v4204
      %v4223 = vadd.f32 %v4183, %v4205
      %v4224 = vadd.f32 %v4184, %v4206
      %v4225 = vadd.f32 %v4185, %v4207
      %v4226 = vadd.f32 %v4186, %v4208
      %v4227 = vadd.f32 %v4187, %v4209
      %v4228 = vadd.f32 %v4188, %v4210
      %v4229 = vadd.f32 %v4189, %v4211
      %v4230 = vadd.f32 %v4190, %v4212
      %v4231 = vld [vmem:[#allocation3 + $0xb4] sm:$0xff]
      %v4232 = vld [vmem:[#allocation3 + $0xbc] sm:$0xff]
      %v4233 = vld [vmem:[#allocation2 + $0x1c] sm:$0x1]
      %v4234 = vperm.slane %v4233, 0
      %v4235 = vmul.f32 %v3485, %v4234
      %v4236 = vmul.f32 %v3486, %v4234
      %v4237 = vmul.f32 %v3487, %v4234
      %v4238 = vmul.f32 %v3488, %v4234
      %v4239 = vmul.f32 %v3489, %v4234
      %v4240 = vmul.f32 %v3490, %v4234
      %v4241 = vmul.f32 %v3491, %v4234
      %v4242 = vmul.f32 %v3492, %v4234
      %v4243 = vmul.f32 %v3493, %v4234
      %v4244 = vmul.f32 %v3494, %v4234
      %v4245 = vmul.f32 %v3495, %v4234
      %v4246 = vmul.f32 %v3496, %v4234
      %v4247 = vmul.f32 %v3751, %v4234
      %v4248 = vmul.f32 %v3752, %v4234
      %v4249 = vmul.f32 %v3991, %v4234
      %v4250 = vmul.f32 %v3992, %v4234
      %v4251 = vmul.f32 %v4231, %v4234
      %v4252 = vmul.f32 %v4232, %v4234
      %v4253 = vadd.f32 %v4213, %v4235
      %v4254 = vadd.f32 %v4214, %v4236
      %v4255 = vadd.f32 %v4215, %v4237
      %v4256 = vadd.f32 %v4216, %v4238
      %v4257 = vadd.f32 %v4217, %v4239
      %v4258 = vadd.f32 %v4218, %v4240
      %v4259 = vadd.f32 %v4219, %v4241
      %v4260 = vadd.f32 %v4220, %v4242
      %v4261 = vadd.f32 %v4221, %v4243
      %v4262 = vadd.f32 %v4222, %v4244
      %v4263 = vadd.f32 %v4223, %v4245
      %v4264 = vadd.f32 %v4224, %v4246
      %v4265 = vadd.f32 %v4225, %v4247
      %v4266 = vadd.f32 %v4226, %v4248
      %v4267 = vadd.f32 %v4227, %v4249
      %v4268 = vadd.f32 %v4228, %v4250
      %v4269 = vadd.f32 %v4229, %v4251
      %v4270 = vadd.f32 %v4230, %v4252
      %v4271 = vld [vmem:[#allocation3 + $0xb5] sm:$0xff]
      %v4272 = vld [vmem:[#allocation3 + $0xbd] sm:$0xff]
      %v4273 = vld [vmem:[#allocation2 + $0x1d] sm:$0x1]
      %v4274 = vperm.slane %v4273, 0
      %v4275 = vmul.f32 %v3541, %v4274
      %v4276 = vmul.f32 %v3542, %v4274
      %v4277 = vmul.f32 %v3543, %v4274
      %v4278 = vmul.f32 %v3544, %v4274
      %v4279 = vmul.f32 %v3545, %v4274
      %v4280 = vmul.f32 %v3546, %v4274
      %v4281 = vmul.f32 %v3547, %v4274
      %v4282 = vmul.f32 %v3548, %v4274
      %v4283 = vmul.f32 %v3549, %v4274
      %v4284 = vmul.f32 %v3550, %v4274
      %v4285 = vmul.f32 %v3551, %v4274
      %v4286 = vmul.f32 %v3552, %v4274
      %v4287 = vmul.f32 %v3791, %v4274
      %v4288 = vmul.f32 %v3792, %v4274
      %v4289 = vmul.f32 %v4031, %v4274
      %v4290 = vmul.f32 %v4032, %v4274
      %v4291 = vmul.f32 %v4271, %v4274
      %v4292 = vmul.f32 %v4272, %v4274
      %v4293 = vadd.f32 %v4253, %v4275
      %v4294 = vadd.f32 %v4254, %v4276
      %v4295 = vadd.f32 %v4255, %v4277
      %v4296 = vadd.f32 %v4256, %v4278
      %v4297 = vadd.f32 %v4257, %v4279
      %v4298 = vadd.f32 %v4258, %v4280
      %v4299 = vadd.f32 %v4259, %v4281
      %v4300 = vadd.f32 %v4260, %v4282
      %v4301 = vadd.f32 %v4261, %v4283
      %v4302 = vadd.f32 %v4262, %v4284
      %v4303 = vadd.f32 %v4263, %v4285
      %v4304 = vadd.f32 %v4264, %v4286
      %v4305 = vadd.f32 %v4265, %v4287
      %v4306 = vadd.f32 %v4266, %v4288
      %v4307 = vadd.f32 %v4267, %v4289
      %v4308 = vadd.f32 %v4268, %v4290
      %v4309 = vadd.f32 %v4269, %v4291
      %v4310 = vadd.f32 %v4270, %v4292
      %v4311 = vld [vmem:[#allocation3 + $0xc0] sm:$0xff]
      %v4312 = vld [vmem:[#allocation3 + $0xc8] sm:$0xff]
      %v4313 = vld [vmem:[#allocation2 + $0x20] sm:$0x1]
      %v4314 = vperm.slane %v4313, 0
      %v4315 = vmul.f32 %v3263, %v4314
      %v4316 = vmul.f32 %v3264, %v4314
      %v4317 = vmul.f32 %v3265, %v4314
      %v4318 = vmul.f32 %v3266, %v4314
      %v4319 = vmul.f32 %v3267, %v4314
      %v4320 = vmul.f32 %v3268, %v4314
      %v4321 = vmul.f32 %v3269, %v4314
      %v4322 = vmul.f32 %v3270, %v4314
      %v4323 = vmul.f32 %v3271, %v4314
      %v4324 = vmul.f32 %v3272, %v4314
      %v4325 = vmul.f32 %v3591, %v4314
      %v4326 = vmul.f32 %v3592, %v4314
      %v4327 = vmul.f32 %v3831, %v4314
      %v4328 = vmul.f32 %v3832, %v4314
      %v4329 = vmul.f32 %v4071, %v4314
      %v4330 = vmul.f32 %v4072, %v4314
      %v4331 = vmul.f32 %v4311, %v4314
      %v4332 = vmul.f32 %v4312, %v4314
      %v4333 = vadd.f32 %v4293, %v4315
      %v4334 = vadd.f32 %v4294, %v4316
      %v4335 = vadd.f32 %v4295, %v4317
      %v4336 = vadd.f32 %v4296, %v4318
      %v4337 = vadd.f32 %v4297, %v4319
      %v4338 = vadd.f32 %v4298, %v4320
      %v4339 = vadd.f32 %v4299, %v4321
      %v4340 = vadd.f32 %v4300, %v4322
      %v4341 = vadd.f32 %v4301, %v4323
      %v4342 = vadd.f32 %v4302, %v4324
      %v4343 = vadd.f32 %v4303, %v4325
      %v4344 = vadd.f32 %v4304, %v4326
      %v4345 = vadd.f32 %v4305, %v4327
      %v4346 = vadd.f32 %v4306, %v4328
      %v4347 = vadd.f32 %v4307, %v4329
      %v4348 = vadd.f32 %v4308, %v4330
      %v4349 = vadd.f32 %v4309, %v4331
      %v4350 = vadd.f32 %v4310, %v4332
      %v4351 = vld [vmem:[#allocation3 + $0xc1] sm:$0xff]
      %v4352 = vld [vmem:[#allocation3 + $0xc9] sm:$0xff]
      %v4353 = vld [vmem:[#allocation2 + $0x21] sm:$0x1]
      %v4354 = vperm.slane %v4353, 0
      %v4355 = vmul.f32 %v3319, %v4354
      %v4356 = vmul.f32 %v3320, %v4354
      %v4357 = vmul.f32 %v3321, %v4354
      %v4358 = vmul.f32 %v3322, %v4354
      %v4359 = vmul.f32 %v3323, %v4354
      %v4360 = vmul.f32 %v3324, %v4354
      %v4361 = vmul.f32 %v3325, %v4354
      %v4362 = vmul.f32 %v3326, %v4354
      %v4363 = vmul.f32 %v3327, %v4354
      %v4364 = vmul.f32 %v3328, %v4354
      %v4365 = vmul.f32 %v3631, %v4354
      %v4366 = vmul.f32 %v3632, %v4354
      %v4367 = vmul.f32 %v3871, %v4354
      %v4368 = vmul.f32 %v3872, %v4354
      %v4369 = vmul.f32 %v4111, %v4354
      %v4370 = vmul.f32 %v4112, %v4354
      %v4371 = vmul.f32 %v4351, %v4354
      %v4372 = vmul.f32 %v4352, %v4354
      %v4373 = vadd.f32 %v4333, %v4355
      %v4374 = vadd.f32 %v4334, %v4356
      %v4375 = vadd.f32 %v4335, %v4357
      %v4376 = vadd.f32 %v4336, %v4358
      %v4377 = vadd.f32 %v4337, %v4359
      %v4378 = vadd.f32 %v4338, %v4360
      %v4379 = vadd.f32 %v4339, %v4361
      %v4380 = vadd.f32 %v4340, %v4362
      %v4381 = vadd.f32 %v4341, %v4363
      %v4382 = vadd.f32 %v4342, %v4364
      %v4383 = vadd.f32 %v4343, %v4365
      %v4384 = vadd.f32 %v4344, %v4366
      %v4385 = vadd.f32 %v4345, %v4367
      %v4386 = vadd.f32 %v4346, %v4368
      %v4387 = vadd.f32 %v4347, %v4369
      %v4388 = vadd.f32 %v4348, %v4370
      %v4389 = vadd.f32 %v4349, %v4371
      %v4390 = vadd.f32 %v4350, %v4372
      %v4391 = vld [vmem:[#allocation3 + $0xc2] sm:$0xff]
      %v4392 = vld [vmem:[#allocation3 + $0xca] sm:$0xff]
      %v4393 = vld [vmem:[#allocation2 + $0x22] sm:$0x1]
      %v4394 = vperm.slane %v4393, 0
      %v4395 = vmul.f32 %v3375, %v4394
      %v4396 = vmul.f32 %v3376, %v4394
      %v4397 = vmul.f32 %v3377, %v4394
      %v4398 = vmul.f32 %v3378, %v4394
      %v4399 = vmul.f32 %v3379, %v4394
      %v4400 = vmul.f32 %v3380, %v4394
      %v4401 = vmul.f32 %v3381, %v4394
      %v4402 = vmul.f32 %v3382, %v4394
      %v4403 = vmul.f32 %v3383, %v4394
      %v4404 = vmul.f32 %v3384, %v4394
      %v4405 = vmul.f32 %v3671, %v4394
      %v4406 = vmul.f32 %v3672, %v4394
      %v4407 = vmul.f32 %v3911, %v4394
      %v4408 = vmul.f32 %v3912, %v4394
      %v4409 = vmul.f32 %v4151, %v4394
      %v4410 = vmul.f32 %v4152, %v4394
      %v4411 = vmul.f32 %v4391, %v4394
      %v4412 = vmul.f32 %v4392, %v4394
      %v4413 = vadd.f32 %v4373, %v4395
      %v4414 = vadd.f32 %v4374, %v4396
      %v4415 = vadd.f32 %v4375, %v4397
      %v4416 = vadd.f32 %v4376, %v4398
      %v4417 = vadd.f32 %v4377, %v4399
      %v4418 = vadd.f32 %v4378, %v4400
      %v4419 = vadd.f32 %v4379, %v4401
      %v4420 = vadd.f32 %v4380, %v4402
      %v4421 = vadd.f32 %v4381, %v4403
      %v4422 = vadd.f32 %v4382, %v4404
      %v4423 = vadd.f32 %v4383, %v4405
      %v4424 = vadd.f32 %v4384, %v4406
      %v4425 = vadd.f32 %v4385, %v4407
      %v4426 = vadd.f32 %v4386, %v4408
      %v4427 = vadd.f32 %v4387, %v4409
      %v4428 = vadd.f32 %v4388, %v4410
      %v4429 = vadd.f32 %v4389, %v4411
      %v4430 = vadd.f32 %v4390, %v4412
      %v4431 = vld [vmem:[#allocation3 + $0xc3] sm:$0xff]
      %v4432 = vld [vmem:[#allocation3 + $0xcb] sm:$0xff]
      %v4433 = vld [vmem:[#allocation2 + $0x23] sm:$0x1]
      %v4434 = vperm.slane %v4433, 0
      %v4435 = vmul.f32 %v3431, %v4434
      %v4436 = vmul.f32 %v3432, %v4434
      %v4437 = vmul.f32 %v3433, %v4434
      %v4438 = vmul.f32 %v3434, %v4434
      %v4439 = vmul.f32 %v3435, %v4434
      %v4440 = vmul.f32 %v3436, %v4434
      %v4441 = vmul.f32 %v3437, %v4434
      %v4442 = vmul.f32 %v3438, %v4434
      %v4443 = vmul.f32 %v3439, %v4434
      %v4444 = vmul.f32 %v3440, %v4434
      %v4445 = vmul.f32 %v3711, %v4434
      %v4446 = vmul.f32 %v3712, %v4434
      %v4447 = vmul.f32 %v3951, %v4434
      %v4448 = vmul.f32 %v3952, %v4434
      %v4449 = vmul.f32 %v4191, %v4434
      %v4450 = vmul.f32 %v4192, %v4434
      %v4451 = vmul.f32 %v4431, %v4434
      %v4452 = vmul.f32 %v4432, %v4434
      %v4453 = vadd.f32 %v4413, %v4435
      %v4454 = vadd.f32 %v4414, %v4436
      %v4455 = vadd.f32 %v4415, %v4437
      %v4456 = vadd.f32 %v4416, %v4438
      %v4457 = vadd.f32 %v4417, %v4439
      %v4458 = vadd.f32 %v4418, %v4440
      %v4459 = vadd.f32 %v4419, %v4441
      %v4460 = vadd.f32 %v4420, %v4442
      %v4461 = vadd.f32 %v4421, %v4443
      %v4462 = vadd.f32 %v4422, %v4444
      %v4463 = vadd.f32 %v4423, %v4445
      %v4464 = vadd.f32 %v4424, %v4446
      %v4465 = vadd.f32 %v4425, %v4447
      %v4466 = vadd.f32 %v4426, %v4448
      %v4467 = vadd.f32 %v4427, %v4449
      %v4468 = vadd.f32 %v4428, %v4450
      %v4469 = vadd.f32 %v4429, %v4451
      %v4470 = vadd.f32 %v4430, %v4452
      %v4471 = vld [vmem:[#allocation3 + $0xc4] sm:$0xff]
      %v4472 = vld [vmem:[#allocation3 + $0xcc] sm:$0xff]
      %v4473 = vld [vmem:[#allocation2 + $0x24] sm:$0x1]
      %v4474 = vperm.slane %v4473, 0
      %v4475 = vmul.f32 %v3487, %v4474
      %v4476 = vmul.f32 %v3488, %v4474
      %v4477 = vmul.f32 %v3489, %v4474
      %v4478 = vmul.f32 %v3490, %v4474
      %v4479 = vmul.f32 %v3491, %v4474
      %v4480 = vmul.f32 %v3492, %v4474
      %v4481 = vmul.f32 %v3493, %v4474
      %v4482 = vmul.f32 %v3494, %v4474
      %v4483 = vmul.f32 %v3495, %v4474
      %v4484 = vmul.f32 %v3496, %v4474
      %v4485 = vmul.f32 %v3751, %v4474
      %v4486 = vmul.f32 %v3752, %v4474
      %v4487 = vmul.f32 %v3991, %v4474
      %v4488 = vmul.f32 %v3992, %v4474
      %v4489 = vmul.f32 %v4231, %v4474
      %v4490 = vmul.f32 %v4232, %v4474
      %v4491 = vmul.f32 %v4471, %v4474
      %v4492 = vmul.f32 %v4472, %v4474
      %v4493 = vadd.f32 %v4453, %v4475
      %v4494 = vadd.f32 %v4454, %v4476
      %v4495 = vadd.f32 %v4455, %v4477
      %v4496 = vadd.f32 %v4456, %v4478
      %v4497 = vadd.f32 %v4457, %v4479
      %v4498 = vadd.f32 %v4458, %v4480
      %v4499 = vadd.f32 %v4459, %v4481
      %v4500 = vadd.f32 %v4460, %v4482
      %v4501 = vadd.f32 %v4461, %v4483
      %v4502 = vadd.f32 %v4462, %v4484
      %v4503 = vadd.f32 %v4463, %v4485
      %v4504 = vadd.f32 %v4464, %v4486
      %v4505 = vadd.f32 %v4465, %v4487
      %v4506 = vadd.f32 %v4466, %v4488
      %v4507 = vadd.f32 %v4467, %v4489
      %v4508 = vadd.f32 %v4468, %v4490
      %v4509 = vadd.f32 %v4469, %v4491
      %v4510 = vadd.f32 %v4470, %v4492
      %v4511 = vld [vmem:[#allocation3 + $0xc5] sm:$0xff]
      %v4512 = vld [vmem:[#allocation3 + $0xcd] sm:$0xff]
      %v4513 = vld [vmem:[#allocation2 + $0x25] sm:$0x1]
      %v4514 = vperm.slane %v4513, 0
      %v4515 = vmul.f32 %v3543, %v4514
      %v4516 = vmul.f32 %v3544, %v4514
      %v4517 = vmul.f32 %v3545, %v4514
      %v4518 = vmul.f32 %v3546, %v4514
      %v4519 = vmul.f32 %v3547, %v4514
      %v4520 = vmul.f32 %v3548, %v4514
      %v4521 = vmul.f32 %v3549, %v4514
      %v4522 = vmul.f32 %v3550, %v4514
      %v4523 = vmul.f32 %v3551, %v4514
      %v4524 = vmul.f32 %v3552, %v4514
      %v4525 = vmul.f32 %v3791, %v4514
      %v4526 = vmul.f32 %v3792, %v4514
      %v4527 = vmul.f32 %v4031, %v4514
      %v4528 = vmul.f32 %v4032, %v4514
      %v4529 = vmul.f32 %v4271, %v4514
      %v4530 = vmul.f32 %v4272, %v4514
      %v4531 = vmul.f32 %v4511, %v4514
      %v4532 = vmul.f32 %v4512, %v4514
      %v4533 = vadd.f32 %v4493, %v4515
      %v4534 = vadd.f32 %v4494, %v4516
      %v4535 = vadd.f32 %v4495, %v4517
      %v4536 = vadd.f32 %v4496, %v4518
      %v4537 = vadd.f32 %v4497, %v4519
      %v4538 = vadd.f32 %v4498, %v4520
      %v4539 = vadd.f32 %v4499, %v4521
      %v4540 = vadd.f32 %v4500, %v4522
      %v4541 = vadd.f32 %v4501, %v4523
      %v4542 = vadd.f32 %v4502, %v4524
      %v4543 = vadd.f32 %v4503, %v4525
      %v4544 = vadd.f32 %v4504, %v4526
      %v4545 = vadd.f32 %v4505, %v4527
      %v4546 = vadd.f32 %v4506, %v4528
      %v4547 = vadd.f32 %v4507, %v4529
      %v4548 = vadd.f32 %v4508, %v4530
      %v4549 = vadd.f32 %v4509, %v4531
      %v4550 = vadd.f32 %v4510, %v4532
      %v4551 = vld [vmem:[#allocation3 + $0xd0] sm:$0xff]
      %v4552 = vld [vmem:[#allocation3 + $0xd8] sm:$0xff]
      %v4553 = vld [vmem:[#allocation2 + $0x28] sm:$0x1]
      %v4554 = vperm.slane %v4553, 0
      %v4555 = vmul.f32 %v3265, %v4554
      %v4556 = vmul.f32 %v3266, %v4554
      %v4557 = vmul.f32 %v3267, %v4554
      %v4558 = vmul.f32 %v3268, %v4554
      %v4559 = vmul.f32 %v3269, %v4554
      %v4560 = vmul.f32 %v3270, %v4554
      %v4561 = vmul.f32 %v3271, %v4554
      %v4562 = vmul.f32 %v3272, %v4554
      %v4563 = vmul.f32 %v3591, %v4554
      %v4564 = vmul.f32 %v3592, %v4554
      %v4565 = vmul.f32 %v3831, %v4554
      %v4566 = vmul.f32 %v3832, %v4554
      %v4567 = vmul.f32 %v4071, %v4554
      %v4568 = vmul.f32 %v4072, %v4554
      %v4569 = vmul.f32 %v4311, %v4554
      %v4570 = vmul.f32 %v4312, %v4554
      %v4571 = vmul.f32 %v4551, %v4554
      %v4572 = vmul.f32 %v4552, %v4554
      %v4573 = vadd.f32 %v4533, %v4555
      %v4574 = vadd.f32 %v4534, %v4556
      %v4575 = vadd.f32 %v4535, %v4557
      %v4576 = vadd.f32 %v4536, %v4558
      %v4577 = vadd.f32 %v4537, %v4559
      %v4578 = vadd.f32 %v4538, %v4560
      %v4579 = vadd.f32 %v4539, %v4561
      %v4580 = vadd.f32 %v4540, %v4562
      %v4581 = vadd.f32 %v4541, %v4563
      %v4582 = vadd.f32 %v4542, %v4564
      %v4583 = vadd.f32 %v4543, %v4565
      %v4584 = vadd.f32 %v4544, %v4566
      %v4585 = vadd.f32 %v4545, %v4567
      %v4586 = vadd.f32 %v4546, %v4568
      %v4587 = vadd.f32 %v4547, %v4569
      %v4588 = vadd.f32 %v4548, %v4570
      %v4589 = vadd.f32 %v4549, %v4571
      %v4590 = vadd.f32 %v4550, %v4572
      %v4591 = vld [vmem:[#allocation3 + $0xd1] sm:$0xff]
      %v4592 = vld [vmem:[#allocation3 + $0xd9] sm:$0xff]
      %v4593 = vld [vmem:[#allocation2 + $0x29] sm:$0x1]
      %v4594 = vperm.slane %v4593, 0
      %v4595 = vmul.f32 %v3321, %v4594
      %v4596 = vmul.f32 %v3322, %v4594
      %v4597 = vmul.f32 %v3323, %v4594
      %v4598 = vmul.f32 %v3324, %v4594
      %v4599 = vmul.f32 %v3325, %v4594
      %v4600 = vmul.f32 %v3326, %v4594
      %v4601 = vmul.f32 %v3327, %v4594
      %v4602 = vmul.f32 %v3328, %v4594
      %v4603 = vmul.f32 %v3631, %v4594
      %v4604 = vmul.f32 %v3632, %v4594
      %v4605 = vmul.f32 %v3871, %v4594
      %v4606 = vmul.f32 %v3872, %v4594
      %v4607 = vmul.f32 %v4111, %v4594
      %v4608 = vmul.f32 %v4112, %v4594
      %v4609 = vmul.f32 %v4351, %v4594
      %v4610 = vmul.f32 %v4352, %v4594
      %v4611 = vmul.f32 %v4591, %v4594
      %v4612 = vmul.f32 %v4592, %v4594
      %v4613 = vadd.f32 %v4573, %v4595
      %v4614 = vadd.f32 %v4574, %v4596
      %v4615 = vadd.f32 %v4575, %v4597
      %v4616 = vadd.f32 %v4576, %v4598
      %v4617 = vadd.f32 %v4577, %v4599
      %v4618 = vadd.f32 %v4578, %v4600
      %v4619 = vadd.f32 %v4579, %v4601
      %v4620 = vadd.f32 %v4580, %v4602
      %v4621 = vadd.f32 %v4581, %v4603
      %v4622 = vadd.f32 %v4582, %v4604
      %v4623 = vadd.f32 %v4583, %v4605
      %v4624 = vadd.f32 %v4584, %v4606
      %v4625 = vadd.f32 %v4585, %v4607
      %v4626 = vadd.f32 %v4586, %v4608
      %v4627 = vadd.f32 %v4587, %v4609
      %v4628 = vadd.f32 %v4588, %v4610
      %v4629 = vadd.f32 %v4589, %v4611
      %v4630 = vadd.f32 %v4590, %v4612
      %v4631 = vld [vmem:[#allocation3 + $0xd2] sm:$0xff]
      %v4632 = vld [vmem:[#allocation3 + $0xda] sm:$0xff]
      %v4633 = vld [vmem:[#allocation2 + $0x2a] sm:$0x1]
      %v4634 = vperm.slane %v4633, 0
      %v4635 = vmul.f32 %v3377, %v4634
      %v4636 = vmul.f32 %v3378, %v4634
      %v4637 = vmul.f32 %v3379, %v4634
      %v4638 = vmul.f32 %v3380, %v4634
      %v4639 = vmul.f32 %v3381, %v4634
      %v4640 = vmul.f32 %v3382, %v4634
      %v4641 = vmul.f32 %v3383, %v4634
      %v4642 = vmul.f32 %v3384, %v4634
      %v4643 = vmul.f32 %v3671, %v4634
      %v4644 = vmul.f32 %v3672, %v4634
      %v4645 = vmul.f32 %v3911, %v4634
      %v4646 = vmul.f32 %v3912, %v4634
      %v4647 = vmul.f32 %v4151, %v4634
      %v4648 = vmul.f32 %v4152, %v4634
      %v4649 = vmul.f32 %v4391, %v4634
      %v4650 = vmul.f32 %v4392, %v4634
      %v4651 = vmul.f32 %v4631, %v4634
      %v4652 = vmul.f32 %v4632, %v4634
      %v4653 = vadd.f32 %v4613, %v4635
      %v4654 = vadd.f32 %v4614, %v4636
      %v4655 = vadd.f32 %v4615, %v4637
      %v4656 = vadd.f32 %v4616, %v4638
      %v4657 = vadd.f32 %v4617, %v4639
      %v4658 = vadd.f32 %v4618, %v4640
      %v4659 = vadd.f32 %v4619, %v4641
      %v4660 = vadd.f32 %v4620, %v4642
      %v4661 = vadd.f32 %v4621, %v4643
      %v4662 = vadd.f32 %v4622, %v4644
      %v4663 = vadd.f32 %v4623, %v4645
      %v4664 = vadd.f32 %v4624, %v4646
      %v4665 = vadd.f32 %v4625, %v4647
      %v4666 = vadd.f32 %v4626, %v4648
      %v4667 = vadd.f32 %v4627, %v4649
      %v4668 = vadd.f32 %v4628, %v4650
      %v4669 = vadd.f32 %v4629, %v4651
      %v4670 = vadd.f32 %v4630, %v4652
      %v4671 = vld [vmem:[#allocation3 + $0xd3] sm:$0xff]
      %v4672 = vld [vmem:[#allocation3 + $0xdb] sm:$0xff]
      %v4673 = vld [vmem:[#allocation2 + $0x2b] sm:$0x1]
      %v4674 = vperm.slane %v4673, 0
      %v4675 = vmul.f32 %v3433, %v4674
      %v4676 = vmul.f32 %v3434, %v4674
      %v4677 = vmul.f32 %v3435, %v4674
      %v4678 = vmul.f32 %v3436, %v4674
      %v4679 = vmul.f32 %v3437, %v4674
      %v4680 = vmul.f32 %v3438, %v4674
      %v4681 = vmul.f32 %v3439, %v4674
      %v4682 = vmul.f32 %v3440, %v4674
      %v4683 = vmul.f32 %v3711, %v4674
      %v4684 = vmul.f32 %v3712, %v4674
      %v4685 = vmul.f32 %v3951, %v4674
      %v4686 = vmul.f32 %v3952, %v4674
      %v4687 = vmul.f32 %v4191, %v4674
      %v4688 = vmul.f32 %v4192, %v4674
      %v4689 = vmul.f32 %v4431, %v4674
      %v4690 = vmul.f32 %v4432, %v4674
      %v4691 = vmul.f32 %v4671, %v4674
      %v4692 = vmul.f32 %v4672, %v4674
      %v4693 = vadd.f32 %v4653, %v4675
      %v4694 = vadd.f32 %v4654, %v4676
      %v4695 = vadd.f32 %v4655, %v4677
      %v4696 = vadd.f32 %v4656, %v4678
      %v4697 = vadd.f32 %v4657, %v4679
      %v4698 = vadd.f32 %v4658, %v4680
      %v4699 = vadd.f32 %v4659, %v4681
      %v4700 = vadd.f32 %v4660, %v4682
      %v4701 = vadd.f32 %v4661, %v4683
      %v4702 = vadd.f32 %v4662, %v4684
      %v4703 = vadd.f32 %v4663, %v4685
      %v4704 = vadd.f32 %v4664, %v4686
      %v4705 = vadd.f32 %v4665, %v4687
      %v4706 = vadd.f32 %v4666, %v4688
      %v4707 = vadd.f32 %v4667, %v4689
      %v4708 = vadd.f32 %v4668, %v4690
      %v4709 = vadd.f32 %v4669, %v4691
      %v4710 = vadd.f32 %v4670, %v4692
      %v4711 = vld [vmem:[#allocation3 + $0xd4] sm:$0xff]
      %v4712 = vld [vmem:[#allocation3 + $0xdc] sm:$0xff]
      %v4713 = vld [vmem:[#allocation2 + $0x2c] sm:$0x1]
      %v4714 = vperm.slane %v4713, 0
      %v4715 = vmul.f32 %v3489, %v4714
      %v4716 = vmul.f32 %v3490, %v4714
      %v4717 = vmul.f32 %v3491, %v4714
      %v4718 = vmul.f32 %v3492, %v4714
      %v4719 = vmul.f32 %v3493, %v4714
      %v4720 = vmul.f32 %v3494, %v4714
      %v4721 = vmul.f32 %v3495, %v4714
      %v4722 = vmul.f32 %v3496, %v4714
      %v4723 = vmul.f32 %v3751, %v4714
      %v4724 = vmul.f32 %v3752, %v4714
      %v4725 = vmul.f32 %v3991, %v4714
      %v4726 = vmul.f32 %v3992, %v4714
      %v4727 = vmul.f32 %v4231, %v4714
      %v4728 = vmul.f32 %v4232, %v4714
      %v4729 = vmul.f32 %v4471, %v4714
      %v4730 = vmul.f32 %v4472, %v4714
      %v4731 = vmul.f32 %v4711, %v4714
      %v4732 = vmul.f32 %v4712, %v4714
      %v4733 = vadd.f32 %v4693, %v4715
      %v4734 = vadd.f32 %v4694, %v4716
      %v4735 = vadd.f32 %v4695, %v4717
      %v4736 = vadd.f32 %v4696, %v4718
      %v4737 = vadd.f32 %v4697, %v4719
      %v4738 = vadd.f32 %v4698, %v4720
      %v4739 = vadd.f32 %v4699, %v4721
      %v4740 = vadd.f32 %v4700, %v4722
      %v4741 = vadd.f32 %v4701, %v4723
      %v4742 = vadd.f32 %v4702, %v4724
      %v4743 = vadd.f32 %v4703, %v4725
      %v4744 = vadd.f32 %v4704, %v4726
      %v4745 = vadd.f32 %v4705, %v4727
      %v4746 = vadd.f32 %v4706, %v4728
      %v4747 = vadd.f32 %v4707, %v4729
      %v4748 = vadd.f32 %v4708, %v4730
      %v4749 = vadd.f32 %v4709, %v4731
      %v4750 = vadd.f32 %v4710, %v4732
      %v4751 = vld [vmem:[#allocation3 + $0xd5] sm:$0xff]
      %v4752 = vld [vmem:[#allocation3 + $0xdd] sm:$0xff]
      %v4753 = vld [vmem:[#allocation2 + $0x2d] sm:$0x1]
      %v4754 = vperm.slane %v4753, 0
      %v4755 = vmul.f32 %v3545, %v4754
      %v4756 = vmul.f32 %v3546, %v4754
      %v4757 = vmul.f32 %v3547, %v4754
      %v4758 = vmul.f32 %v3548, %v4754
      %v4759 = vmul.f32 %v3549, %v4754
      %v4760 = vmul.f32 %v3550, %v4754
      %v4761 = vmul.f32 %v3551, %v4754
      %v4762 = vmul.f32 %v3552, %v4754
      %v4763 = vmul.f32 %v3791, %v4754
      %v4764 = vmul.f32 %v3792, %v4754
      %v4765 = vmul.f32 %v4031, %v4754
      %v4766 = vmul.f32 %v4032, %v4754
      %v4767 = vmul.f32 %v4271, %v4754
      %v4768 = vmul.f32 %v4272, %v4754
      %v4769 = vmul.f32 %v4511, %v4754
      %v4770 = vmul.f32 %v4512, %v4754
      %v4771 = vmul.f32 %v4751, %v4754
      %v4772 = vmul.f32 %v4752, %v4754
      %v4773 = vadd.f32 %v4733, %v4755
      %v4774 = vadd.f32 %v4734, %v4756
      %v4775 = vadd.f32 %v4735, %v4757
      %v4776 = vadd.f32 %v4736, %v4758
      %v4777 = vadd.f32 %v4737, %v4759
      %v4778 = vadd.f32 %v4738, %v4760
      %v4779 = vadd.f32 %v4739, %v4761
      %v4780 = vadd.f32 %v4740, %v4762
      %v4781 = vadd.f32 %v4741, %v4763
      %v4782 = vadd.f32 %v4742, %v4764
      %v4783 = vadd.f32 %v4743, %v4765
      %v4784 = vadd.f32 %v4744, %v4766
      %v4785 = vadd.f32 %v4745, %v4767
      %v4786 = vadd.f32 %v4746, %v4768
      %v4787 = vadd.f32 %v4747, %v4769
      %v4788 = vadd.f32 %v4748, %v4770
      %v4789 = vadd.f32 %v4749, %v4771
      %v4790 = vadd.f32 %v4750, %v4772
      %v4791 = vpack.c.bf16 %v4774, %v4773
      %v4792 = vpack.c.bf16 %v4776, %v4775
      %v4793 = vpack.c.bf16 %v4778, %v4777
      %v4794 = vpack.c.bf16 %v4780, %v4779
      %v4795 = vpack.c.bf16 %v4782, %v4781
      %v4796 = vpack.c.bf16 %v4784, %v4783
      %v4797 = vpack.c.bf16 %v4786, %v4785
      %v4798 = vpack.c.bf16 %v4788, %v4787
      %v4799 = vpack.c.bf16 %v4790, %v4789
      %v4800 = vld [vmem:[%s545] sm:$0xf]
      %v4801 = vld [vmem:[%s545 + $0x4] sm:$0xf]
      %v4802 = vld [vmem:[%s548] sm:$0x1]
      %v4804 = vperm.slane %v4802, 0
      %v4808 = vunpack.c.l.b16 %v4800
      %v4809 = vunpack.c.l.b16 %v4801
      %v4810 = vpack.c.b16 %v4809, %v4808
      %v4813 = vsel %vm1135, %v4791, 0
      %v4816 = vsel %vm1135, %v4792, 0
      %v4819 = vsel %vm1135, %v4793, 0
      %v4822 = vsel %vm1135, %v4794, 0
      %v4825 = vsel %vm1135, %v4795, 0
      %v4828 = vsel %vm1135, %v4796, 0
      %v4831 = vsel %vm1135, %v4797, 0
      %v4834 = vsel %vm1135, %v4798, 0
      %v4837 = vsel %vm1135, %v4799, 0
      %4839 = vmatpush.bf16.msra.mxu0 0
      %4840 = vmatpush.bf16.msra.mxu0 0
      %4841 = vmatpush.bf16.msra.mxu0 0
      %4842 = vmatpush.bf16.msra.mxu0 0
      %4843 = vmatpush.bf16.msra.mxu0 0
      %4844 = vmatpush.bf16.msra.mxu0 0
      %4845 = vmatpush.bf16.msra.mxu0 0
      %4846 = vmatpush.bf16.msra.mxu0 %v4810
      %4847 = vmatmul.bf16.gmra.mxu0 %v4813
      %v4848 = vpop.f32.mrf.mxu0
      %v4849 = vadd.f32 %v4804, %v4848
      %v4850 = vpop.f32.mrf.mxu0
      %v4851 = vadd.f32 %v4804, %v4850
      %4852 = vmatmul.bf16.gmra.mxu0 %v4816
      %v4853 = vpop.f32.mrf.mxu0
      %v4854 = vadd.f32 %v4804, %v4853
      %v4855 = vpop.f32.mrf.mxu0
      %v4856 = vadd.f32 %v4804, %v4855
      %4857 = vmatmul.bf16.gmra.mxu0 %v4819
      %v4858 = vpop.f32.mrf.mxu0
      %v4859 = vadd.f32 %v4804, %v4858
      %v4860 = vpop.f32.mrf.mxu0
      %v4861 = vadd.f32 %v4804, %v4860
      %4862 = vmatmul.bf16.gmra.mxu0 %v4822
      %v4863 = vpop.f32.mrf.mxu0
      %v4864 = vadd.f32 %v4804, %v4863
      %v4865 = vpop.f32.mrf.mxu0
      %v4866 = vadd.f32 %v4804, %v4865
      %4867 = vmatmul.bf16.gmra.mxu0 %v4825
      %v4868 = vpop.f32.mrf.mxu0
      %v4869 = vadd.f32 %v4804, %v4868
      %v4870 = vpop.f32.mrf.mxu0
      %v4871 = vadd.f32 %v4804, %v4870
      %4872 = vmatmul.bf16.gmra.mxu0 %v4828
      %v4873 = vpop.f32.mrf.mxu0
      %v4874 = vadd.f32 %v4804, %v4873
      %v4875 = vpop.f32.mrf.mxu0
      %v4876 = vadd.f32 %v4804, %v4875
      %4877 = vmatmul.bf16.gmra.mxu0 %v4831
      %v4878 = vpop.f32.mrf.mxu0
      %v4879 = vadd.f32 %v4804, %v4878
      %v4880 = vpop.f32.mrf.mxu0
      %v4881 = vadd.f32 %v4804, %v4880
      %4882 = vmatmul.bf16.gmra.mxu0 %v4834
      %v4883 = vpop.f32.mrf.mxu0
      %v4884 = vadd.f32 %v4804, %v4883
      %v4885 = vpop.f32.mrf.mxu0
      %v4886 = vadd.f32 %v4804, %v4885
      %4887 = vmatmul.bf16.gmra.mxu0 %v4837
      %v4888 = vpop.f32.mrf.mxu0
      %v4889 = vadd.f32 %v4804, %v4888
      %v4890 = vpop.f32.mrf.mxu0
      %v4891 = vadd.f32 %v4804, %v4890
      %4892 = vdwg.mxu0
      %v4893 = vmax.f32 %v4849, 0.0
      %v4894 = vmax.f32 %v4851, 0.0
      %v4895 = vmax.f32 %v4854, 0.0
      %v4896 = vmax.f32 %v4856, 0.0
      %v4897 = vmax.f32 %v4859, 0.0
      %v4898 = vmax.f32 %v4861, 0.0
      %v4899 = vmax.f32 %v4864, 0.0
      %v4900 = vmax.f32 %v4866, 0.0
      %v4901 = vmax.f32 %v4869, 0.0
      %v4902 = vmax.f32 %v4871, 0.0
      %v4903 = vmax.f32 %v4874, 0.0
      %v4904 = vmax.f32 %v4876, 0.0
      %v4905 = vmax.f32 %v4879, 0.0
      %v4906 = vmax.f32 %v4881, 0.0
      %v4907 = vmax.f32 %v4884, 0.0
      %v4908 = vmax.f32 %v4886, 0.0
      %v4909 = vmax.f32 %v4889, 0.0
      %v4910 = vmax.f32 %v4891, 0.0
      %v4911 = vpack.c.bf16 %v4894, %v4893
      %v4912 = vpack.c.bf16 %v4896, %v4895
      %v4913 = vpack.c.bf16 %v4898, %v4897
      %v4914 = vpack.c.bf16 %v4900, %v4899
      %v4915 = vpack.c.bf16 %v4902, %v4901
      %v4916 = vpack.c.bf16 %v4904, %v4903
      %v4917 = vpack.c.bf16 %v4906, %v4905
      %v4918 = vpack.c.bf16 %v4908, %v4907
      %v4919 = vpack.c.bf16 %v4910, %v4909
      %v4920 = vld [vmem:[%s553] sm:$0xf]
      %v4921 = vld [vmem:[%s553 + $0x4] sm:$0xf]
      %v4922 = vld [vmem:[%s556] sm:$0x1]
      %v4924 = vperm.slane %v4922, 0
      %v4928 = vunpack.c.l.b16 %v4920
      %v4929 = vunpack.c.l.b16 %v4921
      %v4930 = vpack.c.b16 %v4929, %v4928
      %v4933 = vsel %vm1135, %v4911, 0
      %v4936 = vsel %vm1135, %v4912, 0
      %v4939 = vsel %vm1135, %v4913, 0
      %v4942 = vsel %vm1135, %v4914, 0
      %v4945 = vsel %vm1135, %v4915, 0
      %v4948 = vsel %vm1135, %v4916, 0
      %v4951 = vsel %vm1135, %v4917, 0
      %v4954 = vsel %vm1135, %v4918, 0
      %v4957 = vsel %vm1135, %v4919, 0
      %4959 = vmatpush.bf16.msra.mxu0 0
      %4960 = vmatpush.bf16.msra.mxu0 0
      %4961 = vmatpush.bf16.msra.mxu0 0
      %4962 = vmatpush.bf16.msra.mxu0 0
      %4963 = vmatpush.bf16.msra.mxu0 0
      %4964 = vmatpush.bf16.msra.mxu0 0
      %4965 = vmatpush.bf16.msra.mxu0 0
      %4966 = vmatpush.bf16.msra.mxu0 %v4930
      %4967 = vmatmul.bf16.gmra.mxu0 %v4933
      %v4968 = vpop.f32.mrf.mxu0
      %v4969 = vadd.f32 %v4924, %v4968
      %v4970 = vpop.f32.mrf.mxu0
      %v4971 = vadd.f32 %v4924, %v4970
      %4972 = vmatmul.bf16.gmra.mxu0 %v4936
      %v4973 = vpop.f32.mrf.mxu0
      %v4974 = vadd.f32 %v4924, %v4973
      %v4975 = vpop.f32.mrf.mxu0
      %v4976 = vadd.f32 %v4924, %v4975
      %4977 = vmatmul.bf16.gmra.mxu0 %v4939
      %v4978 = vpop.f32.mrf.mxu0
      %v4979 = vadd.f32 %v4924, %v4978
      %v4980 = vpop.f32.mrf.mxu0
      %v4981 = vadd.f32 %v4924, %v4980
      %4982 = vmatmul.bf16.gmra.mxu0 %v4942
      %v4983 = vpop.f32.mrf.mxu0
      %v4984 = vadd.f32 %v4924, %v4983
      %v4985 = vpop.f32.mrf.mxu0
      %v4986 = vadd.f32 %v4924, %v4985
      %4987 = vmatmul.bf16.gmra.mxu0 %v4945
      %v4988 = vpop.f32.mrf.mxu0
      %v4989 = vadd.f32 %v4924, %v4988
      %v4990 = vpop.f32.mrf.mxu0
      %v4991 = vadd.f32 %v4924, %v4990
      %4992 = vmatmul.bf16.gmra.mxu0 %v4948
      %v4993 = vpop.f32.mrf.mxu0
      %v4994 = vadd.f32 %v4924, %v4993
      %v4995 = vpop.f32.mrf.mxu0
      %v4996 = vadd.f32 %v4924, %v4995
      %4997 = vmatmul.bf16.gmra.mxu0 %v4951
      %v4998 = vpop.f32.mrf.mxu0
      %v4999 = vadd.f32 %v4924, %v4998
      %v5000 = vpop.f32.mrf.mxu0
      %v5001 = vadd.f32 %v4924, %v5000
      %5002 = vmatmul.bf16.gmra.mxu0 %v4954
      %v5003 = vpop.f32.mrf.mxu0
      %v5004 = vadd.f32 %v4924, %v5003
      %v5005 = vpop.f32.mrf.mxu0
      %v5006 = vadd.f32 %v4924, %v5005
      %5007 = vmatmul.bf16.gmra.mxu0 %v4957
      %v5008 = vpop.f32.mrf.mxu0
      %v5009 = vadd.f32 %v4924, %v5008
      %v5010 = vpop.f32.mrf.mxu0
      %v5011 = vadd.f32 %v4924, %v5010
      %5012 = vdwg.mxu0
      %vm5013 = vcmask 97280
      %5014 = vst.msk [vmem:[%s565] sm:$0xff] %vm5013, %v4969
      %5015 = vst.msk [vmem:[%s565 + $0x8] sm:$0xff] %vm5013, %v4971
      %5016 = vst.msk [vmem:[%s565 + $0x10] sm:$0xff] %vm5013, %v4974
      %5017 = vst.msk [vmem:[%s565 + $0x18] sm:$0xff] %vm5013, %v4976
      %5018 = vst.msk [vmem:[%s565 + $0x20] sm:$0xff] %vm5013, %v4979
      %5019 = vst.msk [vmem:[%s565 + $0x28] sm:$0xff] %vm5013, %v4981
      %5020 = vst.msk [vmem:[%s565 + $0x30] sm:$0xff] %vm5013, %v4984
      %5021 = vst.msk [vmem:[%s565 + $0x38] sm:$0xff] %vm5013, %v4986
      %5022 = vst.msk [vmem:[%s565 + $0x40] sm:$0xff] %vm5013, %v4989
      %5023 = vst.msk [vmem:[%s565 + $0x48] sm:$0xff] %vm5013, %v4991
      %5024 = vst.msk [vmem:[%s565 + $0x50] sm:$0xff] %vm5013, %v4994
      %5025 = vst.msk [vmem:[%s565 + $0x58] sm:$0xff] %vm5013, %v4996
      %5026 = vst.msk [vmem:[%s565 + $0x60] sm:$0xff] %vm5013, %v4999
      %5027 = vst.msk [vmem:[%s565 + $0x68] sm:$0xff] %vm5013, %v5001
      %5028 = vst.msk [vmem:[%s565 + $0x70] sm:$0xff] %vm5013, %v5004
      %5029 = vst.msk [vmem:[%s565 + $0x78] sm:$0xff] %vm5013, %v5006
      %5030 = vst.msk [vmem:[%s565 + $0x80] sm:$0xff] %vm5013, %v5009
      %5031 = vst.msk [vmem:[%s565 + $0x88] sm:$0xff] %vm5013, %v5011
      %p5032 = scmp.lt.s32.totalorder %s25, 1
      %s5033 = scalar_select %p5032, %s25, 1
      %p5034 = scmp.lt.s32.totalorder %s26, 1
      %s5035 = scalar_select %p5034, %s26, 1
      %s5036 = smul.addr %s5035, 18
      %s5037 = smul.addr %s5033, 36
      %s5038 = sadd.s32 %s5036, %s5037
      %s5039 = smul.addr %s5038, 8
      %s5040 = scalar_lea.vmem %s10, %s5039
      // Predicated region
      $region61: #{tpu_custom_call.1} parent=59 // pred_check
        %p5041 = pneg %p317
      $region62: #{tpu_custom_call.1} parent=59 // pred_check_branch
        %5043 = sbr.rel (%p5041) target = $region64
      $region63: #{tpu_custom_call.1} parent=59 // pred_region
        _
      $region64: #{tpu_custom_call.1} parent=59 // pred_fallthru
        _
    $region60: #{tpu_custom_call.1} parent=5 // pred_fallthru
      _
    %p5044 = scmp.le.s32.totalorder 2, %s16
    // Predicated region
    $region65: #{tpu_custom_call.1} parent=5 // pred_check
      %p5045 = pneg %p5044
    $region66: #{tpu_custom_call.1} parent=5 // pred_check_branch
      %5047 = sbr.rel (%p5045) target = $region68
    $region67: #{tpu_custom_call.1} parent=5 // pred_region
      %s5048 = ssub.s32 %s16, 2
      // Predicated region
      $region69: #{tpu_custom_call.1} parent=67 // pred_check
        %p5049 = pneg %p323
      $region70: #{tpu_custom_call.1} parent=67 // pred_check_branch
        %5051 = sbr.rel (%p5049) target = $region72
      $region71: #{tpu_custom_call.1} parent=67 // pred_region
        %p5052 = scmp.lt.s32.totalorder %s27, 1
        %s5053 = scalar_select %p5052, %s27, 1
        %p5054 = scmp.lt.s32.totalorder %s28, 1
        %s5055 = scalar_select %p5054, %s28, 1
        %s5056 = smul.addr %s5055, 18
        %s5057 = smul.addr %s5053, 36
        %s5058 = sadd.s32 %s5056, %s5057
        %s5059 = smul.addr %s5058, 8
        %s5060 = scalar_lea.vmem %s10, %s5059
      $region72: #{tpu_custom_call.1} parent=67 // pred_fallthru
        _
    $region68: #{tpu_custom_call.1} parent=5 // pred_fallthru
      _
  $region6: #{tpu_custom_call.1} parent=0 // loop_footer
    %s20 = sadd.s32 1, %s16
  $region7: #{tpu_custom_call.1} parent=0 // loop_footer_branch
    %15 = sbr.rel target = $region3
  $region8: #{tpu_custom_call.1} parent=0 // loop_exit
    _

</llo_original>
